<compile_context>
chip_gen: v7x
topology: tpu7x:2x2x1
jax: 0.10.0
libtpu: 0.0.40
codegen_flags: <defaults>
</compile_context>

<pallas_src>
import functools

import jax
import jax.numpy as jnp
from jax import lax
from jax.experimental import pallas as pl
from jax.experimental.pallas import tpu as pltpu

_LN_EPS = 1e-5  # PyTorch nn.LayerNorm default


def _layernorm_f32(x, gamma, beta, eps):
    mu = jnp.mean(x, axis=-1, keepdims=True)
    var = jnp.mean((x - mu) ** 2, axis=-1, keepdims=True)
    return (x - mu) * lax.rsqrt(var + eps) * gamma + beta


def _vit_block_kernel(x_ref, g1_ref, b1_ref, wqkv_ref, wproj_ref, bproj_ref,
                      g2_ref, b2_ref, w1_ref, fb1_ref, w2_ref, fb2_ref,
                      o_ref, ctx_ref, *, num_heads, head_dim, scale, eps):
    """One batch element per grid step: LN1 + MHSA + proj + res, LN2 + MLP + res."""
    x = x_ref[0].astype(jnp.float32)                          # (N, C) residual stream
    C = x.shape[-1]

    # ---- LayerNorm 1 + fused QKV projection ----
    h = _layernorm_f32(x, g1_ref[...], b1_ref[...], eps)
    qkv = jnp.dot(h.astype(jnp.bfloat16), wqkv_ref[...],
                  preferred_element_type=jnp.float32)          # (N, 3C) f32

    # Hoisted, C-aligned q/k/v slices; softmax scale folded into q once.
    q_all = (qkv[:, :C] * scale).astype(jnp.bfloat16)
    k_all = qkv[:, C:2 * C].astype(jnp.bfloat16)
    v_all = qkv[:, 2 * C:3 * C].astype(jnp.bfloat16)

    # ---- per-head attention; ctx assembled in VMEM scratch (static offsets) ----
    for hh in range(num_heads):
        lo = hh * head_dim
        hi = lo + head_dim
        q = q_all[:, lo:hi]                                    # (N, hd) bf16
        k = k_all[:, lo:hi]
        v = v_all[:, lo:hi]
        # scores = (q*scale) @ k^T  (contraction on head_dim, no transpose op)
        s = lax.dot_general(q, k, (((1,), (1,)), ((), ())),
                            preferred_element_type=jnp.float32)  # (N, N)
        m = jnp.max(s, axis=-1, keepdims=True)
        p = jnp.exp(s - m)                                     # unnormalized probs
        l = jnp.sum(p, axis=-1, keepdims=True)
        ctx = jnp.dot(p.astype(jnp.bfloat16), v,
                      preferred_element_type=jnp.float32)       # (N, hd)
        # Deferred softmax normalization: EUP reciprocal + (N, hd) multiply.
        ctx_ref[:, lo:hi] = ctx * pl.reciprocal(l, approx=True)

    # ---- single output projection (K = C) + residual 1 ----
    attn_out = jnp.dot(ctx_ref[...].astype(jnp.bfloat16), wproj_ref[...],
                       preferred_element_type=jnp.float32) + bproj_ref[...]
    x = x + attn_out

    # ---- LayerNorm 2 + MLP + residual 2 (fused: no HBM round trip) ----
    h2 = _layernorm_f32(x, g2_ref[...], b2_ref[...], eps)
    u = jnp.dot(h2.astype(jnp.bfloat16), w1_ref[...],
                preferred_element_type=jnp.float32) + fb1_ref[...]
    # TODO(synk): PyTorch nn.GELU default is the exact erf formulation; the tanh
    # approximation is used in-kernel (guaranteed Mosaic lowering, ~1e-3 max dev).
    u = jax.nn.gelu(u, approximate=True)
    y = jnp.dot(u.astype(jnp.bfloat16), w2_ref[...],
                preferred_element_type=jnp.float32) + fb2_ref[...]

    o_ref[0] = (x + y).astype(o_ref.dtype)


def _build_block_call(B, N, C, Hid, num_heads, head_dim, scale, out_dtype,
                      *, single_buffer_weights, vmem_limit_bytes, cost):
    def _const_spec(shape):
        index_map = lambda b: (0,) * len(shape)
        if single_buffer_weights:
            # Resident weights never change across the batch grid; single
            # buffering halves their VMEM footprint (matters on v7x / v5e).
            return pl.BlockSpec(shape, index_map, pipeline_mode=pl.Buffered(1))
        return pl.BlockSpec(shape, index_map)

    kernel = functools.partial(_vit_block_kernel, num_heads=num_heads,
                               head_dim=head_dim, scale=scale, eps=_LN_EPS)
    return pl.pallas_call(
        kernel,
        out_shape=jax.ShapeDtypeStruct((B, N, C), out_dtype),
        grid_spec=pltpu.PrefetchScalarGridSpec(
            num_scalar_prefetch=0,
            grid=(B,),
            in_specs=[
                pl.BlockSpec((1, N, C), lambda b: (b, 0, 0)),   # x
                _const_spec((1, C)),                            # g1
                _const_spec((1, C)),                            # b1
                _const_spec((C, 3 * C)),                        # Wqkv^T (bf16)
                _const_spec((C, C)),                            # Wproj^T (bf16)
                _const_spec((1, C)),                            # bproj
                _const_spec((1, C)),                            # g2
                _const_spec((1, C)),                            # b2
                _const_spec((C, Hid)),                          # W1^T (bf16)
                _const_spec((1, Hid)),                          # b1 (fc1)
                _const_spec((Hid, C)),                          # W2^T (bf16)
                _const_spec((1, C)),                            # b2 (fc2)
            ],
            out_specs=pl.BlockSpec((1, N, C), lambda b: (b, 0, 0)),
            scratch_shapes=[pltpu.VMEM((N, C), jnp.float32)],   # per-head ctx assembly
        ),
        compiler_params=pltpu.CompilerParams(
            dimension_semantics=("parallel",),
            vmem_limit_bytes=vmem_limit_bytes),
        cost_estimate=cost,
    )


def vit_block_forward(x, params, num_heads):
    """
    x: (B, N, C) float32.
    params (PyTorch layouts):
      g1,b1: (C,)   wqkv: (3C,C)  (qkv_bias=False, module default)
      wproj: (C,C)  bproj: (C,)
      g2,b2: (C,)   w1: (Hid,C) fb1: (Hid,)  w2: (C,Hid) fb2: (C,)
    returns (B, N, C).
    """
    B, N, C = x.shape
    assert C % num_heads == 0
    head_dim = C // num_heads
    scale = head_dim ** -0.5
    Hid = params["w1"].shape[0]

    # Layout glue + bf16 cast of MXU operands (f32 accumulation in-kernel).
    wqkv_t = params["wqkv"].T.astype(jnp.bfloat16)             # (C, 3C)
    wproj_t = params["wproj"].T.astype(jnp.bfloat16)           # (C, C)
    w1_t = params["w1"].T.astype(jnp.bfloat16)                 # (C, Hid)
    w2_t = params["w2"].T.astype(jnp.bfloat16)                 # (Hid, C)
    g1 = params["g1"].reshape(1, C).astype(jnp.float32)
    b1 = params["b1"].reshape(1, C).astype(jnp.float32)
    g2 = params["g2"].reshape(1, C).astype(jnp.float32)
    b2 = params["b2"].reshape(1, C).astype(jnp.float32)
    bproj = params["bproj"].reshape(1, C).astype(jnp.float32)
    fb1 = params["fb1"].reshape(1, Hid).astype(jnp.float32)
    fb2 = params["fb2"].reshape(1, C).astype(jnp.float32)

    # VMEM budget: double-buffered bf16 weights (worst case), f32 biases,
    # double-buffered in/out activation blocks, ctx scratch, in-kernel
    # temporaries (qkv, fc1 activation), plus headroom.
    bf16_w = 2 * (C * 3 * C + C * C + 2 * C * Hid)
    f32_small = 4 * (5 * C + Hid)
    io_block = 4 * N * C
    temps = 4 * N * (3 * C + Hid) + 4 * 4 * N * C
    vmem_limit = int(2 * bf16_w + 2 * f32_small + 4 * io_block + 4 * N * C
                     + temps + (8 << 20))
    vmem_limit = max(vmem_limit, 32 << 20)

    cost = pl.CostEstimate(
        flops=int(B * (2 * N * C * 3 * C
                       + 4 * num_heads * N * N * head_dim
                       + 2 * N * C * C
                       + 4 * N * C * Hid)),
        transcendentals=int(B * (num_heads * N * N + N * Hid)),
        bytes_accessed=int(4 * 2 * B * N * C
                           + 2 * (3 * C * C + C * C + 2 * C * Hid)
                           + 4 * (5 * C + Hid)),
    )

    args = (x, g1, b1, wqkv_t, wproj_t, bproj, g2, b2, w1_t, fb1, w2_t, fb2)

    # Prefer single-buffered resident weights; fall back to default
    # double-buffering if this JAX/Mosaic build rejects pipeline_mode.
    last_err = None
    for single_buf in (True, False):
        try:
            fn = _build_block_call(B, N, C, Hid, num_heads, head_dim, scale,
                                   x.dtype, single_buffer_weights=single_buf,
                                   vmem_limit_bytes=vmem_limit, cost=cost)
            out = fn(*args)
            jax.block_until_ready(out)
            return out
        except Exception as e:  # retry once without pl.Buffered(1), else re-raise
            last_err = e
    raise last_err


if __name__ == "__main__":
    # Small shapes consistent with the module: batch=2, seq=8, dim=32, heads=4
    B, N, C = 2, 8, 32
    num_heads = 4
    Hid = int(C * 4.0)  # mlp_ratio = 4.0

    key = jax.random.PRNGKey(0)
    ks = jax.random.split(key, 12)
    x = jax.random.normal(ks[0], (B, N, C), dtype=jnp.float32)
    params = {
        "g1": 1.0 + 0.1 * jax.random.normal(ks[1], (C,), dtype=jnp.float32),
        "b1": 0.1 * jax.random.normal(ks[2], (C,), dtype=jnp.float32),
        "wqkv": 0.05 * jax.random.normal(ks[3], (3 * C, C), dtype=jnp.float32),
        "wproj": 0.05 * jax.random.normal(ks[4], (C, C), dtype=jnp.float32),
        "bproj": 0.05 * jax.random.normal(ks[5], (C,), dtype=jnp.float32),
        "g2": 1.0 + 0.1 * jax.random.normal(ks[6], (C,), dtype=jnp.float32),
        "b2": 0.1 * jax.random.normal(ks[7], (C,), dtype=jnp.float32),
        "w1": 0.05 * jax.random.normal(ks[8], (Hid, C), dtype=jnp.float32),
        "fb1": 0.05 * jax.random.normal(ks[9], (Hid,), dtype=jnp.float32),
        "w2": 0.05 * jax.random.normal(ks[10], (C, Hid), dtype=jnp.float32),
        "fb2": 0.05 * jax.random.normal(ks[11], (C,), dtype=jnp.float32),
    }

    y = vit_block_forward(x, params, num_heads)
    y = jax.block_until_ready(y)

    # Pure-JAX f32 reference mirroring the PyTorch Block forward (eval mode).
    def reference(xr, p):
        eps = _LN_EPS

        def ln(v, g, b):
            mu = v.mean(-1, keepdims=True)
            var = ((v - mu) ** 2).mean(-1, keepdims=True)
            return (v - mu) / jnp.sqrt(var + eps) * g + b

        Bc, Nc, Cc = xr.shape
        hd = Cc // num_heads
        h = ln(xr, p["g1"], p["b1"])
        qkv = h @ p["wqkv"].T
        qkv = qkv.reshape(Bc, Nc, 3, num_heads, hd).transpose(2, 0, 3, 1, 4)
        q, k, v = qkv[0], qkv[1], qkv[2]
        attn = (q @ jnp.swapaxes(k, -2, -1)) * (hd ** -0.5)
        attn = jax.nn.softmax(attn, axis=-1)
        ctx = (attn @ v).transpose(0, 2, 1, 3).reshape(Bc, Nc, Cc)
        xr = xr + (ctx @ p["wproj"].T + p["bproj"])
        h2 = ln(xr, p["g2"], p["b2"])
        u = h2 @ p["w1"].T + p["fb1"]
        u = 0.5 * u * (1.0 + jax.scipy.special.erf(u / jnp.sqrt(2.0)))  # exact GELU
        xr = xr + (u @ p["w2"].T + p["fb2"])
        return xr

    ref = reference(x, params)
    assert y.shape == (B, N, C)
    max_err = float(jnp.max(jnp.abs(y - ref)))
    assert jnp.allclose(y, ref, atol=3e-2, rtol=3e-2), f"max abs err {max_err}"
    print("KERNEL_OK")
</pallas_src>

<mosaic_0001>
module attributes {stable_mosaic.version = 11 : i64} {
  func.func @_vit_block_kernel(%arg0: i32, %arg1: memref<1x8x32xf32, #tpu.memory_space<vmem>>, %arg2: memref<1x32xf32, #tpu.memory_space<vmem>>, %arg3: memref<1x32xf32, #tpu.memory_space<vmem>>, %arg4: memref<32x96xbf16, #tpu.memory_space<vmem>>, %arg5: memref<32x32xbf16, #tpu.memory_space<vmem>>, %arg6: memref<1x32xf32, #tpu.memory_space<vmem>>, %arg7: memref<1x32xf32, #tpu.memory_space<vmem>>, %arg8: memref<1x32xf32, #tpu.memory_space<vmem>>, %arg9: memref<32x128xbf16, #tpu.memory_space<vmem>>, %arg10: memref<1x128xf32, #tpu.memory_space<vmem>>, %arg11: memref<128x32xbf16, #tpu.memory_space<vmem>>, %arg12: memref<1x32xf32, #tpu.memory_space<vmem>>, %arg13: memref<1x8x32xf32, #tpu.memory_space<vmem>>, %arg14: memref<8x32xf32, #tpu.memory_space<vmem>>) attributes {dimension_semantics = [#tpu.dimension_semantics<parallel>], iteration_bounds = array<i64: 2>, scalar_prefetch = 0 : i64, scratch_operands = 1 : i64, tpu.core_type = #tpu.core_type<tc>, window_params = [{transform_indices = @transform_0, window_bounds = array<i64: 1, 8, 32>}, {pipeline_mode = #tpu.pipeline_mode<synchronous>, transform_indices = @transform_1, window_bounds = array<i64: 1, 32>}, {pipeline_mode = #tpu.pipeline_mode<synchronous>, transform_indices = @transform_2, window_bounds = array<i64: 1, 32>}, {pipeline_mode = #tpu.pipeline_mode<synchronous>, transform_indices = @transform_3, window_bounds = array<i64: 32, 96>}, {pipeline_mode = #tpu.pipeline_mode<synchronous>, transform_indices = @transform_4, window_bounds = array<i64: 32, 32>}, {pipeline_mode = #tpu.pipeline_mode<synchronous>, transform_indices = @transform_5, window_bounds = array<i64: 1, 32>}, {pipeline_mode = #tpu.pipeline_mode<synchronous>, transform_indices = @transform_6, window_bounds = array<i64: 1, 32>}, {pipeline_mode = #tpu.pipeline_mode<synchronous>, transform_indices = @transform_7, window_bounds = array<i64: 1, 32>}, {pipeline_mode = #tpu.pipeline_mode<synchronous>, transform_indices = @transform_8, window_bounds = array<i64: 32, 128>}, {pipeline_mode = #tpu.pipeline_mode<synchronous>, transform_indices = @transform_9, window_bounds = array<i64: 1, 128>}, {pipeline_mode = #tpu.pipeline_mode<synchronous>, transform_indices = @transform_10, window_bounds = array<i64: 128, 32>}, {pipeline_mode = #tpu.pipeline_mode<synchronous>, transform_indices = @transform_11, window_bounds = array<i64: 1, 32>}, {transform_indices = @transform_12, window_bounds = array<i64: 1, 8, 32>}]} {
    %c0 = arith.constant 0 : index
    %c0_0 = arith.constant 0 : index
    %c0_1 = arith.constant 0 : index
    %0 = vector.load %arg1[%c0, %c0_0, %c0_1] : memref<1x8x32xf32, #tpu.memory_space<vmem>>, vector<1x8x32xf32>
    %1 = vector.shape_cast %0 : vector<1x8x32xf32> to vector<8x32xf32>
    %c0_2 = arith.constant 0 : index
    %c0_3 = arith.constant 0 : index
    %2 = vector.load %arg2[%c0_2, %c0_3] : memref<1x32xf32, #tpu.memory_space<vmem>>, vector<1x32xf32>
    %c0_4 = arith.constant 0 : index
    %c0_5 = arith.constant 0 : index
    %3 = vector.load %arg3[%c0_4, %c0_5] : memref<1x32xf32, #tpu.memory_space<vmem>>, vector<1x32xf32>
    %cst = arith.constant dense<0.000000e+00> : vector<8xf32>
    %4 = vector.multi_reduction <add>, %1, %cst [1] : vector<8x32xf32> to vector<8xf32>
    %5 = vector.shape_cast %4 : vector<8xf32> to vector<8x1xf32>
    %cst_6 = arith.constant 3.200000e+01 : f32
    %6 = vector.broadcast %cst_6 : f32 to vector<8x1xf32>
    %7 = arith.divf %5, %6 : vector<8x1xf32>
    %8 = vector.broadcast %7 : vector<8x1xf32> to vector<8x32xf32>
    %9 = arith.subf %1, %8 : vector<8x32xf32>
    %10 = arith.mulf %9, %9 : vector<8x32xf32>
    %cst_7 = arith.constant dense<0.000000e+00> : vector<8xf32>
    %11 = vector.multi_reduction <add>, %10, %cst_7 [1] : vector<8x32xf32> to vector<8xf32>
    %12 = vector.shape_cast %11 : vector<8xf32> to vector<8x1xf32>
    %cst_8 = arith.constant 3.200000e+01 : f32
    %13 = vector.broadcast %cst_8 : f32 to vector<8x1xf32>
    %14 = arith.divf %12, %13 : vector<8x1xf32>
    %15 = vector.broadcast %7 : vector<8x1xf32> to vector<8x32xf32>
    %16 = arith.subf %1, %15 : vector<8x32xf32>
    %cst_9 = arith.constant 9.99999974E-6 : f32
    %17 = vector.broadcast %cst_9 : f32 to vector<8x1xf32>
    %18 = arith.addf %14, %17 : vector<8x1xf32>
    %19 = math.rsqrt %18 : vector<8x1xf32>
    %20 = vector.broadcast %19 : vector<8x1xf32> to vector<8x32xf32>
    %21 = arith.mulf %16, %20 : vector<8x32xf32>
    %22 = vector.broadcast %2 : vector<1x32xf32> to vector<8x32xf32>
    %23 = arith.mulf %21, %22 : vector<8x32xf32>
    %24 = vector.broadcast %3 : vector<1x32xf32> to vector<8x32xf32>
    %25 = arith.addf %23, %24 : vector<8x32xf32>
    %26 = arith.truncf %25 : vector<8x32xf32> to vector<8x32xbf16>
    %c0_10 = arith.constant 0 : index
    %c0_11 = arith.constant 0 : index
    %27 = vector.load %arg4[%c0_10, %c0_11] : memref<32x96xbf16, #tpu.memory_space<vmem>>, vector<32x96xbf16>
    %cst_12 = arith.constant dense<0.000000e+00> : vector<8x96xf32>
    %28 = tpu.matmul %26, %27, %cst_12 {dimension_numbers = #tpu.dot_dimension_numbers<[1], [0], [0], [1], [0, 0, 1, 1], [], []>} : vector<8x32xbf16>, vector<32x96xbf16>, vector<8x96xf32> -> vector<8x96xf32>
    %29 = vector.extract_strided_slice %28 {offsets = [0, 0], sizes = [8, 32], strides = [1, 1]} : vector<8x96xf32> to vector<8x32xf32>
    %cst_13 = arith.constant 0.353553385 : f32
    %30 = vector.broadcast %cst_13 : f32 to vector<8x32xf32>
    %31 = arith.mulf %29, %30 : vector<8x32xf32>
    %32 = arith.truncf %31 : vector<8x32xf32> to vector<8x32xbf16>
    %33 = vector.extract_strided_slice %28 {offsets = [0, 32], sizes = [8, 32], strides = [1, 1]} : vector<8x96xf32> to vector<8x32xf32>
    %34 = arith.truncf %33 : vector<8x32xf32> to vector<8x32xbf16>
    %35 = vector.extract_strided_slice %28 {offsets = [0, 64], sizes = [8, 32], strides = [1, 1]} : vector<8x96xf32> to vector<8x32xf32>
    %36 = arith.truncf %35 : vector<8x32xf32> to vector<8x32xbf16>
    %37 = vector.extract_strided_slice %32 {offsets = [0, 0], sizes = [8, 8], strides = [1, 1]} : vector<8x32xbf16> to vector<8x8xbf16>
    %38 = vector.extract_strided_slice %34 {offsets = [0, 0], sizes = [8, 8], strides = [1, 1]} : vector<8x32xbf16> to vector<8x8xbf16>
    %39 = vector.extract_strided_slice %36 {offsets = [0, 0], sizes = [8, 8], strides = [1, 1]} : vector<8x32xbf16> to vector<8x8xbf16>
    %cst_14 = arith.constant dense<0.000000e+00> : vector<8x8xf32>
    %40 = tpu.matmul %37, %38, %cst_14 {dimension_numbers = #tpu.dot_dimension_numbers<[1], [1], [0], [0], [0, 0, 1, 0], [], []>} : vector<8x8xbf16>, vector<8x8xbf16>, vector<8x8xf32> -> vector<8x8xf32>
    %cst_15 = arith.constant dense<0xFF800000> : vector<8xf32>
    %41 = vector.multi_reduction <maximumf>, %40, %cst_15 [1] : vector<8x8xf32> to vector<8xf32>
    %42 = vector.shape_cast %41 : vector<8xf32> to vector<8x1xf32>
    %43 = vector.broadcast %42 : vector<8x1xf32> to vector<8x8xf32>
    %44 = arith.subf %40, %43 : vector<8x8xf32>
    %45 = math.exp %44 : vector<8x8xf32>
    %cst_16 = arith.constant dense<0.000000e+00> : vector<8xf32>
    %46 = vector.multi_reduction <add>, %45, %cst_16 [1] : vector<8x8xf32> to vector<8xf32>
    %47 = vector.shape_cast %46 : vector<8xf32> to vector<8x1xf32>
    %48 = arith.truncf %45 : vector<8x8xf32> to vector<8x8xbf16>
    %cst_17 = arith.constant dense<0.000000e+00> : vector<8x8xf32>
    %49 = tpu.matmul %48, %39, %cst_17 {dimension_numbers = #tpu.dot_dimension_numbers<[1], [0], [0], [1], [0, 0, 1, 1], [], []>} : vector<8x8xbf16>, vector<8x8xbf16>, vector<8x8xf32> -> vector<8x8xf32>
    %50 = tpu.reciprocal %47 {approx = true} : vector<8x1xf32> -> vector<8x1xf32>
    %51 = vector.broadcast %50 : vector<8x1xf32> to vector<8x8xf32>
    %52 = arith.mulf %49, %51 : vector<8x8xf32>
    %c0_18 = arith.constant 0 : index
    %c0_19 = arith.constant 0 : index
    %53 = vector.load %arg14[%c0_18, %c0_19] : memref<8x32xf32, #tpu.memory_space<vmem>>, vector<8x8xf32>
    tpu.vector_store %arg14[%c0_18, %c0_19], %52 {strides = array<i32>} : memref<8x32xf32, #tpu.memory_space<vmem>>, vector<8x8xf32>,
    %54 = vector.extract_strided_slice %32 {offsets = [0, 8], sizes = [8, 8], strides = [1, 1]} : vector<8x32xbf16> to vector<8x8xbf16>
    %55 = vector.extract_strided_slice %34 {offsets = [0, 8], sizes = [8, 8], strides = [1, 1]} : vector<8x32xbf16> to vector<8x8xbf16>
    %56 = vector.extract_strided_slice %36 {offsets = [0, 8], sizes = [8, 8], strides = [1, 1]} : vector<8x32xbf16> to vector<8x8xbf16>
    %cst_20 = arith.constant dense<0.000000e+00> : vector<8x8xf32>
    %57 = tpu.matmul %54, %55, %cst_20 {dimension_numbers = #tpu.dot_dimension_numbers<[1], [1], [0], [0], [0, 0, 1, 0], [], []>} : vector<8x8xbf16>, vector<8x8xbf16>, vector<8x8xf32> -> vector<8x8xf32>
    %cst_21 = arith.constant dense<0xFF800000> : vector<8xf32>
    %58 = vector.multi_reduction <maximumf>, %57, %cst_21 [1] : vector<8x8xf32> to vector<8xf32>
    %59 = vector.shape_cast %58 : vector<8xf32> to vector<8x1xf32>
    %60 = vector.broadcast %59 : vector<8x1xf32> to vector<8x8xf32>
    %61 = arith.subf %57, %60 : vector<8x8xf32>
    %62 = math.exp %61 : vector<8x8xf32>
    %cst_22 = arith.constant dense<0.000000e+00> : vector<8xf32>
    %63 = vector.multi_reduction <add>, %62, %cst_22 [1] : vector<8x8xf32> to vector<8xf32>
    %64 = vector.shape_cast %63 : vector<8xf32> to vector<8x1xf32>
    %65 = arith.truncf %62 : vector<8x8xf32> to vector<8x8xbf16>
    %cst_23 = arith.constant dense<0.000000e+00> : vector<8x8xf32>
    %66 = tpu.matmul %65, %56, %cst_23 {dimension_numbers = #tpu.dot_dimension_numbers<[1], [0], [0], [1], [0, 0, 1, 1], [], []>} : vector<8x8xbf16>, vector<8x8xbf16>, vector<8x8xf32> -> vector<8x8xf32>
    %67 = tpu.reciprocal %64 {approx = true} : vector<8x1xf32> -> vector<8x1xf32>
    %68 = vector.broadcast %67 : vector<8x1xf32> to vector<8x8xf32>
    %69 = arith.mulf %66, %68 : vector<8x8xf32>
    %c0_24 = arith.constant 0 : index
    %c8 = arith.constant 8 : index
    %70 = vector.load %arg14[%c0_24, %c8] : memref<8x32xf32, #tpu.memory_space<vmem>>, vector<8x8xf32>
    tpu.vector_store %arg14[%c0_24, %c8], %69 {strides = array<i32>} : memref<8x32xf32, #tpu.memory_space<vmem>>, vector<8x8xf32>,
    %71 = vector.extract_strided_slice %32 {offsets = [0, 16], sizes = [8, 8], strides = [1, 1]} : vector<8x32xbf16> to vector<8x8xbf16>
    %72 = vector.extract_strided_slice %34 {offsets = [0, 16], sizes = [8, 8], strides = [1, 1]} : vector<8x32xbf16> to vector<8x8xbf16>
    %73 = vector.extract_strided_slice %36 {offsets = [0, 16], sizes = [8, 8], strides = [1, 1]} : vector<8x32xbf16> to vector<8x8xbf16>
    %cst_25 = arith.constant dense<0.000000e+00> : vector<8x8xf32>
    %74 = tpu.matmul %71, %72, %cst_25 {dimension_numbers = #tpu.dot_dimension_numbers<[1], [1], [0], [0], [0, 0, 1, 0], [], []>} : vector<8x8xbf16>, vector<8x8xbf16>, vector<8x8xf32> -> vector<8x8xf32>
    %cst_26 = arith.constant dense<0xFF800000> : vector<8xf32>
    %75 = vector.multi_reduction <maximumf>, %74, %cst_26 [1] : vector<8x8xf32> to vector<8xf32>
    %76 = vector.shape_cast %75 : vector<8xf32> to vector<8x1xf32>
    %77 = vector.broadcast %76 : vector<8x1xf32> to vector<8x8xf32>
    %78 = arith.subf %74, %77 : vector<8x8xf32>
    %79 = math.exp %78 : vector<8x8xf32>
    %cst_27 = arith.constant dense<0.000000e+00> : vector<8xf32>
    %80 = vector.multi_reduction <add>, %79, %cst_27 [1] : vector<8x8xf32> to vector<8xf32>
    %81 = vector.shape_cast %80 : vector<8xf32> to vector<8x1xf32>
    %82 = arith.truncf %79 : vector<8x8xf32> to vector<8x8xbf16>
    %cst_28 = arith.constant dense<0.000000e+00> : vector<8x8xf32>
    %83 = tpu.matmul %82, %73, %cst_28 {dimension_numbers = #tpu.dot_dimension_numbers<[1], [0], [0], [1], [0, 0, 1, 1], [], []>} : vector<8x8xbf16>, vector<8x8xbf16>, vector<8x8xf32> -> vector<8x8xf32>
    %84 = tpu.reciprocal %81 {approx = true} : vector<8x1xf32> -> vector<8x1xf32>
    %85 = vector.broadcast %84 : vector<8x1xf32> to vector<8x8xf32>
    %86 = arith.mulf %83, %85 : vector<8x8xf32>
    %c0_29 = arith.constant 0 : index
    %c16 = arith.constant 16 : index
    %87 = vector.load %arg14[%c0_29, %c16] : memref<8x32xf32, #tpu.memory_space<vmem>>, vector<8x8xf32>
    tpu.vector_store %arg14[%c0_29, %c16], %86 {strides = array<i32>} : memref<8x32xf32, #tpu.memory_space<vmem>>, vector<8x8xf32>,
    %88 = vector.extract_strided_slice %32 {offsets = [0, 24], sizes = [8, 8], strides = [1, 1]} : vector<8x32xbf16> to vector<8x8xbf16>
    %89 = vector.extract_strided_slice %34 {offsets = [0, 24], sizes = [8, 8], strides = [1, 1]} : vector<8x32xbf16> to vector<8x8xbf16>
    %90 = vector.extract_strided_slice %36 {offsets = [0, 24], sizes = [8, 8], strides = [1, 1]} : vector<8x32xbf16> to vector<8x8xbf16>
    %cst_30 = arith.constant dense<0.000000e+00> : vector<8x8xf32>
    %91 = tpu.matmul %88, %89, %cst_30 {dimension_numbers = #tpu.dot_dimension_numbers<[1], [1], [0], [0], [0, 0, 1, 0], [], []>} : vector<8x8xbf16>, vector<8x8xbf16>, vector<8x8xf32> -> vector<8x8xf32>
    %cst_31 = arith.constant dense<0xFF800000> : vector<8xf32>
    %92 = vector.multi_reduction <maximumf>, %91, %cst_31 [1] : vector<8x8xf32> to vector<8xf32>
    %93 = vector.shape_cast %92 : vector<8xf32> to vector<8x1xf32>
    %94 = vector.broadcast %93 : vector<8x1xf32> to vector<8x8xf32>
    %95 = arith.subf %91, %94 : vector<8x8xf32>
    %96 = math.exp %95 : vector<8x8xf32>
    %cst_32 = arith.constant dense<0.000000e+00> : vector<8xf32>
    %97 = vector.multi_reduction <add>, %96, %cst_32 [1] : vector<8x8xf32> to vector<8xf32>
    %98 = vector.shape_cast %97 : vector<8xf32> to vector<8x1xf32>
    %99 = arith.truncf %96 : vector<8x8xf32> to vector<8x8xbf16>
    %cst_33 = arith.constant dense<0.000000e+00> : vector<8x8xf32>
    %100 = tpu.matmul %99, %90, %cst_33 {dimension_numbers = #tpu.dot_dimension_numbers<[1], [0], [0], [1], [0, 0, 1, 1], [], []>} : vector<8x8xbf16>, vector<8x8xbf16>, vector<8x8xf32> -> vector<8x8xf32>
    %101 = tpu.reciprocal %98 {approx = true} : vector<8x1xf32> -> vector<8x1xf32>
    %102 = vector.broadcast %101 : vector<8x1xf32> to vector<8x8xf32>
    %103 = arith.mulf %100, %102 : vector<8x8xf32>
    %c0_34 = arith.constant 0 : index
    %c24 = arith.constant 24 : index
    %104 = vector.load %arg14[%c0_34, %c24] : memref<8x32xf32, #tpu.memory_space<vmem>>, vector<8x8xf32>
    tpu.vector_store %arg14[%c0_34, %c24], %103 {strides = array<i32>} : memref<8x32xf32, #tpu.memory_space<vmem>>, vector<8x8xf32>,
    %c0_35 = arith.constant 0 : index
    %c0_36 = arith.constant 0 : index
    %105 = vector.load %arg14[%c0_35, %c0_36] : memref<8x32xf32, #tpu.memory_space<vmem>>, vector<8x32xf32>
    %106 = arith.truncf %105 : vector<8x32xf32> to vector<8x32xbf16>
    %c0_37 = arith.constant 0 : index
    %c0_38 = arith.constant 0 : index
    %107 = vector.load %arg5[%c0_37, %c0_38] : memref<32x32xbf16, #tpu.memory_space<vmem>>, vector<32x32xbf16>
    %cst_39 = arith.constant dense<0.000000e+00> : vector<8x32xf32>
    %108 = tpu.matmul %106, %107, %cst_39 {dimension_numbers = #tpu.dot_dimension_numbers<[1], [0], [0], [1], [0, 0, 1, 1], [], []>} : vector<8x32xbf16>, vector<32x32xbf16>, vector<8x32xf32> -> vector<8x32xf32>
    %c0_40 = arith.constant 0 : index
    %c0_41 = arith.constant 0 : index
    %109 = vector.load %arg6[%c0_40, %c0_41] : memref<1x32xf32, #tpu.memory_space<vmem>>, vector<1x32xf32>
    %110 = vector.broadcast %109 : vector<1x32xf32> to vector<8x32xf32>
    %111 = arith.addf %108, %110 : vector<8x32xf32>
    %112 = arith.addf %1, %111 : vector<8x32xf32>
    %c0_42 = arith.constant 0 : index
    %c0_43 = arith.constant 0 : index
    %113 = vector.load %arg7[%c0_42, %c0_43] : memref<1x32xf32, #tpu.memory_space<vmem>>, vector<1x32xf32>
    %c0_44 = arith.constant 0 : index
    %c0_45 = arith.constant 0 : index
    %114 = vector.load %arg8[%c0_44, %c0_45] : memref<1x32xf32, #tpu.memory_space<vmem>>, vector<1x32xf32>
    %cst_46 = arith.constant dense<0.000000e+00> : vector<8xf32>
    %115 = vector.multi_reduction <add>, %112, %cst_46 [1] : vector<8x32xf32> to vector<8xf32>
    %116 = vector.shape_cast %115 : vector<8xf32> to vector<8x1xf32>
    %cst_47 = arith.constant 3.200000e+01 : f32
    %117 = vector.broadcast %cst_47 : f32 to vector<8x1xf32>
    %118 = arith.divf %116, %117 : vector<8x1xf32>
    %119 = vector.broadcast %118 : vector<8x1xf32> to vector<8x32xf32>
    %120 = arith.subf %112, %119 : vector<8x32xf32>
    %121 = arith.mulf %120, %120 : vector<8x32xf32>
    %cst_48 = arith.constant dense<0.000000e+00> : vector<8xf32>
    %122 = vector.multi_reduction <add>, %121, %cst_48 [1] : vector<8x32xf32> to vector<8xf32>
    %123 = vector.shape_cast %122 : vector<8xf32> to vector<8x1xf32>
    %cst_49 = arith.constant 3.200000e+01 : f32
    %124 = vector.broadcast %cst_49 : f32 to vector<8x1xf32>
    %125 = arith.divf %123, %124 : vector<8x1xf32>
    %126 = vector.broadcast %118 : vector<8x1xf32> to vector<8x32xf32>
    %127 = arith.subf %112, %126 : vector<8x32xf32>
    %cst_50 = arith.constant 9.99999974E-6 : f32
    %128 = vector.broadcast %cst_50 : f32 to vector<8x1xf32>
    %129 = arith.addf %125, %128 : vector<8x1xf32>
    %130 = math.rsqrt %129 : vector<8x1xf32>
    %131 = vector.broadcast %130 : vector<8x1xf32> to vector<8x32xf32>
    %132 = arith.mulf %127, %131 : vector<8x32xf32>
    %133 = vector.broadcast %113 : vector<1x32xf32> to vector<8x32xf32>
    %134 = arith.mulf %132, %133 : vector<8x32xf32>
    %135 = vector.broadcast %114 : vector<1x32xf32> to vector<8x32xf32>
    %136 = arith.addf %134, %135 : vector<8x32xf32>
    %137 = arith.truncf %136 : vector<8x32xf32> to vector<8x32xbf16>
    %c0_51 = arith.constant 0 : index
    %c0_52 = arith.constant 0 : index
    %138 = vector.load %arg9[%c0_51, %c0_52] : memref<32x128xbf16, #tpu.memory_space<vmem>>, vector<32x128xbf16>
    %cst_53 = arith.constant dense<0.000000e+00> : vector<8x128xf32>
    %139 = tpu.matmul %137, %138, %cst_53 {dimension_numbers = #tpu.dot_dimension_numbers<[1], [0], [0], [1], [0, 0, 1, 1], [], []>} : vector<8x32xbf16>, vector<32x128xbf16>, vector<8x128xf32> -> vector<8x128xf32>
    %c0_54 = arith.constant 0 : index
    %c0_55 = arith.constant 0 : index
    %140 = vector.load %arg10[%c0_54, %c0_55] : memref<1x128xf32, #tpu.memory_space<vmem>>, vector<1x128xf32>
    %141 = vector.broadcast %140 : vector<1x128xf32> to vector<8x128xf32>
    %142 = arith.addf %139, %141 : vector<8x128xf32>
    %143 = arith.mulf %142, %142 : vector<8x128xf32>
    %144 = arith.mulf %142, %143 : vector<8x128xf32>
    %cst_56 = arith.constant 4.471500e-02 : f32
    %145 = vector.broadcast %cst_56 : f32 to vector<8x128xf32>
    %146 = arith.mulf %145, %144 : vector<8x128xf32>
    %147 = arith.addf %142, %146 : vector<8x128xf32>
    %cst_57 = arith.constant 0.797884583 : f32
    %148 = vector.broadcast %cst_57 : f32 to vector<8x128xf32>
    %149 = arith.mulf %148, %147 : vector<8x128xf32>
    %150 = math.tanh %149 : vector<8x128xf32>
    %cst_58 = arith.constant 1.000000e+00 : f32
    %151 = vector.broadcast %cst_58 : f32 to vector<8x128xf32>
    %152 = arith.addf %151, %150 : vector<8x128xf32>
    %cst_59 = arith.constant 5.000000e-01 : f32
    %153 = vector.broadcast %cst_59 : f32 to vector<8x128xf32>
    %154 = arith.mulf %153, %152 : vector<8x128xf32>
    %155 = arith.mulf %142, %154 : vector<8x128xf32>
    %156 = arith.truncf %155 : vector<8x128xf32> to vector<8x128xbf16>
    %c0_60 = arith.constant 0 : index
    %c0_61 = arith.constant 0 : index
    %157 = vector.load %arg11[%c0_60, %c0_61] : memref<128x32xbf16, #tpu.memory_space<vmem>>, vector<128x32xbf16>
    %cst_62 = arith.constant dense<0.000000e+00> : vector<8x32xf32>
    %158 = tpu.matmul %156, %157, %cst_62 {dimension_numbers = #tpu.dot_dimension_numbers<[1], [0], [0], [1], [0, 0, 1, 1], [], []>} : vector<8x128xbf16>, vector<128x32xbf16>, vector<8x32xf32> -> vector<8x32xf32>
    %c0_63 = arith.constant 0 : index
    %c0_64 = arith.constant 0 : index
    %159 = vector.load %arg12[%c0_63, %c0_64] : memref<1x32xf32, #tpu.memory_space<vmem>>, vector<1x32xf32>
    %160 = vector.broadcast %159 : vector<1x32xf32> to vector<8x32xf32>
    %161 = arith.addf %158, %160 : vector<8x32xf32>
    %162 = arith.addf %112, %161 : vector<8x32xf32>
    %c0_65 = arith.constant 0 : index
    %c0_66 = arith.constant 0 : index
    %c0_67 = arith.constant 0 : index
    %163 = vector.load %arg13[%c0_65, %c0_66, %c0_67] : memref<1x8x32xf32, #tpu.memory_space<vmem>>, vector<1x8x32xf32>
    %164 = vector.shape_cast %163 : vector<1x8x32xf32> to vector<8x32xf32>
    %165 = vector.shape_cast %162 : vector<8x32xf32> to vector<1x8x32xf32>
    tpu.vector_store %arg13[%c0_65, %c0_66, %c0_67], %165 {strides = array<i32>} : memref<1x8x32xf32, #tpu.memory_space<vmem>>, vector<1x8x32xf32>,
    return
  }
  func.func @transform_0(%arg0: i32) -> (i32, i32, i32) {
    %c0_i32 = arith.constant 0 : i32
    %c0_i32_0 = arith.constant 0 : i32
    %c0_i32_1 = arith.constant 0 : i32
    return %arg0, %c0_i32, %c0_i32_0 : i32, i32, i32
  }
  func.func @transform_1(%arg0: i32) -> (i32, i32) {
    %c0_i32 = arith.constant 0 : i32
    %c0_i32_0 = arith.constant 0 : i32
    %c0_i32_1 = arith.constant 0 : i32
    return %c0_i32, %c0_i32_0 : i32, i32
  }
  func.func @transform_2(%arg0: i32) -> (i32, i32) {
    %c0_i32 = arith.constant 0 : i32
    %c0_i32_0 = arith.constant 0 : i32
    %c0_i32_1 = arith.constant 0 : i32
    return %c0_i32, %c0_i32_0 : i32, i32
  }
  func.func @transform_3(%arg0: i32) -> (i32, i32) {
    %c0_i32 = arith.constant 0 : i32
    %c0_i32_0 = arith.constant 0 : i32
    %c0_i32_1 = arith.constant 0 : i32
    return %c0_i32, %c0_i32_0 : i32, i32
  }
  func.func @transform_4(%arg0: i32) -> (i32, i32) {
    %c0_i32 = arith.constant 0 : i32
    %c0_i32_0 = arith.constant 0 : i32
    %c0_i32_1 = arith.constant 0 : i32
    return %c0_i32, %c0_i32_0 : i32, i32
  }
  func.func @transform_5(%arg0: i32) -> (i32, i32) {
    %c0_i32 = arith.constant 0 : i32
    %c0_i32_0 = arith.constant 0 : i32
    %c0_i32_1 = arith.constant 0 : i32
    return %c0_i32, %c0_i32_0 : i32, i32
  }
  func.func @transform_6(%arg0: i32) -> (i32, i32) {
    %c0_i32 = arith.constant 0 : i32
    %c0_i32_0 = arith.constant 0 : i32
    %c0_i32_1 = arith.constant 0 : i32
    return %c0_i32, %c0_i32_0 : i32, i32
  }
  func.func @transform_7(%arg0: i32) -> (i32, i32) {
    %c0_i32 = arith.constant 0 : i32
    %c0_i32_0 = arith.constant 0 : i32
    %c0_i32_1 = arith.constant 0 : i32
    return %c0_i32, %c0_i32_0 : i32, i32
  }
  func.func @transform_8(%arg0: i32) -> (i32, i32) {
    %c0_i32 = arith.constant 0 : i32
    %c0_i32_0 = arith.constant 0 : i32
    %c0_i32_1 = arith.constant 0 : i32
    return %c0_i32, %c0_i32_0 : i32, i32
  }
  func.func @transform_9(%arg0: i32) -> (i32, i32) {
    %c0_i32 = arith.constant 0 : i32
    %c0_i32_0 = arith.constant 0 : i32
    %c0_i32_1 = arith.constant 0 : i32
    return %c0_i32, %c0_i32_0 : i32, i32
  }
  func.func @transform_10(%arg0: i32) -> (i32, i32) {
    %c0_i32 = arith.constant 0 : i32
    %c0_i32_0 = arith.constant 0 : i32
    %c0_i32_1 = arith.constant 0 : i32
    return %c0_i32, %c0_i32_0 : i32, i32
  }
  func.func @transform_11(%arg0: i32) -> (i32, i32) {
    %c0_i32 = arith.constant 0 : i32
    %c0_i32_0 = arith.constant 0 : i32
    %c0_i32_1 = arith.constant 0 : i32
    return %c0_i32, %c0_i32_0 : i32, i32
  }
  func.func @transform_12(%arg0: i32) -> (i32, i32, i32) {
    %c0_i32 = arith.constant 0 : i32
    %c0_i32_0 = arith.constant 0 : i32
    %c0_i32_1 = arith.constant 0 : i32
    return %arg0, %c0_i32, %c0_i32_0 : i32, i32, i32
  }
}

module attributes {stable_mosaic.version = 11 : i64} {
  func.func @_vit_block_kernel(%arg0: i32, %arg1: memref<1x8x32xf32, #tpu.memory_space<vmem>>, %arg2: memref<1x32xf32, #tpu.memory_space<vmem>>, %arg3: memref<1x32xf32, #tpu.memory_space<vmem>>, %arg4: memref<32x96xbf16, #tpu.memory_space<vmem>>, %arg5: memref<32x32xbf16, #tpu.memory_space<vmem>>, %arg6: memref<1x32xf32, #tpu.memory_space<vmem>>, %arg7: memref<1x32xf32, #tpu.memory_space<vmem>>, %arg8: memref<1x32xf32, #tpu.memory_space<vmem>>, %arg9: memref<32x128xbf16, #tpu.memory_space<vmem>>, %arg10: memref<1x128xf32, #tpu.memory_space<vmem>>, %arg11: memref<128x32xbf16, #tpu.memory_space<vmem>>, %arg12: memref<1x32xf32, #tpu.memory_space<vmem>>, %arg13: memref<1x8x32xf32, #tpu.memory_space<vmem>>, %arg14: memref<8x32xf32, #tpu.memory_space<vmem>>) attributes {dimension_semantics = [#tpu.dimension_semantics<parallel>], iteration_bounds = array<i64: 2>, scalar_prefetch = 0 : i64, scratch_operands = 1 : i64, tpu.core_type = #tpu.core_type<tc>, window_params = [{transform_indices = @transform_0, window_bounds = array<i64: 1, 8, 32>}, {pipeline_mode = #tpu.pipeline_mode<synchronous>, transform_indices = @transform_1, window_bounds = array<i64: 1, 32>}, {pipeline_mode = #tpu.pipeline_mode<synchronous>, transform_indices = @transform_2, window_bounds = array<i64: 1, 32>}, {pipeline_mode = #tpu.pipeline_mode<synchronous>, transform_indices = @transform_3, window_bounds = array<i64: 32, 96>}, {pipeline_mode = #tpu.pipeline_mode<synchronous>, transform_indices = @transform_4, window_bounds = array<i64: 32, 32>}, {pipeline_mode = #tpu.pipeline_mode<synchronous>, transform_indices = @transform_5, window_bounds = array<i64: 1, 32>}, {pipeline_mode = #tpu.pipeline_mode<synchronous>, transform_indices = @transform_6, window_bounds = array<i64: 1, 32>}, {pipeline_mode = #tpu.pipeline_mode<synchronous>, transform_indices = @transform_7, window_bounds = array<i64: 1, 32>}, {pipeline_mode = #tpu.pipeline_mode<synchronous>, transform_indices = @transform_8, window_bounds = array<i64: 32, 128>}, {pipeline_mode = #tpu.pipeline_mode<synchronous>, transform_indices = @transform_9, window_bounds = array<i64: 1, 128>}, {pipeline_mode = #tpu.pipeline_mode<synchronous>, transform_indices = @transform_10, window_bounds = array<i64: 128, 32>}, {pipeline_mode = #tpu.pipeline_mode<synchronous>, transform_indices = @transform_11, window_bounds = array<i64: 1, 32>}, {transform_indices = @transform_12, window_bounds = array<i64: 1, 8, 32>}]} {
    %c0 = arith.constant 0 : index
    %c0_0 = arith.constant 0 : index
    %c0_1 = arith.constant 0 : index
    %0 = vector.load %arg1[%c0, %c0_0, %c0_1] : memref<1x8x32xf32, #tpu.memory_space<vmem>>, vector<1x8x32xf32>
    %1 = vector.shape_cast %0 : vector<1x8x32xf32> to vector<8x32xf32>
    %c0_2 = arith.constant 0 : index
    %c0_3 = arith.constant 0 : index
    %2 = vector.load %arg2[%c0_2, %c0_3] : memref<1x32xf32, #tpu.memory_space<vmem>>, vector<1x32xf32>
    %c0_4 = arith.constant 0 : index
    %c0_5 = arith.constant 0 : index
    %3 = vector.load %arg3[%c0_4, %c0_5] : memref<1x32xf32, #tpu.memory_space<vmem>>, vector<1x32xf32>
    %cst = arith.constant dense<0.000000e+00> : vector<8xf32>
    %4 = vector.multi_reduction <add>, %1, %cst [1] : vector<8x32xf32> to vector<8xf32>
    %5 = vector.shape_cast %4 : vector<8xf32> to vector<8x1xf32>
    %cst_6 = arith.constant 3.200000e+01 : f32
    %6 = vector.broadcast %cst_6 : f32 to vector<8x1xf32>
    %7 = arith.divf %5, %6 : vector<8x1xf32>
    %8 = vector.broadcast %7 : vector<8x1xf32> to vector<8x32xf32>
    %9 = arith.subf %1, %8 : vector<8x32xf32>
    %10 = arith.mulf %9, %9 : vector<8x32xf32>
    %cst_7 = arith.constant dense<0.000000e+00> : vector<8xf32>
    %11 = vector.multi_reduction <add>, %10, %cst_7 [1] : vector<8x32xf32> to vector<8xf32>
    %12 = vector.shape_cast %11 : vector<8xf32> to vector<8x1xf32>
    %cst_8 = arith.constant 3.200000e+01 : f32
    %13 = vector.broadcast %cst_8 : f32 to vector<8x1xf32>
    %14 = arith.divf %12, %13 : vector<8x1xf32>
    %15 = vector.broadcast %7 : vector<8x1xf32> to vector<8x32xf32>
    %16 = arith.subf %1, %15 : vector<8x32xf32>
    %cst_9 = arith.constant 9.99999974E-6 : f32
    %17 = vector.broadcast %cst_9 : f32 to vector<8x1xf32>
    %18 = arith.addf %14, %17 : vector<8x1xf32>
    %19 = math.rsqrt %18 : vector<8x1xf32>
    %20 = vector.broadcast %19 : vector<8x1xf32> to vector<8x32xf32>
    %21 = arith.mulf %16, %20 : vector<8x32xf32>
    %22 = vector.broadcast %2 : vector<1x32xf32> to vector<8x32xf32>
    %23 = arith.mulf %21, %22 : vector<8x32xf32>
    %24 = vector.broadcast %3 : vector<1x32xf32> to vector<8x32xf32>
    %25 = arith.addf %23, %24 : vector<8x32xf32>
    %26 = arith.truncf %25 : vector<8x32xf32> to vector<8x32xbf16>
    %c0_10 = arith.constant 0 : index
    %c0_11 = arith.constant 0 : index
    %27 = vector.load %arg4[%c0_10, %c0_11] : memref<32x96xbf16, #tpu.memory_space<vmem>>, vector<32x96xbf16>
    %cst_12 = arith.constant dense<0.000000e+00> : vector<8x96xf32>
    %28 = tpu.matmul %26, %27, %cst_12 {dimension_numbers = #tpu.dot_dimension_numbers<[1], [0], [0], [1], [0, 0, 1, 1], [], []>} : vector<8x32xbf16>, vector<32x96xbf16>, vector<8x96xf32> -> vector<8x96xf32>
    %29 = vector.extract_strided_slice %28 {offsets = [0, 0], sizes = [8, 32], strides = [1, 1]} : vector<8x96xf32> to vector<8x32xf32>
    %cst_13 = arith.constant 0.353553385 : f32
    %30 = vector.broadcast %cst_13 : f32 to vector<8x32xf32>
    %31 = arith.mulf %29, %30 : vector<8x32xf32>
    %32 = arith.truncf %31 : vector<8x32xf32> to vector<8x32xbf16>
    %33 = vector.extract_strided_slice %28 {offsets = [0, 32], sizes = [8, 32], strides = [1, 1]} : vector<8x96xf32> to vector<8x32xf32>
    %34 = arith.truncf %33 : vector<8x32xf32> to vector<8x32xbf16>
    %35 = vector.extract_strided_slice %28 {offsets = [0, 64], sizes = [8, 32], strides = [1, 1]} : vector<8x96xf32> to vector<8x32xf32>
    %36 = arith.truncf %35 : vector<8x32xf32> to vector<8x32xbf16>
    %37 = vector.extract_strided_slice %32 {offsets = [0, 0], sizes = [8, 8], strides = [1, 1]} : vector<8x32xbf16> to vector<8x8xbf16>
    %38 = vector.extract_strided_slice %34 {offsets = [0, 0], sizes = [8, 8], strides = [1, 1]} : vector<8x32xbf16> to vector<8x8xbf16>
    %39 = vector.extract_strided_slice %36 {offsets = [0, 0], sizes = [8, 8], strides = [1, 1]} : vector<8x32xbf16> to vector<8x8xbf16>
    %cst_14 = arith.constant dense<0.000000e+00> : vector<8x8xf32>
    %40 = tpu.matmul %37, %38, %cst_14 {dimension_numbers = #tpu.dot_dimension_numbers<[1], [1], [0], [0], [0, 0, 1, 0], [], []>} : vector<8x8xbf16>, vector<8x8xbf16>, vector<8x8xf32> -> vector<8x8xf32>
    %cst_15 = arith.constant dense<0xFF800000> : vector<8xf32>
    %41 = vector.multi_reduction <maximumf>, %40, %cst_15 [1] : vector<8x8xf32> to vector<8xf32>
    %42 = vector.shape_cast %41 : vector<8xf32> to vector<8x1xf32>
    %43 = vector.broadcast %42 : vector<8x1xf32> to vector<8x8xf32>
    %44 = arith.subf %40, %43 : vector<8x8xf32>
    %45 = math.exp %44 : vector<8x8xf32>
    %cst_16 = arith.constant dense<0.000000e+00> : vector<8xf32>
    %46 = vector.multi_reduction <add>, %45, %cst_16 [1] : vector<8x8xf32> to vector<8xf32>
    %47 = vector.shape_cast %46 : vector<8xf32> to vector<8x1xf32>
    %48 = arith.truncf %45 : vector<8x8xf32> to vector<8x8xbf16>
    %cst_17 = arith.constant dense<0.000000e+00> : vector<8x8xf32>
    %49 = tpu.matmul %48, %39, %cst_17 {dimension_numbers = #tpu.dot_dimension_numbers<[1], [0], [0], [1], [0, 0, 1, 1], [], []>} : vector<8x8xbf16>, vector<8x8xbf16>, vector<8x8xf32> -> vector<8x8xf32>
    %50 = tpu.reciprocal %47 {approx = true} : vector<8x1xf32> -> vector<8x1xf32>
    %51 = vector.broadcast %50 : vector<8x1xf32> to vector<8x8xf32>
    %52 = arith.mulf %49, %51 : vector<8x8xf32>
    %c0_18 = arith.constant 0 : index
    %c0_19 = arith.constant 0 : index
    %53 = vector.load %arg14[%c0_18, %c0_19] : memref<8x32xf32, #tpu.memory_space<vmem>>, vector<8x8xf32>
    tpu.vector_store %arg14[%c0_18, %c0_19], %52 {strides = array<i32>} : memref<8x32xf32, #tpu.memory_space<vmem>>, vector<8x8xf32>,
    %54 = vector.extract_strided_slice %32 {offsets = [0, 8], sizes = [8, 8], strides = [1, 1]} : vector<8x32xbf16> to vector<8x8xbf16>
    %55 = vector.extract_strided_slice %34 {offsets = [0, 8], sizes = [8, 8], strides = [1, 1]} : vector<8x32xbf16> to vector<8x8xbf16>
    %56 = vector.extract_strided_slice %36 {offsets = [0, 8], sizes = [8, 8], strides = [1, 1]} : vector<8x32xbf16> to vector<8x8xbf16>
    %cst_20 = arith.constant dense<0.000000e+00> : vector<8x8xf32>
    %57 = tpu.matmul %54, %55, %cst_20 {dimension_numbers = #tpu.dot_dimension_numbers<[1], [1], [0], [0], [0, 0, 1, 0], [], []>} : vector<8x8xbf16>, vector<8x8xbf16>, vector<8x8xf32> -> vector<8x8xf32>
    %cst_21 = arith.constant dense<0xFF800000> : vector<8xf32>
    %58 = vector.multi_reduction <maximumf>, %57, %cst_21 [1] : vector<8x8xf32> to vector<8xf32>
    %59 = vector.shape_cast %58 : vector<8xf32> to vector<8x1xf32>
    %60 = vector.broadcast %59 : vector<8x1xf32> to vector<8x8xf32>
    %61 = arith.subf %57, %60 : vector<8x8xf32>
    %62 = math.exp %61 : vector<8x8xf32>
    %cst_22 = arith.constant dense<0.000000e+00> : vector<8xf32>
    %63 = vector.multi_reduction <add>, %62, %cst_22 [1] : vector<8x8xf32> to vector<8xf32>
    %64 = vector.shape_cast %63 : vector<8xf32> to vector<8x1xf32>
    %65 = arith.truncf %62 : vector<8x8xf32> to vector<8x8xbf16>
    %cst_23 = arith.constant dense<0.000000e+00> : vector<8x8xf32>
    %66 = tpu.matmul %65, %56, %cst_23 {dimension_numbers = #tpu.dot_dimension_numbers<[1], [0], [0], [1], [0, 0, 1, 1], [], []>} : vector<8x8xbf16>, vector<8x8xbf16>, vector<8x8xf32> -> vector<8x8xf32>
    %67 = tpu.reciprocal %64 {approx = true} : vector<8x1xf32> -> vector<8x1xf32>
    %68 = vector.broadcast %67 : vector<8x1xf32> to vector<8x8xf32>
    %69 = arith.mulf %66, %68 : vector<8x8xf32>
    %c0_24 = arith.constant 0 : index
    %c8 = arith.constant 8 : index
    %70 = vector.load %arg14[%c0_24, %c8] : memref<8x32xf32, #tpu.memory_space<vmem>>, vector<8x8xf32>
    tpu.vector_store %arg14[%c0_24, %c8], %69 {strides = array<i32>} : memref<8x32xf32, #tpu.memory_space<vmem>>, vector<8x8xf32>,
    %71 = vector.extract_strided_slice %32 {offsets = [0, 16], sizes = [8, 8], strides = [1, 1]} : vector<8x32xbf16> to vector<8x8xbf16>
    %72 = vector.extract_strided_slice %34 {offsets = [0, 16], sizes = [8, 8], strides = [1, 1]} : vector<8x32xbf16> to vector<8x8xbf16>
    %73 = vector.extract_strided_slice %36 {offsets = [0, 16], sizes = [8, 8], strides = [1, 1]} : vector<8x32xbf16> to vector<8x8xbf16>
    %cst_25 = arith.constant dense<0.000000e+00> : vector<8x8xf32>
    %74 = tpu.matmul %71, %72, %cst_25 {dimension_numbers = #tpu.dot_dimension_numbers<[1], [1], [0], [0], [0, 0, 1, 0], [], []>} : vector<8x8xbf16>, vector<8x8xbf16>, vector<8x8xf32> -> vector<8x8xf32>
    %cst_26 = arith.constant dense<0xFF800000> : vector<8xf32>
    %75 = vector.multi_reduction <maximumf>, %74, %cst_26 [1] : vector<8x8xf32> to vector<8xf32>
    %76 = vector.shape_cast %75 : vector<8xf32> to vector<8x1xf32>
    %77 = vector.broadcast %76 : vector<8x1xf32> to vector<8x8xf32>
    %78 = arith.subf %74, %77 : vector<8x8xf32>
    %79 = math.exp %78 : vector<8x8xf32>
    %cst_27 = arith.constant dense<0.000000e+00> : vector<8xf32>
    %80 = vector.multi_reduction <add>, %79, %cst_27 [1] : vector<8x8xf32> to vector<8xf32>
    %81 = vector.shape_cast %80 : vector<8xf32> to vector<8x1xf32>
    %82 = arith.truncf %79 : vector<8x8xf32> to vector<8x8xbf16>
    %cst_28 = arith.constant dense<0.000000e+00> : vector<8x8xf32>
    %83 = tpu.matmul %82, %73, %cst_28 {dimension_numbers = #tpu.dot_dimension_numbers<[1], [0], [0], [1], [0, 0, 1, 1], [], []>} : vector<8x8xbf16>, vector<8x8xbf16>, vector<8x8xf32> -> vector<8x8xf32>
    %84 = tpu.reciprocal %81 {approx = true} : vector<8x1xf32> -> vector<8x1xf32>
    %85 = vector.broadcast %84 : vector<8x1xf32> to vector<8x8xf32>
    %86 = arith.mulf %83, %85 : vector<8x8xf32>
    %c0_29 = arith.constant 0 : index
    %c16 = arith.constant 16 : index
    %87 = vector.load %arg14[%c0_29, %c16] : memref<8x32xf32, #tpu.memory_space<vmem>>, vector<8x8xf32>
    tpu.vector_store %arg14[%c0_29, %c16], %86 {strides = array<i32>} : memref<8x32xf32, #tpu.memory_space<vmem>>, vector<8x8xf32>,
    %88 = vector.extract_strided_slice %32 {offsets = [0, 24], sizes = [8, 8], strides = [1, 1]} : vector<8x32xbf16> to vector<8x8xbf16>
    %89 = vector.extract_strided_slice %34 {offsets = [0, 24], sizes = [8, 8], strides = [1, 1]} : vector<8x32xbf16> to vector<8x8xbf16>
    %90 = vector.extract_strided_slice %36 {offsets = [0, 24], sizes = [8, 8], strides = [1, 1]} : vector<8x32xbf16> to vector<8x8xbf16>
    %cst_30 = arith.constant dense<0.000000e+00> : vector<8x8xf32>
    %91 = tpu.matmul %88, %89, %cst_30 {dimension_numbers = #tpu.dot_dimension_numbers<[1], [1], [0], [0], [0, 0, 1, 0], [], []>} : vector<8x8xbf16>, vector<8x8xbf16>, vector<8x8xf32> -> vector<8x8xf32>
    %cst_31 = arith.constant dense<0xFF800000> : vector<8xf32>
    %92 = vector.multi_reduction <maximumf>, %91, %cst_31 [1] : vector<8x8xf32> to vector<8xf32>
    %93 = vector.shape_cast %92 : vector<8xf32> to vector<8x1xf32>
    %94 = vector.broadcast %93 : vector<8x1xf32> to vector<8x8xf32>
    %95 = arith.subf %91, %94 : vector<8x8xf32>
    %96 = math.exp %95 : vector<8x8xf32>
    %cst_32 = arith.constant dense<0.000000e+00> : vector<8xf32>
    %97 = vector.multi_reduction <add>, %96, %cst_32 [1] : vector<8x8xf32> to vector<8xf32>
    %98 = vector.shape_cast %97 : vector<8xf32> to vector<8x1xf32>
    %99 = arith.truncf %96 : vector<8x8xf32> to vector<8x8xbf16>
    %cst_33 = arith.constant dense<0.000000e+00> : vector<8x8xf32>
    %100 = tpu.matmul %99, %90, %cst_33 {dimension_numbers = #tpu.dot_dimension_numbers<[1], [0], [0], [1], [0, 0, 1, 1], [], []>} : vector<8x8xbf16>, vector<8x8xbf16>, vector<8x8xf32> -> vector<8x8xf32>
    %101 = tpu.reciprocal %98 {approx = true} : vector<8x1xf32> -> vector<8x1xf32>
    %102 = vector.broadcast %101 : vector<8x1xf32> to vector<8x8xf32>
    %103 = arith.mulf %100, %102 : vector<8x8xf32>
    %c0_34 = arith.constant 0 : index
    %c24 = arith.constant 24 : index
    %104 = vector.load %arg14[%c0_34, %c24] : memref<8x32xf32, #tpu.memory_space<vmem>>, vector<8x8xf32>
    tpu.vector_store %arg14[%c0_34, %c24], %103 {strides = array<i32>} : memref<8x32xf32, #tpu.memory_space<vmem>>, vector<8x8xf32>,
    %c0_35 = arith.constant 0 : index
    %c0_36 = arith.constant 0 : index
    %105 = vector.load %arg14[%c0_35, %c0_36] : memref<8x32xf32, #tpu.memory_space<vmem>>, vector<8x32xf32>
    %106 = arith.truncf %105 : vector<8x32xf32> to vector<8x32xbf16>
    %c0_37 = arith.constant 0 : index
    %c0_38 = arith.constant 0 : index
    %107 = vector.load %arg5[%c0_37, %c0_38] : memref<32x32xbf16, #tpu.memory_space<vmem>>, vector<32x32xbf16>
    %cst_39 = arith.constant dense<0.000000e+00> : vector<8x32xf32>
    %108 = tpu.matmul %106, %107, %cst_39 {dimension_numbers = #tpu.dot_dimension_numbers<[1], [0], [0], [1], [0, 0, 1, 1], [], []>} : vector<8x32xbf16>, vector<32x32xbf16>, vector<8x32xf32> -> vector<8x32xf32>
    %c0_40 = arith.constant 0 : index
    %c0_41 = arith.constant 0 : index
    %109 = vector.load %arg6[%c0_40, %c0_41] : memref<1x32xf32, #tpu.memory_space<vmem>>, vector<1x32xf32>
    %110 = vector.broadcast %109 : vector<1x32xf32> to vector<8x32xf32>
    %111 = arith.addf %108, %110 : vector<8x32xf32>
    %112 = arith.addf %1, %111 : vector<8x32xf32>
    %c0_42 = arith.constant 0 : index
    %c0_43 = arith.constant 0 : index
    %113 = vector.load %arg7[%c0_42, %c0_43] : memref<1x32xf32, #tpu.memory_space<vmem>>, vector<1x32xf32>
    %c0_44 = arith.constant 0 : index
    %c0_45 = arith.constant 0 : index
    %114 = vector.load %arg8[%c0_44, %c0_45] : memref<1x32xf32, #tpu.memory_space<vmem>>, vector<1x32xf32>
    %cst_46 = arith.constant dense<0.000000e+00> : vector<8xf32>
    %115 = vector.multi_reduction <add>, %112, %cst_46 [1] : vector<8x32xf32> to vector<8xf32>
    %116 = vector.shape_cast %115 : vector<8xf32> to vector<8x1xf32>
    %cst_47 = arith.constant 3.200000e+01 : f32
    %117 = vector.broadcast %cst_47 : f32 to vector<8x1xf32>
    %118 = arith.divf %116, %117 : vector<8x1xf32>
    %119 = vector.broadcast %118 : vector<8x1xf32> to vector<8x32xf32>
    %120 = arith.subf %112, %119 : vector<8x32xf32>
    %121 = arith.mulf %120, %120 : vector<8x32xf32>
    %cst_48 = arith.constant dense<0.000000e+00> : vector<8xf32>
    %122 = vector.multi_reduction <add>, %121, %cst_48 [1] : vector<8x32xf32> to vector<8xf32>
    %123 = vector.shape_cast %122 : vector<8xf32> to vector<8x1xf32>
    %cst_49 = arith.constant 3.200000e+01 : f32
    %124 = vector.broadcast %cst_49 : f32 to vector<8x1xf32>
    %125 = arith.divf %123, %124 : vector<8x1xf32>
    %126 = vector.broadcast %118 : vector<8x1xf32> to vector<8x32xf32>
    %127 = arith.subf %112, %126 : vector<8x32xf32>
    %cst_50 = arith.constant 9.99999974E-6 : f32
    %128 = vector.broadcast %cst_50 : f32 to vector<8x1xf32>
    %129 = arith.addf %125, %128 : vector<8x1xf32>
    %130 = math.rsqrt %129 : vector<8x1xf32>
    %131 = vector.broadcast %130 : vector<8x1xf32> to vector<8x32xf32>
    %132 = arith.mulf %127, %131 : vector<8x32xf32>
    %133 = vector.broadcast %113 : vector<1x32xf32> to vector<8x32xf32>
    %134 = arith.mulf %132, %133 : vector<8x32xf32>
    %135 = vector.broadcast %114 : vector<1x32xf32> to vector<8x32xf32>
    %136 = arith.addf %134, %135 : vector<8x32xf32>
    %137 = arith.truncf %136 : vector<8x32xf32> to vector<8x32xbf16>
    %c0_51 = arith.constant 0 : index
    %c0_52 = arith.constant 0 : index
    %138 = vector.load %arg9[%c0_51, %c0_52] : memref<32x128xbf16, #tpu.memory_space<vmem>>, vector<32x128xbf16>
    %cst_53 = arith.constant dense<0.000000e+00> : vector<8x128xf32>
    %139 = tpu.matmul %137, %138, %cst_53 {dimension_numbers = #tpu.dot_dimension_numbers<[1], [0], [0], [1], [0, 0, 1, 1], [], []>} : vector<8x32xbf16>, vector<32x128xbf16>, vector<8x128xf32> -> vector<8x128xf32>
    %c0_54 = arith.constant 0 : index
    %c0_55 = arith.constant 0 : index
    %140 = vector.load %arg10[%c0_54, %c0_55] : memref<1x128xf32, #tpu.memory_space<vmem>>, vector<1x128xf32>
    %141 = vector.broadcast %140 : vector<1x128xf32> to vector<8x128xf32>
    %142 = arith.addf %139, %141 : vector<8x128xf32>
    %143 = arith.mulf %142, %142 : vector<8x128xf32>
    %144 = arith.mulf %142, %143 : vector<8x128xf32>
    %cst_56 = arith.constant 4.471500e-02 : f32
    %145 = vector.broadcast %cst_56 : f32 to vector<8x128xf32>
    %146 = arith.mulf %145, %144 : vector<8x128xf32>
    %147 = arith.addf %142, %146 : vector<8x128xf32>
    %cst_57 = arith.constant 0.797884583 : f32
    %148 = vector.broadcast %cst_57 : f32 to vector<8x128xf32>
    %149 = arith.mulf %148, %147 : vector<8x128xf32>
    %150 = math.tanh %149 : vector<8x128xf32>
    %cst_58 = arith.constant 1.000000e+00 : f32
    %151 = vector.broadcast %cst_58 : f32 to vector<8x128xf32>
    %152 = arith.addf %151, %150 : vector<8x128xf32>
    %cst_59 = arith.constant 5.000000e-01 : f32
    %153 = vector.broadcast %cst_59 : f32 to vector<8x128xf32>
    %154 = arith.mulf %153, %152 : vector<8x128xf32>
    %155 = arith.mulf %142, %154 : vector<8x128xf32>
    %156 = arith.truncf %155 : vector<8x128xf32> to vector<8x128xbf16>
    %c0_60 = arith.constant 0 : index
    %c0_61 = arith.constant 0 : index
    %157 = vector.load %arg11[%c0_60, %c0_61] : memref<128x32xbf16, #tpu.memory_space<vmem>>, vector<128x32xbf16>
    %cst_62 = arith.constant dense<0.000000e+00> : vector<8x32xf32>
    %158 = tpu.matmul %156, %157, %cst_62 {dimension_numbers = #tpu.dot_dimension_numbers<[1], [0], [0], [1], [0, 0, 1, 1], [], []>} : vector<8x128xbf16>, vector<128x32xbf16>, vector<8x32xf32> -> vector<8x32xf32>
    %c0_63 = arith.constant 0 : index
    %c0_64 = arith.constant 0 : index
    %159 = vector.load %arg12[%c0_63, %c0_64] : memref<1x32xf32, #tpu.memory_space<vmem>>, vector<1x32xf32>
    %160 = vector.broadcast %159 : vector<1x32xf32> to vector<8x32xf32>
    %161 = arith.addf %158, %160 : vector<8x32xf32>
    %162 = arith.addf %112, %161 : vector<8x32xf32>
    %c0_65 = arith.constant 0 : index
    %c0_66 = arith.constant 0 : index
    %c0_67 = arith.constant 0 : index
    %163 = vector.load %arg13[%c0_65, %c0_66, %c0_67] : memref<1x8x32xf32, #tpu.memory_space<vmem>>, vector<1x8x32xf32>
    %164 = vector.shape_cast %163 : vector<1x8x32xf32> to vector<8x32xf32>
    %165 = vector.shape_cast %162 : vector<8x32xf32> to vector<1x8x32xf32>
    tpu.vector_store %arg13[%c0_65, %c0_66, %c0_67], %165 {strides = array<i32>} : memref<1x8x32xf32, #tpu.memory_space<vmem>>, vector<1x8x32xf32>,
    return
  }
  func.func @transform_0(%arg0: i32) -> (i32, i32, i32) {
    %c0_i32 = arith.constant 0 : i32
    %c0_i32_0 = arith.constant 0 : i32
    %c0_i32_1 = arith.constant 0 : i32
    return %arg0, %c0_i32, %c0_i32_0 : i32, i32, i32
  }
  func.func @transform_1(%arg0: i32) -> (i32, i32) {
    %c0_i32 = arith.constant 0 : i32
    %c0_i32_0 = arith.constant 0 : i32
    %c0_i32_1 = arith.constant 0 : i32
    return %c0_i32, %c0_i32_0 : i32, i32
  }
  func.func @transform_2(%arg0: i32) -> (i32, i32) {
    %c0_i32 = arith.constant 0 : i32
    %c0_i32_0 = arith.constant 0 : i32
    %c0_i32_1 = arith.constant 0 : i32
    return %c0_i32, %c0_i32_0 : i32, i32
  }
  func.func @transform_3(%arg0: i32) -> (i32, i32) {
    %c0_i32 = arith.constant 0 : i32
    %c0_i32_0 = arith.constant 0 : i32
    %c0_i32_1 = arith.constant 0 : i32
    return %c0_i32, %c0_i32_0 : i32, i32
  }
  func.func @transform_4(%arg0: i32) -> (i32, i32) {
    %c0_i32 = arith.constant 0 : i32
    %c0_i32_0 = arith.constant 0 : i32
    %c0_i32_1 = arith.constant 0 : i32
    return %c0_i32, %c0_i32_0 : i32, i32
  }
  func.func @transform_5(%arg0: i32) -> (i32, i32) {
    %c0_i32 = arith.constant 0 : i32
    %c0_i32_0 = arith.constant 0 : i32
    %c0_i32_1 = arith.constant 0 : i32
    return %c0_i32, %c0_i32_0 : i32, i32
  }
  func.func @transform_6(%arg0: i32) -> (i32, i32) {
    %c0_i32 = arith.constant 0 : i32
    %c0_i32_0 = arith.constant 0 : i32
    %c0_i32_1 = arith.constant 0 : i32
    return %c0_i32, %c0_i32_0 : i32, i32
  }
  func.func @transform_7(%arg0: i32) -> (i32, i32) {
    %c0_i32 = arith.constant 0 : i32
    %c0_i32_0 = arith.constant 0 : i32
    %c0_i32_1 = arith.constant 0 : i32
    return %c0_i32, %c0_i32_0 : i32, i32
  }
  func.func @transform_8(%arg0: i32) -> (i32, i32) {
    %c0_i32 = arith.constant 0 : i32
    %c0_i32_0 = arith.constant 0 : i32
    %c0_i32_1 = arith.constant 0 : i32
    return %c0_i32, %c0_i32_0 : i32, i32
  }
  func.func @transform_9(%arg0: i32) -> (i32, i32) {
    %c0_i32 = arith.constant 0 : i32
    %c0_i32_0 = arith.constant 0 : i32
    %c0_i32_1 = arith.constant 0 : i32
    return %c0_i32, %c0_i32_0 : i32, i32
  }
  func.func @transform_10(%arg0: i32) -> (i32, i32) {
    %c0_i32 = arith.constant 0 : i32
    %c0_i32_0 = arith.constant 0 : i32
    %c0_i32_1 = arith.constant 0 : i32
    return %c0_i32, %c0_i32_0 : i32, i32
  }
  func.func @transform_11(%arg0: i32) -> (i32, i32) {
    %c0_i32 = arith.constant 0 : i32
    %c0_i32_0 = arith.constant 0 : i32
    %c0_i32_1 = arith.constant 0 : i32
    return %c0_i32, %c0_i32_0 : i32, i32
  }
  func.func @transform_12(%arg0: i32) -> (i32, i32, i32) {
    %c0_i32 = arith.constant 0 : i32
    %c0_i32_0 = arith.constant 0 : i32
    %c0_i32_1 = arith.constant 0 : i32
    return %arg0, %c0_i32, %c0_i32_0 : i32, i32, i32
  }
}

</mosaic_0001>

<llo_original>
// kernel: tpu_custom_call.1
$region0: #{tpu_custom_call.1}
  #allocation0 [shape = 'u32[]', space=smem, size = 0x4, offset = 0x4, fixed_abs, tag = 'smem constant byte address 0x4 - core index']
  #allocation1 [shape = 'u32[144,128]{1,0:T(1,128)}', space=vmem, size = 0x12000, scoped, tag = 'internal scratch']
  #allocation2 [shape = 'f32[8,32]{1,0:T(8,128)}', space=vmem, size = 0x1000, scoped, tag = 'scratch operand']
  %s0 = inlined_call_operand.vmem [shape: f32[2,8,32], index: 0, kind: input, shape index: {}]
  %s1 = inlined_call_operand.vmem [shape: f32[1,32], index: 1, kind: input, shape index: {}]
  %s2 = inlined_call_operand.vmem [shape: f32[1,32], index: 2, kind: input, shape index: {}]
  %s3 = inlined_call_operand.vmem [shape: bf16[32,96], index: 3, kind: input, shape index: {}]
  %s4 = inlined_call_operand.vmem [shape: bf16[32,32], index: 4, kind: input, shape index: {}]
  %s5 = inlined_call_operand.vmem [shape: f32[1,32], index: 5, kind: input, shape index: {}]
  %s6 = inlined_call_operand.vmem [shape: f32[1,32], index: 6, kind: input, shape index: {}]
  %s7 = inlined_call_operand.vmem [shape: f32[1,32], index: 7, kind: input, shape index: {}]
  %s8 = inlined_call_operand.vmem [shape: bf16[32,128], index: 8, kind: input, shape index: {}]
  %s9 = inlined_call_operand.vmem [shape: f32[1,128], index: 9, kind: input, shape index: {}]
  %s10 = inlined_call_operand.vmem [shape: bf16[128,32], index: 10, kind: input, shape index: {}]
  %s11 = inlined_call_operand.vmem [shape: f32[1,32], index: 11, kind: input, shape index: {}]
  %s12 = inlined_call_operand.hbm [shape: f32[2,8,32], index: 12, kind: output, shape index: {}]
  %s13 = sld [smem:[#allocation0]]
  $region81: #{tpu_custom_call.1} parent=0
    _
  %s15 = ssub.s32 1, %s13
  %s16 = scalar_select 0, %s15, %s13
  $region1: #{tpu_custom_call.1} parent=0
    #allocation3 [shape = 'u8[8192]{0}', space=vmem, size = 0x2000, scoped, tag = 'output window, operand 0']
    #allocation4 [shape = 's32[2]{0}', space=sflag, size = 0x8, scoped, tag = 'scoped memory for tpu_custom_call.1']
    %17 = vsyncpa [#allocation4], 0
    %s18 = scalar_lea.sflag [#allocation4], 1
    %19 = vsyncpa %s18, 0
    loop: start=0, step=1, limit=4
    $region2: #{tpu_custom_call.1} parent=1 // loop_pre_header
      _
    $region3: #{tpu_custom_call.1} parent=1 // loop_header
      %s21 = sphi 0, %s25
      %p22 = scmp.ge.s32.totalorder %s21, 4
      %s31 = sphi 0, %s33
      %s34 = sphi 0, %s31
      %s35 = sphi 0, %s34
      %s51 = sphi 0, %s35
      %s55 = sphi 0, %s55
      %s57 = sphi 0, %s55
      %s58 = sphi 0, %s57
      %s72 = sphi 0, %s58
      %s76 = sphi 0, %s76
      %s78 = sphi 0, %s76
      %s79 = sphi 0, %s78
      %s93 = sphi 0, %s79
      %s97 = sphi 0, %s97
      %s99 = sphi 0, %s97
      %s100 = sphi 0, %s99
      %s114 = sphi 0, %s100
      %s118 = sphi 0, %s118
      %s120 = sphi 0, %s118
      %s121 = sphi 0, %s120
      %s135 = sphi 0, %s121
      %s139 = sphi 0, %s139
      %s141 = sphi 0, %s139
      %s142 = sphi 0, %s141
      %s156 = sphi 0, %s142
      %s160 = sphi 0, %s160
      %s162 = sphi 0, %s160
      %s163 = sphi 0, %s162
      %s177 = sphi 0, %s163
      %s181 = sphi 0, %s181
      %s183 = sphi 0, %s181
      %s184 = sphi 0, %s183
      %s198 = sphi 0, %s184
      %s202 = sphi 0, %s202
      %s204 = sphi 0, %s202
      %s205 = sphi 0, %s204
      %s219 = sphi 0, %s205
      %s223 = sphi 0, %s223
      %s225 = sphi 0, %s223
      %s226 = sphi 0, %s225
      %s240 = sphi 0, %s226
      %s244 = sphi 0, %s244
      %s246 = sphi 0, %s244
      %s247 = sphi 0, %s246
      %s261 = sphi 0, %s247
      %s265 = sphi 0, %s265
      %s267 = sphi 0, %s265
      %s268 = sphi 0, %s267
      %s282 = sphi 0, %s268
      %s288 = sphi 0, %s290
      %s291 = sphi 0, %s288
      %s292 = sphi 0, %s291
      %s308 = sphi 0, %s292
    $region4: #{tpu_custom_call.1} parent=1 // loop_header_branch
      %24 = sbr.rel (%p22) target = $region8
    $region5: #{tpu_custom_call.1} parent=1 // loop_body
      %s26 = ssub.s32 %s21, 1
      %s27 = ssub.s32 %s21, 2
      %s28 = sadd.s32 %s21, 1
      %s29 = ssub.s32 %s21, %s28
      %p30 = scmp.eq.s32.totalorder %s29, 0
      %s32 = sadd.s32 %s31, 1
      %s33 = scalar_select %p30, %s31, %s32
      %p36 = pneg %p30
      %p37 = scmp.eq.s32.totalorder %s21, 1
      %p38 = por %p36, %p37
      %p39 = scmp.ne.s32.totalorder %s31, %s34
      %p40 = scmp.eq.s32.totalorder %s21, 0
      %p41 = por %p39, %p40
      %p42 = scmp.ne.s32.totalorder %s31, %s34
      %p43 = scmp.eq.s32.totalorder %s26, 1
      %p44 = por %p42, %p43
      %p45 = scmp.ne.s32.totalorder %s34, %s35
      %p46 = scmp.eq.s32.totalorder %s26, 0
      %p47 = por %p45, %p46
      %p48 = scmp.ne.s32.totalorder %s34, %s35
      %p49 = scmp.eq.s32.totalorder %s27, 1
      %p50 = por %p48, %p49
      %p52 = scmp.ne.s32.totalorder %s35, %s51
      %p53 = scmp.eq.s32.totalorder %s27, 0
      %p54 = por %p52, %p53
      %s56 = sadd.s32 %s55, 1
      %p59 = scmp.eq.s32.totalorder %s21, 1
      %p60 = scmp.ne.s32.totalorder %s55, %s57
      %p61 = scmp.eq.s32.totalorder %s21, 0
      %p62 = por %p60, %p61
      %p63 = scmp.ne.s32.totalorder %s55, %s57
      %p64 = scmp.eq.s32.totalorder %s26, 1
      %p65 = por %p63, %p64
      %p66 = scmp.ne.s32.totalorder %s57, %s58
      %p67 = scmp.eq.s32.totalorder %s26, 0
      %p68 = por %p66, %p67
      %p69 = scmp.ne.s32.totalorder %s57, %s58
      %p70 = scmp.eq.s32.totalorder %s27, 1
      %p71 = por %p69, %p70
      %p73 = scmp.ne.s32.totalorder %s58, %s72
      %p74 = scmp.eq.s32.totalorder %s27, 0
      %p75 = por %p73, %p74
      %s77 = sadd.s32 %s76, 1
      %p80 = scmp.eq.s32.totalorder %s21, 1
      %p81 = scmp.ne.s32.totalorder %s76, %s78
      %p82 = scmp.eq.s32.totalorder %s21, 0
      %p83 = por %p81, %p82
      %p84 = scmp.ne.s32.totalorder %s76, %s78
      %p85 = scmp.eq.s32.totalorder %s26, 1
      %p86 = por %p84, %p85
      %p87 = scmp.ne.s32.totalorder %s78, %s79
      %p88 = scmp.eq.s32.totalorder %s26, 0
      %p89 = por %p87, %p88
      %p90 = scmp.ne.s32.totalorder %s78, %s79
      %p91 = scmp.eq.s32.totalorder %s27, 1
      %p92 = por %p90, %p91
      %p94 = scmp.ne.s32.totalorder %s79, %s93
      %p95 = scmp.eq.s32.totalorder %s27, 0
      %p96 = por %p94, %p95
      %s98 = sadd.s32 %s97, 1
      %p101 = scmp.eq.s32.totalorder %s21, 1
      %p102 = scmp.ne.s32.totalorder %s97, %s99
      %p103 = scmp.eq.s32.totalorder %s21, 0
      %p104 = por %p102, %p103
      %p105 = scmp.ne.s32.totalorder %s97, %s99
      %p106 = scmp.eq.s32.totalorder %s26, 1
      %p107 = por %p105, %p106
      %p108 = scmp.ne.s32.totalorder %s99, %s100
      %p109 = scmp.eq.s32.totalorder %s26, 0
      %p110 = por %p108, %p109
      %p111 = scmp.ne.s32.totalorder %s99, %s100
      %p112 = scmp.eq.s32.totalorder %s27, 1
      %p113 = por %p111, %p112
      %p115 = scmp.ne.s32.totalorder %s100, %s114
      %p116 = scmp.eq.s32.totalorder %s27, 0
      %p117 = por %p115, %p116
      %s119 = sadd.s32 %s118, 1
      %p122 = scmp.eq.s32.totalorder %s21, 1
      %p123 = scmp.ne.s32.totalorder %s118, %s120
      %p124 = scmp.eq.s32.totalorder %s21, 0
      %p125 = por %p123, %p124
      %p126 = scmp.ne.s32.totalorder %s118, %s120
      %p127 = scmp.eq.s32.totalorder %s26, 1
      %p128 = por %p126, %p127
      %p129 = scmp.ne.s32.totalorder %s120, %s121
      %p130 = scmp.eq.s32.totalorder %s26, 0
      %p131 = por %p129, %p130
      %p132 = scmp.ne.s32.totalorder %s120, %s121
      %p133 = scmp.eq.s32.totalorder %s27, 1
      %p134 = por %p132, %p133
      %p136 = scmp.ne.s32.totalorder %s121, %s135
      %p137 = scmp.eq.s32.totalorder %s27, 0
      %p138 = por %p136, %p137
      %s140 = sadd.s32 %s139, 1
      %p143 = scmp.eq.s32.totalorder %s21, 1
      %p144 = scmp.ne.s32.totalorder %s139, %s141
      %p145 = scmp.eq.s32.totalorder %s21, 0
      %p146 = por %p144, %p145
      %p147 = scmp.ne.s32.totalorder %s139, %s141
      %p148 = scmp.eq.s32.totalorder %s26, 1
      %p149 = por %p147, %p148
      %p150 = scmp.ne.s32.totalorder %s141, %s142
      %p151 = scmp.eq.s32.totalorder %s26, 0
      %p152 = por %p150, %p151
      %p153 = scmp.ne.s32.totalorder %s141, %s142
      %p154 = scmp.eq.s32.totalorder %s27, 1
      %p155 = por %p153, %p154
      %p157 = scmp.ne.s32.totalorder %s142, %s156
      %p158 = scmp.eq.s32.totalorder %s27, 0
      %p159 = por %p157, %p158
      %s161 = sadd.s32 %s160, 1
      %p164 = scmp.eq.s32.totalorder %s21, 1
      %p165 = scmp.ne.s32.totalorder %s160, %s162
      %p166 = scmp.eq.s32.totalorder %s21, 0
      %p167 = por %p165, %p166
      %p168 = scmp.ne.s32.totalorder %s160, %s162
      %p169 = scmp.eq.s32.totalorder %s26, 1
      %p170 = por %p168, %p169
      %p171 = scmp.ne.s32.totalorder %s162, %s163
      %p172 = scmp.eq.s32.totalorder %s26, 0
      %p173 = por %p171, %p172
      %p174 = scmp.ne.s32.totalorder %s162, %s163
      %p175 = scmp.eq.s32.totalorder %s27, 1
      %p176 = por %p174, %p175
      %p178 = scmp.ne.s32.totalorder %s163, %s177
      %p179 = scmp.eq.s32.totalorder %s27, 0
      %p180 = por %p178, %p179
      %s182 = sadd.s32 %s181, 1
      %p185 = scmp.eq.s32.totalorder %s21, 1
      %p186 = scmp.ne.s32.totalorder %s181, %s183
      %p187 = scmp.eq.s32.totalorder %s21, 0
      %p188 = por %p186, %p187
      %p189 = scmp.ne.s32.totalorder %s181, %s183
      %p190 = scmp.eq.s32.totalorder %s26, 1
      %p191 = por %p189, %p190
      %p192 = scmp.ne.s32.totalorder %s183, %s184
      %p193 = scmp.eq.s32.totalorder %s26, 0
      %p194 = por %p192, %p193
      %p195 = scmp.ne.s32.totalorder %s183, %s184
      %p196 = scmp.eq.s32.totalorder %s27, 1
      %p197 = por %p195, %p196
      %p199 = scmp.ne.s32.totalorder %s184, %s198
      %p200 = scmp.eq.s32.totalorder %s27, 0
      %p201 = por %p199, %p200
      %s203 = sadd.s32 %s202, 1
      %p206 = scmp.eq.s32.totalorder %s21, 1
      %p207 = scmp.ne.s32.totalorder %s202, %s204
      %p208 = scmp.eq.s32.totalorder %s21, 0
      %p209 = por %p207, %p208
      %p210 = scmp.ne.s32.totalorder %s202, %s204
      %p211 = scmp.eq.s32.totalorder %s26, 1
      %p212 = por %p210, %p211
      %p213 = scmp.ne.s32.totalorder %s204, %s205
      %p214 = scmp.eq.s32.totalorder %s26, 0
      %p215 = por %p213, %p214
      %p216 = scmp.ne.s32.totalorder %s204, %s205
      %p217 = scmp.eq.s32.totalorder %s27, 1
      %p218 = por %p216, %p217
      %p220 = scmp.ne.s32.totalorder %s205, %s219
      %p221 = scmp.eq.s32.totalorder %s27, 0
      %p222 = por %p220, %p221
      %s224 = sadd.s32 %s223, 1
      %p227 = scmp.eq.s32.totalorder %s21, 1
      %p228 = scmp.ne.s32.totalorder %s223, %s225
      %p229 = scmp.eq.s32.totalorder %s21, 0
      %p230 = por %p228, %p229
      %p231 = scmp.ne.s32.totalorder %s223, %s225
      %p232 = scmp.eq.s32.totalorder %s26, 1
      %p233 = por %p231, %p232
      %p234 = scmp.ne.s32.totalorder %s225, %s226
      %p235 = scmp.eq.s32.totalorder %s26, 0
      %p236 = por %p234, %p235
      %p237 = scmp.ne.s32.totalorder %s225, %s226
      %p238 = scmp.eq.s32.totalorder %s27, 1
      %p239 = por %p237, %p238
      %p241 = scmp.ne.s32.totalorder %s226, %s240
      %p242 = scmp.eq.s32.totalorder %s27, 0
      %p243 = por %p241, %p242
      %s245 = sadd.s32 %s244, 1
      %p248 = scmp.eq.s32.totalorder %s21, 1
      %p249 = scmp.ne.s32.totalorder %s244, %s246
      %p250 = scmp.eq.s32.totalorder %s21, 0
      %p251 = por %p249, %p250
      %p252 = scmp.ne.s32.totalorder %s244, %s246
      %p253 = scmp.eq.s32.totalorder %s26, 1
      %p254 = por %p252, %p253
      %p255 = scmp.ne.s32.totalorder %s246, %s247
      %p256 = scmp.eq.s32.totalorder %s26, 0
      %p257 = por %p255, %p256
      %p258 = scmp.ne.s32.totalorder %s246, %s247
      %p259 = scmp.eq.s32.totalorder %s27, 1
      %p260 = por %p258, %p259
      %p262 = scmp.ne.s32.totalorder %s247, %s261
      %p263 = scmp.eq.s32.totalorder %s27, 0
      %p264 = por %p262, %p263
      %s266 = sadd.s32 %s265, 1
      %p269 = scmp.eq.s32.totalorder %s21, 1
      %p270 = scmp.ne.s32.totalorder %s265, %s267
      %p271 = scmp.eq.s32.totalorder %s21, 0
      %p272 = por %p270, %p271
      %p273 = scmp.ne.s32.totalorder %s265, %s267
      %p274 = scmp.eq.s32.totalorder %s26, 1
      %p275 = por %p273, %p274
      %p276 = scmp.ne.s32.totalorder %s267, %s268
      %p277 = scmp.eq.s32.totalorder %s26, 0
      %p278 = por %p276, %p277
      %p279 = scmp.ne.s32.totalorder %s267, %s268
      %p280 = scmp.eq.s32.totalorder %s27, 1
      %p281 = por %p279, %p280
      %p283 = scmp.ne.s32.totalorder %s268, %s282
      %p284 = scmp.eq.s32.totalorder %s27, 0
      %p285 = por %p283, %p284
      %s286 = ssub.s32 %s21, %s28
      %p287 = scmp.eq.s32.totalorder %s286, 0
      %s289 = sadd.s32 %s288, 1
      %s290 = scalar_select %p287, %s288, %s289
      %p293 = pneg %p287
      %p294 = scmp.eq.s32.totalorder %s21, 1
      %p295 = por %p293, %p294
      %p296 = scmp.ne.s32.totalorder %s288, %s291
      %p297 = scmp.eq.s32.totalorder %s21, 0
      %p298 = por %p296, %p297
      %p299 = scmp.ne.s32.totalorder %s288, %s291
      %p300 = scmp.eq.s32.totalorder %s26, 1
      %p301 = por %p299, %p300
      %p302 = scmp.ne.s32.totalorder %s291, %s292
      %p303 = scmp.eq.s32.totalorder %s26, 0
      %p304 = por %p302, %p303
      %p305 = scmp.ne.s32.totalorder %s291, %s292
      %p306 = scmp.eq.s32.totalorder %s27, 1
      %p307 = por %p305, %p306
      %p309 = scmp.ne.s32.totalorder %s292, %s308
      %p310 = scmp.eq.s32.totalorder %s27, 0
      %p311 = por %p309, %p310
      %p312 = scmp.le.s32.totalorder 1, %s21
      %p313 = scmp.lt.s32.totalorder %s21, 3
      %p314 = pnand %p312, %p313
      %p315 = pneg %p314
      // Predicated region
      $region9: #{tpu_custom_call.1} parent=5 // pred_check
        _
      $region10: #{tpu_custom_call.1} parent=5 // pred_check_branch
        %317 = sbr.rel (%p314) target = $region12
      $region11: #{tpu_custom_call.1} parent=5 // pred_region
        %s318 = ssub.s32 %s21, 1
        // Predicated region
        $region13: #{tpu_custom_call.1} parent=11 // pred_check
          %p319 = pneg %p68
        $region14: #{tpu_custom_call.1} parent=11 // pred_check_branch
          %321 = sbr.rel (%p319) target = $region16
        $region15: #{tpu_custom_call.1} parent=11 // pred_region
          _
        $region16: #{tpu_custom_call.1} parent=11 // pred_fallthru
          _
        // Predicated region
        $region17: #{tpu_custom_call.1} parent=11 // pred_check
          %p322 = pneg %p89
        $region18: #{tpu_custom_call.1} parent=11 // pred_check_branch
          %324 = sbr.rel (%p322) target = $region20
        $region19: #{tpu_custom_call.1} parent=11 // pred_region
          _
        $region20: #{tpu_custom_call.1} parent=11 // pred_fallthru
          _
        // Predicated region
        $region21: #{tpu_custom_call.1} parent=11 // pred_check
          %p325 = pneg %p110
        $region22: #{tpu_custom_call.1} parent=11 // pred_check_branch
          %327 = sbr.rel (%p325) target = $region24
        $region23: #{tpu_custom_call.1} parent=11 // pred_region
          _
        $region24: #{tpu_custom_call.1} parent=11 // pred_fallthru
          _
        // Predicated region
        $region25: #{tpu_custom_call.1} parent=11 // pred_check
          %p328 = pneg %p131
        $region26: #{tpu_custom_call.1} parent=11 // pred_check_branch
          %330 = sbr.rel (%p328) target = $region28
        $region27: #{tpu_custom_call.1} parent=11 // pred_region
          _
        $region28: #{tpu_custom_call.1} parent=11 // pred_fallthru
          _
        // Predicated region
        $region29: #{tpu_custom_call.1} parent=11 // pred_check
          %p331 = pneg %p152
        $region30: #{tpu_custom_call.1} parent=11 // pred_check_branch
          %333 = sbr.rel (%p331) target = $region32
        $region31: #{tpu_custom_call.1} parent=11 // pred_region
          _
        $region32: #{tpu_custom_call.1} parent=11 // pred_fallthru
          _
        // Predicated region
        $region33: #{tpu_custom_call.1} parent=11 // pred_check
          %p334 = pneg %p173
        $region34: #{tpu_custom_call.1} parent=11 // pred_check_branch
          %336 = sbr.rel (%p334) target = $region36
        $region35: #{tpu_custom_call.1} parent=11 // pred_region
          _
        $region36: #{tpu_custom_call.1} parent=11 // pred_fallthru
          _
        // Predicated region
        $region37: #{tpu_custom_call.1} parent=11 // pred_check
          %p337 = pneg %p194
        $region38: #{tpu_custom_call.1} parent=11 // pred_check_branch
          %339 = sbr.rel (%p337) target = $region40
        $region39: #{tpu_custom_call.1} parent=11 // pred_region
          _
        $region40: #{tpu_custom_call.1} parent=11 // pred_fallthru
          _
        // Predicated region
        $region41: #{tpu_custom_call.1} parent=11 // pred_check
          %p340 = pneg %p215
        $region42: #{tpu_custom_call.1} parent=11 // pred_check_branch
          %342 = sbr.rel (%p340) target = $region44
        $region43: #{tpu_custom_call.1} parent=11 // pred_region
          _
        $region44: #{tpu_custom_call.1} parent=11 // pred_fallthru
          _
        // Predicated region
        $region45: #{tpu_custom_call.1} parent=11 // pred_check
          %p343 = pneg %p236
        $region46: #{tpu_custom_call.1} parent=11 // pred_check_branch
          %345 = sbr.rel (%p343) target = $region48
        $region47: #{tpu_custom_call.1} parent=11 // pred_region
          _
        $region48: #{tpu_custom_call.1} parent=11 // pred_fallthru
          _
        // Predicated region
        $region49: #{tpu_custom_call.1} parent=11 // pred_check
          %p346 = pneg %p257
        $region50: #{tpu_custom_call.1} parent=11 // pred_check_branch
          %348 = sbr.rel (%p346) target = $region52
        $region51: #{tpu_custom_call.1} parent=11 // pred_region
          _
        $region52: #{tpu_custom_call.1} parent=11 // pred_fallthru
          _
        // Predicated region
        $region53: #{tpu_custom_call.1} parent=11 // pred_check
          %p349 = pneg %p278
        $region54: #{tpu_custom_call.1} parent=11 // pred_check_branch
          %351 = sbr.rel (%p349) target = $region56
        $region55: #{tpu_custom_call.1} parent=11 // pred_region
          _
        $region56: #{tpu_custom_call.1} parent=11 // pred_fallthru
          _
      $region12: #{tpu_custom_call.1} parent=5 // pred_fallthru
        _
      %p352 = scmp.lt.s32.totalorder %s21, 2
      // Predicated region
      $region57: #{tpu_custom_call.1} parent=5 // pred_check
        %p353 = pneg %p352
      $region58: #{tpu_custom_call.1} parent=5 // pred_check_branch
        %355 = sbr.rel (%p353) target = $region60
      $region59: #{tpu_custom_call.1} parent=5 // pred_region
        // Predicated region
        $region61: #{tpu_custom_call.1} parent=59 // pred_check
          %p356 = pneg %p41
        $region62: #{tpu_custom_call.1} parent=59 // pred_check_branch
          %358 = sbr.rel (%p356) target = $region64
        $region63: #{tpu_custom_call.1} parent=59 // pred_region
          %p359 = scmp.lt.s32.totalorder %s21, 1
          %s360 = scalar_select %p359, %s21, 1
          %s361 = smul.addr %s360, 8
          %s362 = scalar_lea.vmem %s0, %s361
        $region64: #{tpu_custom_call.1} parent=59 // pred_fallthru
          _
      $region60: #{tpu_custom_call.1} parent=5 // pred_fallthru
        _
      %p363 = scmp.le.s32.totalorder 1, %s21
      %p364 = scmp.lt.s32.totalorder %s21, 3
      %p365 = pnand %p363, %p364
      %p366 = pneg %p365
      // Predicated region
      $region65: #{tpu_custom_call.1} parent=5 // pred_check
        _
      $region66: #{tpu_custom_call.1} parent=5 // pred_check_branch
        %368 = sbr.rel (%p365) target = $region68
      $region67: #{tpu_custom_call.1} parent=5 // pred_region
        %s369 = ssub.s32 %s21, 1
        %p370 = scmp.lt.s32.totalorder %s26, 1
        %s371 = scalar_select %p370, %s26, 1
        %s372 = smul.addr %s371, 8
        %s373 = scalar_lea.vmem %s0, %s372
        %p374 = pneg %p47
        %p375 = pneg %p44
        %p376 = pneg %p68
        %p377 = pneg %p65
        %p378 = pneg %p89
        %p379 = pneg %p86
        %p380 = pneg %p110
        %p381 = pneg %p107
        %p382 = pneg %p131
        %p383 = pneg %p128
        %p384 = pneg %p152
        %p385 = pneg %p149
        %p386 = pneg %p173
        %p387 = pneg %p170
        %p388 = pneg %p194
        %p389 = pneg %p191
        %p390 = pneg %p215
        %p391 = pneg %p212
        %p392 = pneg %p236
        %p393 = pneg %p233
        %p394 = pneg %p257
        %p395 = pneg %p254
        %p396 = pneg %p278
        %p397 = pneg %p275
        %p398 = pneg %p304
        %p399 = pneg %p301
        %s400 = sand.u32 %s291, 1
        %s401 = scalar_lea.sflag [#allocation4], %s400
        %s402 = sand.u32 %s291, 1
        %s403 = smul.addr %s402, 8
        %s404 = scalar_lea.vmem [#allocation3], %s403
        %p405 = scmp.lt.s32.totalorder %s26, 1
        %s406 = scalar_select %p405, %s26, 1
        %s407 = smul.addr %s406, 8
        %s408 = scalar_lea.vmem %s0, %s407
        %v410 = vld [vmem:[%s408] sm:$0xff]
        %v411 = vld [vmem:[%s1] sm:$0x1]
        %v412 = vld [vmem:[%s2] sm:$0x1]
        %vm413 = vcmask 261120
        %v414 = vsel %vm413, %v410, 0.0
        %415 = vadd.xlane.f32.xlu0 %v414
        %v416 = vpop.xlane.xlu0 %415
        %v417 = vrcp.pop 32.0
        %v418 = vmul.f32 %v416, %v417
        %v419 = vsub.f32 %v410, %v418
        %v420 = vmul.f32 %v419, %v419
        %v421 = vsel %vm413, %v420, 0.0
        %422 = vadd.xlane.f32.xlu0 %v421
        %v423 = vpop.xlane.xlu0 %422
        %v424 = vmul.f32 %v423, %v417
        %v425 = vadd.f32 %v424, 1e-05
        %v426 = vrsqrt.pop %v425
        %v427 = vmul.f32 %v419, %v426
        %v429 = vlaneseq
        %v430 = vshrl.u32 %v429, 7
        %v431 = vsub.s32 0, %v430
        %v432 = vrot.slane %v411, %v431
        %v434 = vmul.f32 %v427, %v432
        %v436 = vlaneseq
        %v437 = vshrl.u32 %v436, 7
        %v438 = vsub.s32 0, %v437
        %v439 = vrot.slane %v412, %v438
        %v441 = vadd.f32 %v434, %v439
        %v442 = vpack.c.bf16 %v441, %v441
        %v443 = vld [vmem:[%s3] sm:$0xf]
        %v444 = vld [vmem:[%s3 + $0x4] sm:$0xf]
        %v445 = vld [vmem:[%s3 + $0x8] sm:$0xf]
        %v446 = vld [vmem:[%s3 + $0xc] sm:$0xf]
        %v451 = vunpack.c.l.b16 %v443
        %v452 = vunpack.c.l.b16 %v444
        %v453 = vunpack.c.l.b16 %v445
        %v454 = vunpack.c.l.b16 %v446
        %v455 = vpack.c.b16 %v452, %v451
        %v456 = vpack.c.b16 %v454, %v453
        %v460 = vsel %vm413, %v442, 0
        %462 = vmatprep.subr.bf16.mxu0 0
        %463 = vmatpush1.bf16.msra.mxu0 %v455
        %464 = vmatprep.subr.bf16.mxu0 0
        %465 = vmatpush1.bf16.msra.mxu0 %v456
        %466 = vmatprep.subr.bf16.mxu0 0
        %467 = vmatpush1.bf16.msra.mxu0 0
        %468 = vmatprep.subr.bf16.mxu0 0
        %469 = vmatpush1.bf16.msra.mxu0 0
        %470 = vmatprep.subr.bf16.mxu0 0
        %471 = vmatpush1.bf16.msra.mxu0 0
        %472 = vmatprep.subr.bf16.mxu0 0
        %473 = vmatpush1.bf16.msra.mxu0 0
        %474 = vmatprep.subr.bf16.mxu0 0
        %475 = vmatpush1.bf16.msra.mxu0 0
        %476 = vmatprep.subr.bf16.mxu0 0
        %477 = vmatpush1.bf16.msra.mxu0 0
        %478 = vmatprep.subr.bf16.mxu0 0
        %479 = vmatpush1.bf16.msra.mxu0 0
        %480 = vmatprep.subr.bf16.mxu0 0
        %481 = vmatpush1.bf16.msra.mxu0 0
        %482 = vmatprep.subr.bf16.mxu0 0
        %483 = vmatpush1.bf16.msra.mxu0 0
        %484 = vmatprep.subr.bf16.mxu0 0
        %485 = vmatpush1.bf16.msra.mxu0 0
        %486 = vmatprep.subr.bf16.mxu0 0
        %487 = vmatpush1.bf16.msra.mxu0 0
        %488 = vmatprep.subr.bf16.mxu0 0
        %489 = vmatpush1.bf16.msra.mxu0 0
        %490 = vmatprep.subr.bf16.mxu0 0
        %491 = vmatpush1.bf16.msra.mxu0 0
        %492 = vmatprep.subr.bf16.mxu0 0
        %493 = vmatpush1.bf16.msra.mxu0 0
        %494 = vmatprep.mubr.bf16.mxu0 0
        %495 = vmatmul.mubr.bf16.gmra.mrb[0].mxu0 %v460
        %v496 = vpop.f32.mrb[0].mxu0
        %v497 = vadd.f32 0.0, %v496
        %v498 = vpop.f32.mrb[0].mxu0
        %v499 = vpop.f32.mrb[0].mxu0
        %v500 = vpop.f32.mrb[0].mxu0
        %501 = vdwg.mxu0
        %v502 = vmul.f32 %v497, 0.35355338
        %v503 = vpack.c.bf16 %v502, %v502
        %v504 = vpack.c.bf16 %v497, %v497
        %506 = vrot.lane.b32.xlu0 %v504, 96
        %v507 = vpop.permute.xlu0 %506
        %vm508 = vcmask 64512
        %v510 = vsel %vm508, %v503, 0
        %v513 = vsel %vm508, %v507, 0
        %515 = vmatprep.subr.bf16.mxu0 0
        %516 = vmatpush1.bf16.xpose.msra.mxu0 %v513
        %517 = vmatprep.subr.bf16.mxu0 0
        %518 = vmatpush1.bf16.xpose.msra.mxu0 0
        %519 = vmatprep.subr.bf16.mxu0 0
        %520 = vmatpush1.bf16.xpose.msra.mxu0 0
        %521 = vmatprep.subr.bf16.mxu0 0
        %522 = vmatpush1.bf16.xpose.msra.mxu0 0
        %523 = vmatprep.subr.bf16.mxu0 0
        %524 = vmatpush1.bf16.xpose.msra.mxu0 0
        %525 = vmatprep.subr.bf16.mxu0 0
        %526 = vmatpush1.bf16.xpose.msra.mxu0 0
        %527 = vmatprep.subr.bf16.mxu0 0
        %528 = vmatpush1.bf16.xpose.msra.mxu0 0
        %529 = vmatprep.subr.bf16.mxu0 0
        %530 = vmatpush1.bf16.xpose.msra.mxu0 0
        %531 = vmatprep.subr.bf16.mxu0 0
        %532 = vmatpush1.bf16.xpose.msra.mxu0 0
        %533 = vmatprep.subr.bf16.mxu0 0
        %534 = vmatpush1.bf16.xpose.msra.mxu0 0
        %535 = vmatprep.subr.bf16.mxu0 0
        %536 = vmatpush1.bf16.xpose.msra.mxu0 0
        %537 = vmatprep.subr.bf16.mxu0 0
        %538 = vmatpush1.bf16.xpose.msra.mxu0 0
        %539 = vmatprep.subr.bf16.mxu0 0
        %540 = vmatpush1.bf16.xpose.msra.mxu0 0
        %541 = vmatprep.subr.bf16.mxu0 0
        %542 = vmatpush1.bf16.xpose.msra.mxu0 0
        %543 = vmatprep.subr.bf16.mxu0 0
        %544 = vmatpush1.bf16.xpose.msra.mxu0 0
        %545 = vmatprep.subr.bf16.mxu0 0
        %546 = vmatpush1.bf16.xpose.msra.mxu0 0
        %547 = vmatprep.mubr.bf16.mxu0 0
        %548 = vmatmul.mubr.bf16.gmra.mrb[0].mxu0 %v510
        %v549 = vpop.f32.mrb[0].mxu0
        %v550 = vadd.f32 0.0, %v549
        %v551 = vpop.f32.mrb[0].mxu0
        %v552 = vpop.f32.mrb[0].mxu0
        %v553 = vpop.f32.mrb[0].mxu0
        %554 = vdwg.mxu0
        %v555 = vsel %vm508, %v550, -inf
        %556 = vmax.xlane.f32.xlu0 %v555
        %v557 = vpop.xlane.xlu0 %556
        %v558 = vsub.f32 %v550, %v557
        %v559 = vmul.f32 %v558, 1.442695
        %v560 = vpow.pop %v559
        %v561 = vsel %vm508, %v560, 0.0
        %562 = vadd.xlane.f32.xlu0 %v561
        %v563 = vpop.xlane.xlu0 %562
        %v564 = vpack.c.bf16 %v560, %v560
        %565 = vrot.lane.b32.xlu0 %v504, 64
        %v566 = vpop.permute.xlu0 %565
        %v568 = vsel %vm508, %v564, 0
        %vm570 = vcmask 1043456
        %v572 = vsel %vm570, %v566, 0
        %574 = vmatprep.subr.bf16.mxu0 0
        %575 = vmatpush1.bf16.msra.mxu0 %v572
        %576 = vmatprep.subr.bf16.mxu0 0
        %577 = vmatpush1.bf16.msra.mxu0 0
        %578 = vmatprep.subr.bf16.mxu0 0
        %579 = vmatpush1.bf16.msra.mxu0 0
        %580 = vmatprep.subr.bf16.mxu0 0
        %581 = vmatpush1.bf16.msra.mxu0 0
        %582 = vmatprep.subr.bf16.mxu0 0
        %583 = vmatpush1.bf16.msra.mxu0 0
        %584 = vmatprep.subr.bf16.mxu0 0
        %585 = vmatpush1.bf16.msra.mxu0 0
        %586 = vmatprep.subr.bf16.mxu0 0
        %587 = vmatpush1.bf16.msra.mxu0 0
        %588 = vmatprep.subr.bf16.mxu0 0
        %589 = vmatpush1.bf16.msra.mxu0 0
        %590 = vmatprep.subr.bf16.mxu0 0
        %591 = vmatpush1.bf16.msra.mxu0 0
        %592 = vmatprep.subr.bf16.mxu0 0
        %593 = vmatpush1.bf16.msra.mxu0 0
        %594 = vmatprep.subr.bf16.mxu0 0
        %595 = vmatpush1.bf16.msra.mxu0 0
        %596 = vmatprep.subr.bf16.mxu0 0
        %597 = vmatpush1.bf16.msra.mxu0 0
        %598 = vmatprep.subr.bf16.mxu0 0
        %599 = vmatpush1.bf16.msra.mxu0 0
        %600 = vmatprep.subr.bf16.mxu0 0
        %601 = vmatpush1.bf16.msra.mxu0 0
        %602 = vmatprep.subr.bf16.mxu0 0
        %603 = vmatpush1.bf16.msra.mxu0 0
        %604 = vmatprep.subr.bf16.mxu0 0
        %605 = vmatpush1.bf16.msra.mxu0 0
        %606 = vmatprep.mubr.bf16.mxu0 0
        %607 = vmatmul.mubr.bf16.gmra.mrb[0].mxu0 %v568
        %v608 = vpop.f32.mrb[0].mxu0
        %v609 = vadd.f32 0.0, %v608
        %v610 = vpop.f32.mrb[0].mxu0
        %v611 = vpop.f32.mrb[0].mxu0
        %v612 = vpop.f32.mrb[0].mxu0
        %613 = vdwg.mxu0
        %v614 = vrcp.pop %v563
        %v615 = vmul.f32 %v609, %v614
        %616 = vst.msk [vmem:[#allocation2] sm:$0xff] %vm508, %v615
        %618 = vrot.lane.b32.xlu0 %v503, 120
        %v619 = vpop.permute.xlu0 %618
        %620 = vrot.lane.b32.xlu0 %v504, 88
        %v621 = vpop.permute.xlu0 %620
        %v623 = vsel %vm508, %v619, 0
        %v626 = vsel %vm508, %v621, 0
        %628 = vmatprep.subr.bf16.mxu0 0
        %629 = vmatpush1.bf16.xpose.msra.mxu0 %v626
        %630 = vmatprep.subr.bf16.mxu0 0
        %631 = vmatpush1.bf16.xpose.msra.mxu0 0
        %632 = vmatprep.subr.bf16.mxu0 0
        %633 = vmatpush1.bf16.xpose.msra.mxu0 0
        %634 = vmatprep.subr.bf16.mxu0 0
        %635 = vmatpush1.bf16.xpose.msra.mxu0 0
        %636 = vmatprep.subr.bf16.mxu0 0
        %637 = vmatpush1.bf16.xpose.msra.mxu0 0
        %638 = vmatprep.subr.bf16.mxu0 0
        %639 = vmatpush1.bf16.xpose.msra.mxu0 0
        %640 = vmatprep.subr.bf16.mxu0 0
        %641 = vmatpush1.bf16.xpose.msra.mxu0 0
        %642 = vmatprep.subr.bf16.mxu0 0
        %643 = vmatpush1.bf16.xpose.msra.mxu0 0
        %644 = vmatprep.subr.bf16.mxu0 0
        %645 = vmatpush1.bf16.xpose.msra.mxu0 0
        %646 = vmatprep.subr.bf16.mxu0 0
        %647 = vmatpush1.bf16.xpose.msra.mxu0 0
        %648 = vmatprep.subr.bf16.mxu0 0
        %649 = vmatpush1.bf16.xpose.msra.mxu0 0
        %650 = vmatprep.subr.bf16.mxu0 0
        %651 = vmatpush1.bf16.xpose.msra.mxu0 0
        %652 = vmatprep.subr.bf16.mxu0 0
        %653 = vmatpush1.bf16.xpose.msra.mxu0 0
        %654 = vmatprep.subr.bf16.mxu0 0
        %655 = vmatpush1.bf16.xpose.msra.mxu0 0
        %656 = vmatprep.subr.bf16.mxu0 0
        %657 = vmatpush1.bf16.xpose.msra.mxu0 0
        %658 = vmatprep.subr.bf16.mxu0 0
        %659 = vmatpush1.bf16.xpose.msra.mxu0 0
        %660 = vmatprep.mubr.bf16.mxu0 0
        %661 = vmatmul.mubr.bf16.gmra.mrb[0].mxu0 %v623
        %v662 = vpop.f32.mrb[0].mxu0
        %v663 = vadd.f32 0.0, %v662
        %v664 = vpop.f32.mrb[0].mxu0
        %v665 = vpop.f32.mrb[0].mxu0
        %v666 = vpop.f32.mrb[0].mxu0
        %667 = vdwg.mxu0
        %v668 = vsel %vm508, %v663, -inf
        %669 = vmax.xlane.f32.xlu0 %v668
        %v670 = vpop.xlane.xlu0 %669
        %v671 = vsub.f32 %v663, %v670
        %v672 = vmul.f32 %v671, 1.442695
        %v673 = vpow.pop %v672
        %v674 = vsel %vm508, %v673, 0.0
        %675 = vadd.xlane.f32.xlu0 %v674
        %v676 = vpop.xlane.xlu0 %675
        %v677 = vpack.c.bf16 %v673, %v673
        %678 = vrot.lane.b32.xlu0 %v504, 56
        %v679 = vpop.permute.xlu0 %678
        %v681 = vsel %vm508, %v677, 0
        %v684 = vsel %vm570, %v679, 0
        %686 = vmatprep.subr.bf16.mxu0 0
        %687 = vmatpush1.bf16.msra.mxu0 %v684
        %688 = vmatprep.subr.bf16.mxu0 0
        %689 = vmatpush1.bf16.msra.mxu0 0
        %690 = vmatprep.subr.bf16.mxu0 0
        %691 = vmatpush1.bf16.msra.mxu0 0
        %692 = vmatprep.subr.bf16.mxu0 0
        %693 = vmatpush1.bf16.msra.mxu0 0
        %694 = vmatprep.subr.bf16.mxu0 0
        %695 = vmatpush1.bf16.msra.mxu0 0
        %696 = vmatprep.subr.bf16.mxu0 0
        %697 = vmatpush1.bf16.msra.mxu0 0
        %698 = vmatprep.subr.bf16.mxu0 0
        %699 = vmatpush1.bf16.msra.mxu0 0
        %700 = vmatprep.subr.bf16.mxu0 0
        %701 = vmatpush1.bf16.msra.mxu0 0
        %702 = vmatprep.subr.bf16.mxu0 0
        %703 = vmatpush1.bf16.msra.mxu0 0
        %704 = vmatprep.subr.bf16.mxu0 0
        %705 = vmatpush1.bf16.msra.mxu0 0
        %706 = vmatprep.subr.bf16.mxu0 0
        %707 = vmatpush1.bf16.msra.mxu0 0
        %708 = vmatprep.subr.bf16.mxu0 0
        %709 = vmatpush1.bf16.msra.mxu0 0
        %710 = vmatprep.subr.bf16.mxu0 0
        %711 = vmatpush1.bf16.msra.mxu0 0
        %712 = vmatprep.subr.bf16.mxu0 0
        %713 = vmatpush1.bf16.msra.mxu0 0
        %714 = vmatprep.subr.bf16.mxu0 0
        %715 = vmatpush1.bf16.msra.mxu0 0
        %716 = vmatprep.subr.bf16.mxu0 0
        %717 = vmatpush1.bf16.msra.mxu0 0
        %718 = vmatprep.mubr.bf16.mxu0 0
        %719 = vmatmul.mubr.bf16.gmra.mrb[0].mxu0 %v681
        %v720 = vpop.f32.mrb[0].mxu0
        %v721 = vadd.f32 0.0, %v720
        %v722 = vpop.f32.mrb[0].mxu0
        %v723 = vpop.f32.mrb[0].mxu0
        %v724 = vpop.f32.mrb[0].mxu0
        %725 = vdwg.mxu0
        %v726 = vrcp.pop %v676
        %v727 = vmul.f32 %v721, %v726
        %729 = vrot.lane.b32.xlu0 %v727, 8
        %v730 = vpop.permute.xlu0 %729
        %vm732 = vcmask 130112
        %733 = vst.msk [vmem:[#allocation2] sm:$0xff] %vm732, %v730
        %734 = vrot.lane.b32.xlu0 %v503, 112
        %v735 = vpop.permute.xlu0 %734
        %736 = vrot.lane.b32.xlu0 %v504, 80
        %v737 = vpop.permute.xlu0 %736
        %v739 = vsel %vm508, %v735, 0
        %v742 = vsel %vm508, %v737, 0
        %744 = vmatprep.subr.bf16.mxu0 0
        %745 = vmatpush1.bf16.xpose.msra.mxu0 %v742
        %746 = vmatprep.subr.bf16.mxu0 0
        %747 = vmatpush1.bf16.xpose.msra.mxu0 0
        %748 = vmatprep.subr.bf16.mxu0 0
        %749 = vmatpush1.bf16.xpose.msra.mxu0 0
        %750 = vmatprep.subr.bf16.mxu0 0
        %751 = vmatpush1.bf16.xpose.msra.mxu0 0
        %752 = vmatprep.subr.bf16.mxu0 0
        %753 = vmatpush1.bf16.xpose.msra.mxu0 0
        %754 = vmatprep.subr.bf16.mxu0 0
        %755 = vmatpush1.bf16.xpose.msra.mxu0 0
        %756 = vmatprep.subr.bf16.mxu0 0
        %757 = vmatpush1.bf16.xpose.msra.mxu0 0
        %758 = vmatprep.subr.bf16.mxu0 0
        %759 = vmatpush1.bf16.xpose.msra.mxu0 0
        %760 = vmatprep.subr.bf16.mxu0 0
        %761 = vmatpush1.bf16.xpose.msra.mxu0 0
        %762 = vmatprep.subr.bf16.mxu0 0
        %763 = vmatpush1.bf16.xpose.msra.mxu0 0
        %764 = vmatprep.subr.bf16.mxu0 0
        %765 = vmatpush1.bf16.xpose.msra.mxu0 0
        %766 = vmatprep.subr.bf16.mxu0 0
        %767 = vmatpush1.bf16.xpose.msra.mxu0 0
        %768 = vmatprep.subr.bf16.mxu0 0
        %769 = vmatpush1.bf16.xpose.msra.mxu0 0
        %770 = vmatprep.subr.bf16.mxu0 0
        %771 = vmatpush1.bf16.xpose.msra.mxu0 0
        %772 = vmatprep.subr.bf16.mxu0 0
        %773 = vmatpush1.bf16.xpose.msra.mxu0 0
        %774 = vmatprep.subr.bf16.mxu0 0
        %775 = vmatpush1.bf16.xpose.msra.mxu0 0
        %776 = vmatprep.mubr.bf16.mxu0 0
        %777 = vmatmul.mubr.bf16.gmra.mrb[0].mxu0 %v739
        %v778 = vpop.f32.mrb[0].mxu0
        %v779 = vadd.f32 0.0, %v778
        %v780 = vpop.f32.mrb[0].mxu0
        %v781 = vpop.f32.mrb[0].mxu0
        %v782 = vpop.f32.mrb[0].mxu0
        %783 = vdwg.mxu0
        %v784 = vsel %vm508, %v779, -inf
        %785 = vmax.xlane.f32.xlu0 %v784
        %v786 = vpop.xlane.xlu0 %785
        %v787 = vsub.f32 %v779, %v786
        %v788 = vmul.f32 %v787, 1.442695
        %v789 = vpow.pop %v788
        %v790 = vsel %vm508, %v789, 0.0
        %791 = vadd.xlane.f32.xlu0 %v790
        %v792 = vpop.xlane.xlu0 %791
        %v793 = vpack.c.bf16 %v789, %v789
        %794 = vrot.lane.b32.xlu0 %v504, 48
        %v795 = vpop.permute.xlu0 %794
        %v797 = vsel %vm508, %v793, 0
        %v800 = vsel %vm570, %v795, 0
        %802 = vmatprep.subr.bf16.mxu0 0
        %803 = vmatpush1.bf16.msra.mxu0 %v800
        %804 = vmatprep.subr.bf16.mxu0 0
        %805 = vmatpush1.bf16.msra.mxu0 0
        %806 = vmatprep.subr.bf16.mxu0 0
        %807 = vmatpush1.bf16.msra.mxu0 0
        %808 = vmatprep.subr.bf16.mxu0 0
        %809 = vmatpush1.bf16.msra.mxu0 0
        %810 = vmatprep.subr.bf16.mxu0 0
        %811 = vmatpush1.bf16.msra.mxu0 0
        %812 = vmatprep.subr.bf16.mxu0 0
        %813 = vmatpush1.bf16.msra.mxu0 0
        %814 = vmatprep.subr.bf16.mxu0 0
        %815 = vmatpush1.bf16.msra.mxu0 0
        %816 = vmatprep.subr.bf16.mxu0 0
        %817 = vmatpush1.bf16.msra.mxu0 0
        %818 = vmatprep.subr.bf16.mxu0 0
        %819 = vmatpush1.bf16.msra.mxu0 0
        %820 = vmatprep.subr.bf16.mxu0 0
        %821 = vmatpush1.bf16.msra.mxu0 0
        %822 = vmatprep.subr.bf16.mxu0 0
        %823 = vmatpush1.bf16.msra.mxu0 0
        %824 = vmatprep.subr.bf16.mxu0 0
        %825 = vmatpush1.bf16.msra.mxu0 0
        %826 = vmatprep.subr.bf16.mxu0 0
        %827 = vmatpush1.bf16.msra.mxu0 0
        %828 = vmatprep.subr.bf16.mxu0 0
        %829 = vmatpush1.bf16.msra.mxu0 0
        %830 = vmatprep.subr.bf16.mxu0 0
        %831 = vmatpush1.bf16.msra.mxu0 0
        %832 = vmatprep.subr.bf16.mxu0 0
        %833 = vmatpush1.bf16.msra.mxu0 0
        %834 = vmatprep.mubr.bf16.mxu0 0
        %835 = vmatmul.mubr.bf16.gmra.mrb[0].mxu0 %v797
        %v836 = vpop.f32.mrb[0].mxu0
        %v837 = vadd.f32 0.0, %v836
        %v838 = vpop.f32.mrb[0].mxu0
        %v839 = vpop.f32.mrb[0].mxu0
        %v840 = vpop.f32.mrb[0].mxu0
        %841 = vdwg.mxu0
        %v842 = vrcp.pop %v792
        %v843 = vmul.f32 %v837, %v842
        %845 = vrot.lane.b32.xlu0 %v843, 16
        %v846 = vpop.permute.xlu0 %845
        %vm848 = vcmask 195712
        %849 = vst.msk [vmem:[#allocation2] sm:$0xff] %vm848, %v846
        %850 = vrot.lane.b32.xlu0 %v503, 104
        %v851 = vpop.permute.xlu0 %850
        %852 = vrot.lane.b32.xlu0 %v504, 72
        %v853 = vpop.permute.xlu0 %852
        %v855 = vsel %vm508, %v851, 0
        %v858 = vsel %vm508, %v853, 0
        %860 = vmatprep.subr.bf16.mxu0 0
        %861 = vmatpush1.bf16.xpose.msra.mxu0 %v858
        %862 = vmatprep.subr.bf16.mxu0 0
        %863 = vmatpush1.bf16.xpose.msra.mxu0 0
        %864 = vmatprep.subr.bf16.mxu0 0
        %865 = vmatpush1.bf16.xpose.msra.mxu0 0
        %866 = vmatprep.subr.bf16.mxu0 0
        %867 = vmatpush1.bf16.xpose.msra.mxu0 0
        %868 = vmatprep.subr.bf16.mxu0 0
        %869 = vmatpush1.bf16.xpose.msra.mxu0 0
        %870 = vmatprep.subr.bf16.mxu0 0
        %871 = vmatpush1.bf16.xpose.msra.mxu0 0
        %872 = vmatprep.subr.bf16.mxu0 0
        %873 = vmatpush1.bf16.xpose.msra.mxu0 0
        %874 = vmatprep.subr.bf16.mxu0 0
        %875 = vmatpush1.bf16.xpose.msra.mxu0 0
        %876 = vmatprep.subr.bf16.mxu0 0
        %877 = vmatpush1.bf16.xpose.msra.mxu0 0
        %878 = vmatprep.subr.bf16.mxu0 0
        %879 = vmatpush1.bf16.xpose.msra.mxu0 0
        %880 = vmatprep.subr.bf16.mxu0 0
        %881 = vmatpush1.bf16.xpose.msra.mxu0 0
        %882 = vmatprep.subr.bf16.mxu0 0
        %883 = vmatpush1.bf16.xpose.msra.mxu0 0
        %884 = vmatprep.subr.bf16.mxu0 0
        %885 = vmatpush1.bf16.xpose.msra.mxu0 0
        %886 = vmatprep.subr.bf16.mxu0 0
        %887 = vmatpush1.bf16.xpose.msra.mxu0 0
        %888 = vmatprep.subr.bf16.mxu0 0
        %889 = vmatpush1.bf16.xpose.msra.mxu0 0
        %890 = vmatprep.subr.bf16.mxu0 0
        %891 = vmatpush1.bf16.xpose.msra.mxu0 0
        %892 = vmatprep.mubr.bf16.mxu0 0
        %893 = vmatmul.mubr.bf16.gmra.mrb[0].mxu0 %v855
        %v894 = vpop.f32.mrb[0].mxu0
        %v895 = vadd.f32 0.0, %v894
        %v896 = vpop.f32.mrb[0].mxu0
        %v897 = vpop.f32.mrb[0].mxu0
        %v898 = vpop.f32.mrb[0].mxu0
        %899 = vdwg.mxu0
        %v900 = vsel %vm508, %v895, -inf
        %901 = vmax.xlane.f32.xlu0 %v900
        %v902 = vpop.xlane.xlu0 %901
        %v903 = vsub.f32 %v895, %v902
        %v904 = vmul.f32 %v903, 1.442695
        %v905 = vpow.pop %v904
        %v906 = vsel %vm508, %v905, 0.0
        %907 = vadd.xlane.f32.xlu0 %v906
        %v908 = vpop.xlane.xlu0 %907
        %v909 = vpack.c.bf16 %v905, %v905
        %910 = vrot.lane.b32.xlu0 %v504, 40
        %v911 = vpop.permute.xlu0 %910
        %v913 = vsel %vm508, %v909, 0
        %v916 = vsel %vm570, %v911, 0
        %918 = vmatprep.subr.bf16.mxu0 0
        %919 = vmatpush1.bf16.msra.mxu0 %v916
        %920 = vmatprep.subr.bf16.mxu0 0
        %921 = vmatpush1.bf16.msra.mxu0 0
        %922 = vmatprep.subr.bf16.mxu0 0
        %923 = vmatpush1.bf16.msra.mxu0 0
        %924 = vmatprep.subr.bf16.mxu0 0
        %925 = vmatpush1.bf16.msra.mxu0 0
        %926 = vmatprep.subr.bf16.mxu0 0
        %927 = vmatpush1.bf16.msra.mxu0 0
        %928 = vmatprep.subr.bf16.mxu0 0
        %929 = vmatpush1.bf16.msra.mxu0 0
        %930 = vmatprep.subr.bf16.mxu0 0
        %931 = vmatpush1.bf16.msra.mxu0 0
        %932 = vmatprep.subr.bf16.mxu0 0
        %933 = vmatpush1.bf16.msra.mxu0 0
        %934 = vmatprep.subr.bf16.mxu0 0
        %935 = vmatpush1.bf16.msra.mxu0 0
        %936 = vmatprep.subr.bf16.mxu0 0
        %937 = vmatpush1.bf16.msra.mxu0 0
        %938 = vmatprep.subr.bf16.mxu0 0
        %939 = vmatpush1.bf16.msra.mxu0 0
        %940 = vmatprep.subr.bf16.mxu0 0
        %941 = vmatpush1.bf16.msra.mxu0 0
        %942 = vmatprep.subr.bf16.mxu0 0
        %943 = vmatpush1.bf16.msra.mxu0 0
        %944 = vmatprep.subr.bf16.mxu0 0
        %945 = vmatpush1.bf16.msra.mxu0 0
        %946 = vmatprep.subr.bf16.mxu0 0
        %947 = vmatpush1.bf16.msra.mxu0 0
        %948 = vmatprep.subr.bf16.mxu0 0
        %949 = vmatpush1.bf16.msra.mxu0 0
        %950 = vmatprep.mubr.bf16.mxu0 0
        %951 = vmatmul.mubr.bf16.gmra.mrb[0].mxu0 %v913
        %v952 = vpop.f32.mrb[0].mxu0
        %v953 = vadd.f32 0.0, %v952
        %v954 = vpop.f32.mrb[0].mxu0
        %v955 = vpop.f32.mrb[0].mxu0
        %v956 = vpop.f32.mrb[0].mxu0
        %957 = vdwg.mxu0
        %v958 = vrcp.pop %v908
        %v959 = vmul.f32 %v953, %v958
        %961 = vrot.lane.b32.xlu0 %v959, 24
        %v962 = vpop.permute.xlu0 %961
        %vm964 = vcmask 261312
        %965 = vst.msk [vmem:[#allocation2] sm:$0xff] %vm964, %v962
        %v966 = vld [vmem:[#allocation2] sm:$0xff]
        %v967 = vpack.c.bf16 %v966, %v966
        %v968 = vld [vmem:[%s4] sm:$0xf]
        %v969 = vld [vmem:[%s4 + $0x4] sm:$0xf]
        %v970 = vld [vmem:[%s4 + $0x8] sm:$0xf]
        %v971 = vld [vmem:[%s4 + $0xc] sm:$0xf]
        %v972 = vld [vmem:[%s5] sm:$0x1]
        %v974 = vlaneseq
        %v975 = vshrl.u32 %v974, 7
        %v976 = vsub.s32 0, %v975
        %v977 = vrot.slane %v972, %v976
        %v983 = vunpack.c.l.b16 %v968
        %v984 = vunpack.c.l.b16 %v969
        %v985 = vunpack.c.l.b16 %v970
        %v986 = vunpack.c.l.b16 %v971
        %v987 = vpack.c.b16 %v984, %v983
        %v988 = vpack.c.b16 %v986, %v985
        %v992 = vsel %vm413, %v967, 0
        %994 = vmatprep.subr.bf16.mxu0 0
        %995 = vmatpush1.bf16.msra.mxu0 %v987
        %996 = vmatprep.subr.bf16.mxu0 0
        %997 = vmatpush1.bf16.msra.mxu0 %v988
        %998 = vmatprep.subr.bf16.mxu0 0
        %999 = vmatpush1.bf16.msra.mxu0 0
        %1000 = vmatprep.subr.bf16.mxu0 0
        %1001 = vmatpush1.bf16.msra.mxu0 0
        %1002 = vmatprep.subr.bf16.mxu0 0
        %1003 = vmatpush1.bf16.msra.mxu0 0
        %1004 = vmatprep.subr.bf16.mxu0 0
        %1005 = vmatpush1.bf16.msra.mxu0 0
        %1006 = vmatprep.subr.bf16.mxu0 0
        %1007 = vmatpush1.bf16.msra.mxu0 0
        %1008 = vmatprep.subr.bf16.mxu0 0
        %1009 = vmatpush1.bf16.msra.mxu0 0
        %1010 = vmatprep.subr.bf16.mxu0 0
        %1011 = vmatpush1.bf16.msra.mxu0 0
        %1012 = vmatprep.subr.bf16.mxu0 0
        %1013 = vmatpush1.bf16.msra.mxu0 0
        %1014 = vmatprep.subr.bf16.mxu0 0
        %1015 = vmatpush1.bf16.msra.mxu0 0
        %1016 = vmatprep.subr.bf16.mxu0 0
        %1017 = vmatpush1.bf16.msra.mxu0 0
        %1018 = vmatprep.subr.bf16.mxu0 0
        %1019 = vmatpush1.bf16.msra.mxu0 0
        %1020 = vmatprep.subr.bf16.mxu0 0
        %1021 = vmatpush1.bf16.msra.mxu0 0
        %1022 = vmatprep.subr.bf16.mxu0 0
        %1023 = vmatpush1.bf16.msra.mxu0 0
        %1024 = vmatprep.subr.bf16.mxu0 0
        %1025 = vmatpush1.bf16.msra.mxu0 0
        %1026 = vmatprep.mubr.bf16.mxu0 0
        %1027 = vmatmul.mubr.bf16.gmra.mrb[0].mxu0 %v992
        %v1028 = vpop.f32.mrb[0].mxu0
        %v1029 = vadd.f32 %v977, %v1028
        %v1030 = vpop.f32.mrb[0].mxu0
        %v1031 = vpop.f32.mrb[0].mxu0
        %v1032 = vpop.f32.mrb[0].mxu0
        %1033 = vdwg.mxu0
        %v1034 = vadd.f32 %v410, %v1029
        %v1035 = vld [vmem:[%s6] sm:$0x1]
        %v1036 = vld [vmem:[%s7] sm:$0x1]
        %v1037 = vsel %vm413, %v1034, 0.0
        %1038 = vadd.xlane.f32.xlu0 %v1037
        %v1039 = vpop.xlane.xlu0 %1038
        %v1040 = vmul.f32 %v1039, %v417
        %v1041 = vsub.f32 %v1034, %v1040
        %v1042 = vmul.f32 %v1041, %v1041
        %v1043 = vsel %vm413, %v1042, 0.0
        %1044 = vadd.xlane.f32.xlu0 %v1043
        %v1045 = vpop.xlane.xlu0 %1044
        %v1046 = vmul.f32 %v1045, %v417
        %v1047 = vadd.f32 %v1046, 1e-05
        %v1048 = vrsqrt.pop %v1047
        %v1049 = vmul.f32 %v1041, %v1048
        %v1051 = vlaneseq
        %v1052 = vshrl.u32 %v1051, 7
        %v1053 = vsub.s32 0, %v1052
        %v1054 = vrot.slane %v1035, %v1053
        %v1056 = vmul.f32 %v1049, %v1054
        %v1058 = vlaneseq
        %v1059 = vshrl.u32 %v1058, 7
        %v1060 = vsub.s32 0, %v1059
        %v1061 = vrot.slane %v1036, %v1060
        %v1063 = vadd.f32 %v1056, %v1061
        %v1064 = vpack.c.bf16 %v1063, %v1063
        %v1065 = vld [vmem:[%s8] sm:$0xf]
        %v1066 = vld [vmem:[%s8 + $0x4] sm:$0xf]
        %v1067 = vld [vmem:[%s8 + $0x8] sm:$0xf]
        %v1068 = vld [vmem:[%s8 + $0xc] sm:$0xf]
        %v1069 = vld [vmem:[%s9] sm:$0x1]
        %v1071 = vlaneseq
        %v1072 = vshrl.u32 %v1071, 7
        %v1073 = vsub.s32 0, %v1072
        %v1074 = vrot.slane %v1069, %v1073
        %v1080 = vunpack.c.l.b16 %v1065
        %v1081 = vunpack.c.l.b16 %v1066
        %v1082 = vunpack.c.l.b16 %v1067
        %v1083 = vunpack.c.l.b16 %v1068
        %v1084 = vpack.c.b16 %v1081, %v1080
        %v1085 = vpack.c.b16 %v1083, %v1082
        %v1089 = vsel %vm413, %v1064, 0
        %1091 = vmatprep.subr.bf16.mxu0 0
        %1092 = vmatpush1.bf16.msra.mxu0 %v1084
        %1093 = vmatprep.subr.bf16.mxu0 0
        %1094 = vmatpush1.bf16.msra.mxu0 %v1085
        %1095 = vmatprep.subr.bf16.mxu0 0
        %1096 = vmatpush1.bf16.msra.mxu0 0
        %1097 = vmatprep.subr.bf16.mxu0 0
        %1098 = vmatpush1.bf16.msra.mxu0 0
        %1099 = vmatprep.subr.bf16.mxu0 0
        %1100 = vmatpush1.bf16.msra.mxu0 0
        %1101 = vmatprep.subr.bf16.mxu0 0
        %1102 = vmatpush1.bf16.msra.mxu0 0
        %1103 = vmatprep.subr.bf16.mxu0 0
        %1104 = vmatpush1.bf16.msra.mxu0 0
        %1105 = vmatprep.subr.bf16.mxu0 0
        %1106 = vmatpush1.bf16.msra.mxu0 0
        %1107 = vmatprep.subr.bf16.mxu0 0
        %1108 = vmatpush1.bf16.msra.mxu0 0
        %1109 = vmatprep.subr.bf16.mxu0 0
        %1110 = vmatpush1.bf16.msra.mxu0 0
        %1111 = vmatprep.subr.bf16.mxu0 0
        %1112 = vmatpush1.bf16.msra.mxu0 0
        %1113 = vmatprep.subr.bf16.mxu0 0
        %1114 = vmatpush1.bf16.msra.mxu0 0
        %1115 = vmatprep.subr.bf16.mxu0 0
        %1116 = vmatpush1.bf16.msra.mxu0 0
        %1117 = vmatprep.subr.bf16.mxu0 0
        %1118 = vmatpush1.bf16.msra.mxu0 0
        %1119 = vmatprep.subr.bf16.mxu0 0
        %1120 = vmatpush1.bf16.msra.mxu0 0
        %1121 = vmatprep.subr.bf16.mxu0 0
        %1122 = vmatpush1.bf16.msra.mxu0 0
        %1123 = vmatprep.mubr.bf16.mxu0 0
        %1124 = vmatmul.mubr.bf16.gmra.mrb[0].mxu0 %v1089
        %v1125 = vpop.f32.mrb[0].mxu0
        %v1126 = vadd.f32 %v1074, %v1125
        %v1127 = vpop.f32.mrb[0].mxu0
        %v1128 = vpop.f32.mrb[0].mxu0
        %v1129 = vpop.f32.mrb[0].mxu0
        %1130 = vdwg.mxu0
        %v1131 = vmul.f32 %v1126, %v1126
        %v1132 = vmul.f32 %v1126, %v1131
        %v1133 = vmul.f32 %v1132, 0.044715
        %v1134 = vadd.f32 %v1126, %v1133
        %v1135 = vmul.f32 %v1134, 0.7978846
        %v1136 = vtanh.pop %v1135
        %v1137 = vadd.f32 %v1136, 1.0
        %v1138 = vmul.f32 %v1137, 0.5
        %v1139 = vmul.f32 %v1126, %v1138
        %v1140 = vpack.c.bf16 %v1139, %v1139
        %v1141 = vld [vmem:[%s10] sm:$0xf]
        %v1142 = vld [vmem:[%s10 + $0x4] sm:$0xf]
        %v1143 = vld [vmem:[%s10 + $0x8] sm:$0xf]
        %v1144 = vld [vmem:[%s10 + $0xc] sm:$0xf]
        %v1145 = vld [vmem:[%s10 + $0x10] sm:$0xf]
        %v1146 = vld [vmem:[%s10 + $0x14] sm:$0xf]
        %v1147 = vld [vmem:[%s10 + $0x18] sm:$0xf]
        %v1148 = vld [vmem:[%s10 + $0x1c] sm:$0xf]
        %v1149 = vld [vmem:[%s10 + $0x20] sm:$0xf]
        %v1150 = vld [vmem:[%s10 + $0x24] sm:$0xf]
        %v1151 = vld [vmem:[%s10 + $0x28] sm:$0xf]
        %v1152 = vld [vmem:[%s10 + $0x2c] sm:$0xf]
        %v1153 = vld [vmem:[%s10 + $0x30] sm:$0xf]
        %v1154 = vld [vmem:[%s10 + $0x34] sm:$0xf]
        %v1155 = vld [vmem:[%s10 + $0x38] sm:$0xf]
        %v1156 = vld [vmem:[%s10 + $0x3c] sm:$0xf]
        %v1157 = vld [vmem:[%s11] sm:$0x1]
        %v1159 = vlaneseq
        %v1160 = vshrl.u32 %v1159, 7
        %v1161 = vsub.s32 0, %v1160
        %v1162 = vrot.slane %v1157, %v1161
        %v1180 = vunpack.c.l.b16 %v1141
        %v1181 = vunpack.c.l.b16 %v1142
        %v1182 = vunpack.c.l.b16 %v1143
        %v1183 = vunpack.c.l.b16 %v1144
        %v1184 = vunpack.c.l.b16 %v1145
        %v1185 = vunpack.c.l.b16 %v1146
        %v1186 = vunpack.c.l.b16 %v1147
        %v1187 = vunpack.c.l.b16 %v1148
        %v1188 = vunpack.c.l.b16 %v1149
        %v1189 = vunpack.c.l.b16 %v1150
        %v1190 = vunpack.c.l.b16 %v1151
        %v1191 = vunpack.c.l.b16 %v1152
        %v1192 = vunpack.c.l.b16 %v1153
        %v1193 = vunpack.c.l.b16 %v1154
        %v1194 = vunpack.c.l.b16 %v1155
        %v1195 = vunpack.c.l.b16 %v1156
        %v1196 = vpack.c.b16 %v1181, %v1180
        %v1197 = vpack.c.b16 %v1183, %v1182
        %v1198 = vpack.c.b16 %v1185, %v1184
        %v1199 = vpack.c.b16 %v1187, %v1186
        %v1200 = vpack.c.b16 %v1189, %v1188
        %v1201 = vpack.c.b16 %v1191, %v1190
        %v1202 = vpack.c.b16 %v1193, %v1192
        %v1203 = vpack.c.b16 %v1195, %v1194
        %1212 = vmatprep.subr.bf16.mxu0 0
        %1213 = vmatpush1.bf16.msra.mxu0 %v1196
        %1214 = vmatprep.subr.bf16.mxu0 0
        %1215 = vmatpush1.bf16.msra.mxu0 %v1197
        %1216 = vmatprep.subr.bf16.mxu0 0
        %1217 = vmatpush1.bf16.msra.mxu0 %v1198
        %1218 = vmatprep.subr.bf16.mxu0 0
        %1219 = vmatpush1.bf16.msra.mxu0 %v1199
        %1220 = vmatprep.subr.bf16.mxu0 0
        %1221 = vmatpush1.bf16.msra.mxu0 %v1200
        %1222 = vmatprep.subr.bf16.mxu0 0
        %1223 = vmatpush1.bf16.msra.mxu0 %v1201
        %1224 = vmatprep.subr.bf16.mxu0 0
        %1225 = vmatpush1.bf16.msra.mxu0 %v1202
        %1226 = vmatprep.subr.bf16.mxu0 0
        %1227 = vmatpush1.bf16.msra.mxu0 %v1203
        %1228 = vmatprep.subr.bf16.mxu0 0
        %1229 = vmatpush1.bf16.msra.mxu0 0
        %1230 = vmatprep.subr.bf16.mxu0 0
        %1231 = vmatpush1.bf16.msra.mxu0 0
        %1232 = vmatprep.subr.bf16.mxu0 0
        %1233 = vmatpush1.bf16.msra.mxu0 0
        %1234 = vmatprep.subr.bf16.mxu0 0
        %1235 = vmatpush1.bf16.msra.mxu0 0
        %1236 = vmatprep.subr.bf16.mxu0 0
        %1237 = vmatpush1.bf16.msra.mxu0 0
        %1238 = vmatprep.subr.bf16.mxu0 0
        %1239 = vmatpush1.bf16.msra.mxu0 0
        %1240 = vmatprep.subr.bf16.mxu0 0
        %1241 = vmatpush1.bf16.msra.mxu0 0
        %1242 = vmatprep.subr.bf16.mxu0 0
        %1243 = vmatpush1.bf16.msra.mxu0 0
        %1244 = vmatprep.mubr.bf16.mxu0 0
        %1245 = vmatmul.mubr.bf16.gmra.mrb[0].mxu0 %v1140
        %v1246 = vpop.f32.mrb[0].mxu0
        %v1247 = vadd.f32 %v1162, %v1246
        %v1248 = vpop.f32.mrb[0].mxu0
        %v1249 = vpop.f32.mrb[0].mxu0
        %v1250 = vpop.f32.mrb[0].mxu0
        %1251 = vdwg.mxu0
        %v1252 = vadd.f32 %v1034, %v1247
        %1253 = vst.msk [vmem:[%s404] sm:$0xff] %vm413, %v1252
        %s1254 = sand.u32 %s291, 1
        %s1255 = scalar_lea.sflag [#allocation4], %s1254
        %s1256 = sand.u32 %s291, 1
        %s1257 = smul.addr %s1256, 8
        %s1258 = scalar_lea.vmem [#allocation3], %s1257
        // Predicated region
        $region69: #{tpu_custom_call.1} parent=67 // pred_check
          %p1259 = pneg %p301
        $region70: #{tpu_custom_call.1} parent=67 // pred_check_branch
          %1261 = sbr.rel (%p1259) target = $region72
        $region71: #{tpu_custom_call.1} parent=67 // pred_region
          %s1263 = ssub.s32 128, 128
          %1264 = vsyncadd %s1255, %s1263
          %s1265 = smul.addr %s26, 128
          %s1266 = scalar_lea.hbm %s12, %s1265
          %s1268 = sshll.u32 %s1258, 4
          %s1269 = int_to_ptr.vmem [resolvable:$true] %s1268
          %1271 = dma.vmem_to_hbm [thread:$0]  %s1269, 128, %s1266, %s1255
        $region72: #{tpu_custom_call.1} parent=67 // pred_fallthru
          _
      $region68: #{tpu_custom_call.1} parent=5 // pred_fallthru
        _
      %p1272 = scmp.le.s32.totalorder 2, %s21
      // Predicated region
      $region73: #{tpu_custom_call.1} parent=5 // pred_check
        %p1273 = pneg %p1272
      $region74: #{tpu_custom_call.1} parent=5 // pred_check_branch
        %1275 = sbr.rel (%p1273) target = $region76
      $region75: #{tpu_custom_call.1} parent=5 // pred_region
        %s1276 = ssub.s32 %s21, 2
        // Predicated region
        $region77: #{tpu_custom_call.1} parent=75 // pred_check
          %p1277 = pneg %p307
        $region78: #{tpu_custom_call.1} parent=75 // pred_check_branch
          %1279 = sbr.rel (%p1277) target = $region80
        $region79: #{tpu_custom_call.1} parent=75 // pred_region
          %s1280 = sand.u32 %s292, 1
          %s1281 = scalar_lea.sflag [#allocation4], %s1280
          %s1282 = sand.u32 %s292, 1
          %s1283 = smul.addr %s1282, 8
          %s1284 = scalar_lea.vmem [#allocation3], %s1283
          %1285 = dma.done %s1281, 128
        $region80: #{tpu_custom_call.1} parent=75 // pred_fallthru
          _
      $region76: #{tpu_custom_call.1} parent=5 // pred_fallthru
        _
    $region6: #{tpu_custom_call.1} parent=1 // loop_footer
      %s25 = sadd.s32 1, %s21
    $region7: #{tpu_custom_call.1} parent=1 // loop_footer_branch
      %20 = sbr.rel target = $region3
    $region8: #{tpu_custom_call.1} parent=1 // loop_exit
      _
    %1286 = vsyncpa [#allocation4], 1
    %s1287 = scalar_lea.sflag [#allocation4], 1
    %1288 = vsyncpa %s1287, 1

// kernel: tpu_custom_call.1
$region0: #{tpu_custom_call.1}
  #allocation0 [shape = 'u32[]', space=smem, size = 0x4, offset = 0x4, fixed_abs, tag = 'smem constant byte address 0x4 - core index']
  #allocation1 [shape = 'u32[144,128]{1,0:T(1,128)}', space=vmem, size = 0x12000, scoped, tag = 'internal scratch']
  #allocation2 [shape = 'f32[8,32]{1,0:T(8,128)}', space=vmem, size = 0x1000, scoped, tag = 'scratch operand']
  %s0 = inlined_call_operand.vmem [shape: f32[2,8,32], index: 0, kind: input, shape index: {}]
  %s1 = inlined_call_operand.vmem [shape: f32[1,32], index: 1, kind: input, shape index: {}]
  %s2 = inlined_call_operand.vmem [shape: f32[1,32], index: 2, kind: input, shape index: {}]
  %s3 = inlined_call_operand.vmem [shape: bf16[32,96], index: 3, kind: input, shape index: {}]
  %s4 = inlined_call_operand.vmem [shape: bf16[32,32], index: 4, kind: input, shape index: {}]
  %s5 = inlined_call_operand.vmem [shape: f32[1,32], index: 5, kind: input, shape index: {}]
  %s6 = inlined_call_operand.vmem [shape: f32[1,32], index: 6, kind: input, shape index: {}]
  %s7 = inlined_call_operand.vmem [shape: f32[1,32], index: 7, kind: input, shape index: {}]
  %s8 = inlined_call_operand.vmem [shape: bf16[32,128], index: 8, kind: input, shape index: {}]
  %s9 = inlined_call_operand.vmem [shape: f32[1,128], index: 9, kind: input, shape index: {}]
  %s10 = inlined_call_operand.vmem [shape: bf16[128,32], index: 10, kind: input, shape index: {}]
  %s11 = inlined_call_operand.vmem [shape: f32[1,32], index: 11, kind: input, shape index: {}]
  %s12 = inlined_call_operand.hbm [shape: f32[2,8,32], index: 12, kind: output, shape index: {}]
  %s13 = sld [smem:[#allocation0]]
  $region81: #{tpu_custom_call.1} parent=0
    _
  %s15 = ssub.s32 1, %s13
  %s16 = scalar_select 0, %s15, %s13
  $region1: #{tpu_custom_call.1} parent=0
    #allocation3 [shape = 'u8[8192]{0}', space=vmem, size = 0x2000, scoped, tag = 'output window, operand 0']
    #allocation4 [shape = 's32[2]{0}', space=sflag, size = 0x8, scoped, tag = 'scoped memory for tpu_custom_call.1']
    %17 = vsyncpa [#allocation4], 0
    %s18 = scalar_lea.sflag [#allocation4], 1
    %19 = vsyncpa %s18, 0
    loop: start=0, step=1, limit=4
    $region2: #{tpu_custom_call.1} parent=1 // loop_pre_header
      _
    $region3: #{tpu_custom_call.1} parent=1 // loop_header
      %s21 = sphi 0, %s25
      %p22 = scmp.ge.s32.totalorder %s21, 4
      %s31 = sphi 0, %s33
      %s34 = sphi 0, %s31
      %s35 = sphi 0, %s34
      %s51 = sphi 0, %s35
      %s55 = sphi 0, %s55
      %s57 = sphi 0, %s55
      %s58 = sphi 0, %s57
      %s72 = sphi 0, %s58
      %s76 = sphi 0, %s76
      %s78 = sphi 0, %s76
      %s79 = sphi 0, %s78
      %s93 = sphi 0, %s79
      %s97 = sphi 0, %s97
      %s99 = sphi 0, %s97
      %s100 = sphi 0, %s99
      %s114 = sphi 0, %s100
      %s118 = sphi 0, %s118
      %s120 = sphi 0, %s118
      %s121 = sphi 0, %s120
      %s135 = sphi 0, %s121
      %s139 = sphi 0, %s139
      %s141 = sphi 0, %s139
      %s142 = sphi 0, %s141
      %s156 = sphi 0, %s142
      %s160 = sphi 0, %s160
      %s162 = sphi 0, %s160
      %s163 = sphi 0, %s162
      %s177 = sphi 0, %s163
      %s181 = sphi 0, %s181
      %s183 = sphi 0, %s181
      %s184 = sphi 0, %s183
      %s198 = sphi 0, %s184
      %s202 = sphi 0, %s202
      %s204 = sphi 0, %s202
      %s205 = sphi 0, %s204
      %s219 = sphi 0, %s205
      %s223 = sphi 0, %s223
      %s225 = sphi 0, %s223
      %s226 = sphi 0, %s225
      %s240 = sphi 0, %s226
      %s244 = sphi 0, %s244
      %s246 = sphi 0, %s244
      %s247 = sphi 0, %s246
      %s261 = sphi 0, %s247
      %s265 = sphi 0, %s265
      %s267 = sphi 0, %s265
      %s268 = sphi 0, %s267
      %s282 = sphi 0, %s268
      %s288 = sphi 0, %s290
      %s291 = sphi 0, %s288
      %s292 = sphi 0, %s291
      %s308 = sphi 0, %s292
    $region4: #{tpu_custom_call.1} parent=1 // loop_header_branch
      %24 = sbr.rel (%p22) target = $region8
    $region5: #{tpu_custom_call.1} parent=1 // loop_body
      %s26 = ssub.s32 %s21, 1
      %s27 = ssub.s32 %s21, 2
      %s28 = sadd.s32 %s21, 1
      %s29 = ssub.s32 %s21, %s28
      %p30 = scmp.eq.s32.totalorder %s29, 0
      %s32 = sadd.s32 %s31, 1
      %s33 = scalar_select %p30, %s31, %s32
      %p36 = pneg %p30
      %p37 = scmp.eq.s32.totalorder %s21, 1
      %p38 = por %p36, %p37
      %p39 = scmp.ne.s32.totalorder %s31, %s34
      %p40 = scmp.eq.s32.totalorder %s21, 0
      %p41 = por %p39, %p40
      %p42 = scmp.ne.s32.totalorder %s31, %s34
      %p43 = scmp.eq.s32.totalorder %s26, 1
      %p44 = por %p42, %p43
      %p45 = scmp.ne.s32.totalorder %s34, %s35
      %p46 = scmp.eq.s32.totalorder %s26, 0
      %p47 = por %p45, %p46
      %p48 = scmp.ne.s32.totalorder %s34, %s35
      %p49 = scmp.eq.s32.totalorder %s27, 1
      %p50 = por %p48, %p49
      %p52 = scmp.ne.s32.totalorder %s35, %s51
      %p53 = scmp.eq.s32.totalorder %s27, 0
      %p54 = por %p52, %p53
      %s56 = sadd.s32 %s55, 1
      %p59 = scmp.eq.s32.totalorder %s21, 1
      %p60 = scmp.ne.s32.totalorder %s55, %s57
      %p61 = scmp.eq.s32.totalorder %s21, 0
      %p62 = por %p60, %p61
      %p63 = scmp.ne.s32.totalorder %s55, %s57
      %p64 = scmp.eq.s32.totalorder %s26, 1
      %p65 = por %p63, %p64
      %p66 = scmp.ne.s32.totalorder %s57, %s58
      %p67 = scmp.eq.s32.totalorder %s26, 0
      %p68 = por %p66, %p67
      %p69 = scmp.ne.s32.totalorder %s57, %s58
      %p70 = scmp.eq.s32.totalorder %s27, 1
      %p71 = por %p69, %p70
      %p73 = scmp.ne.s32.totalorder %s58, %s72
      %p74 = scmp.eq.s32.totalorder %s27, 0
      %p75 = por %p73, %p74
      %s77 = sadd.s32 %s76, 1
      %p80 = scmp.eq.s32.totalorder %s21, 1
      %p81 = scmp.ne.s32.totalorder %s76, %s78
      %p82 = scmp.eq.s32.totalorder %s21, 0
      %p83 = por %p81, %p82
      %p84 = scmp.ne.s32.totalorder %s76, %s78
      %p85 = scmp.eq.s32.totalorder %s26, 1
      %p86 = por %p84, %p85
      %p87 = scmp.ne.s32.totalorder %s78, %s79
      %p88 = scmp.eq.s32.totalorder %s26, 0
      %p89 = por %p87, %p88
      %p90 = scmp.ne.s32.totalorder %s78, %s79
      %p91 = scmp.eq.s32.totalorder %s27, 1
      %p92 = por %p90, %p91
      %p94 = scmp.ne.s32.totalorder %s79, %s93
      %p95 = scmp.eq.s32.totalorder %s27, 0
      %p96 = por %p94, %p95
      %s98 = sadd.s32 %s97, 1
      %p101 = scmp.eq.s32.totalorder %s21, 1
      %p102 = scmp.ne.s32.totalorder %s97, %s99
      %p103 = scmp.eq.s32.totalorder %s21, 0
      %p104 = por %p102, %p103
      %p105 = scmp.ne.s32.totalorder %s97, %s99
      %p106 = scmp.eq.s32.totalorder %s26, 1
      %p107 = por %p105, %p106
      %p108 = scmp.ne.s32.totalorder %s99, %s100
      %p109 = scmp.eq.s32.totalorder %s26, 0
      %p110 = por %p108, %p109
      %p111 = scmp.ne.s32.totalorder %s99, %s100
      %p112 = scmp.eq.s32.totalorder %s27, 1
      %p113 = por %p111, %p112
      %p115 = scmp.ne.s32.totalorder %s100, %s114
      %p116 = scmp.eq.s32.totalorder %s27, 0
      %p117 = por %p115, %p116
      %s119 = sadd.s32 %s118, 1
      %p122 = scmp.eq.s32.totalorder %s21, 1
      %p123 = scmp.ne.s32.totalorder %s118, %s120
      %p124 = scmp.eq.s32.totalorder %s21, 0
      %p125 = por %p123, %p124
      %p126 = scmp.ne.s32.totalorder %s118, %s120
      %p127 = scmp.eq.s32.totalorder %s26, 1
      %p128 = por %p126, %p127
      %p129 = scmp.ne.s32.totalorder %s120, %s121
      %p130 = scmp.eq.s32.totalorder %s26, 0
      %p131 = por %p129, %p130
      %p132 = scmp.ne.s32.totalorder %s120, %s121
      %p133 = scmp.eq.s32.totalorder %s27, 1
      %p134 = por %p132, %p133
      %p136 = scmp.ne.s32.totalorder %s121, %s135
      %p137 = scmp.eq.s32.totalorder %s27, 0
      %p138 = por %p136, %p137
      %s140 = sadd.s32 %s139, 1
      %p143 = scmp.eq.s32.totalorder %s21, 1
      %p144 = scmp.ne.s32.totalorder %s139, %s141
      %p145 = scmp.eq.s32.totalorder %s21, 0
      %p146 = por %p144, %p145
      %p147 = scmp.ne.s32.totalorder %s139, %s141
      %p148 = scmp.eq.s32.totalorder %s26, 1
      %p149 = por %p147, %p148
      %p150 = scmp.ne.s32.totalorder %s141, %s142
      %p151 = scmp.eq.s32.totalorder %s26, 0
      %p152 = por %p150, %p151
      %p153 = scmp.ne.s32.totalorder %s141, %s142
      %p154 = scmp.eq.s32.totalorder %s27, 1
      %p155 = por %p153, %p154
      %p157 = scmp.ne.s32.totalorder %s142, %s156
      %p158 = scmp.eq.s32.totalorder %s27, 0
      %p159 = por %p157, %p158
      %s161 = sadd.s32 %s160, 1
      %p164 = scmp.eq.s32.totalorder %s21, 1
      %p165 = scmp.ne.s32.totalorder %s160, %s162
      %p166 = scmp.eq.s32.totalorder %s21, 0
      %p167 = por %p165, %p166
      %p168 = scmp.ne.s32.totalorder %s160, %s162
      %p169 = scmp.eq.s32.totalorder %s26, 1
      %p170 = por %p168, %p169
      %p171 = scmp.ne.s32.totalorder %s162, %s163
      %p172 = scmp.eq.s32.totalorder %s26, 0
      %p173 = por %p171, %p172
      %p174 = scmp.ne.s32.totalorder %s162, %s163
      %p175 = scmp.eq.s32.totalorder %s27, 1
      %p176 = por %p174, %p175
      %p178 = scmp.ne.s32.totalorder %s163, %s177
      %p179 = scmp.eq.s32.totalorder %s27, 0
      %p180 = por %p178, %p179
      %s182 = sadd.s32 %s181, 1
      %p185 = scmp.eq.s32.totalorder %s21, 1
      %p186 = scmp.ne.s32.totalorder %s181, %s183
      %p187 = scmp.eq.s32.totalorder %s21, 0
      %p188 = por %p186, %p187
      %p189 = scmp.ne.s32.totalorder %s181, %s183
      %p190 = scmp.eq.s32.totalorder %s26, 1
      %p191 = por %p189, %p190
      %p192 = scmp.ne.s32.totalorder %s183, %s184
      %p193 = scmp.eq.s32.totalorder %s26, 0
      %p194 = por %p192, %p193
      %p195 = scmp.ne.s32.totalorder %s183, %s184
      %p196 = scmp.eq.s32.totalorder %s27, 1
      %p197 = por %p195, %p196
      %p199 = scmp.ne.s32.totalorder %s184, %s198
      %p200 = scmp.eq.s32.totalorder %s27, 0
      %p201 = por %p199, %p200
      %s203 = sadd.s32 %s202, 1
      %p206 = scmp.eq.s32.totalorder %s21, 1
      %p207 = scmp.ne.s32.totalorder %s202, %s204
      %p208 = scmp.eq.s32.totalorder %s21, 0
      %p209 = por %p207, %p208
      %p210 = scmp.ne.s32.totalorder %s202, %s204
      %p211 = scmp.eq.s32.totalorder %s26, 1
      %p212 = por %p210, %p211
      %p213 = scmp.ne.s32.totalorder %s204, %s205
      %p214 = scmp.eq.s32.totalorder %s26, 0
      %p215 = por %p213, %p214
      %p216 = scmp.ne.s32.totalorder %s204, %s205
      %p217 = scmp.eq.s32.totalorder %s27, 1
      %p218 = por %p216, %p217
      %p220 = scmp.ne.s32.totalorder %s205, %s219
      %p221 = scmp.eq.s32.totalorder %s27, 0
      %p222 = por %p220, %p221
      %s224 = sadd.s32 %s223, 1
      %p227 = scmp.eq.s32.totalorder %s21, 1
      %p228 = scmp.ne.s32.totalorder %s223, %s225
      %p229 = scmp.eq.s32.totalorder %s21, 0
      %p230 = por %p228, %p229
      %p231 = scmp.ne.s32.totalorder %s223, %s225
      %p232 = scmp.eq.s32.totalorder %s26, 1
      %p233 = por %p231, %p232
      %p234 = scmp.ne.s32.totalorder %s225, %s226
      %p235 = scmp.eq.s32.totalorder %s26, 0
      %p236 = por %p234, %p235
      %p237 = scmp.ne.s32.totalorder %s225, %s226
      %p238 = scmp.eq.s32.totalorder %s27, 1
      %p239 = por %p237, %p238
      %p241 = scmp.ne.s32.totalorder %s226, %s240
      %p242 = scmp.eq.s32.totalorder %s27, 0
      %p243 = por %p241, %p242
      %s245 = sadd.s32 %s244, 1
      %p248 = scmp.eq.s32.totalorder %s21, 1
      %p249 = scmp.ne.s32.totalorder %s244, %s246
      %p250 = scmp.eq.s32.totalorder %s21, 0
      %p251 = por %p249, %p250
      %p252 = scmp.ne.s32.totalorder %s244, %s246
      %p253 = scmp.eq.s32.totalorder %s26, 1
      %p254 = por %p252, %p253
      %p255 = scmp.ne.s32.totalorder %s246, %s247
      %p256 = scmp.eq.s32.totalorder %s26, 0
      %p257 = por %p255, %p256
      %p258 = scmp.ne.s32.totalorder %s246, %s247
      %p259 = scmp.eq.s32.totalorder %s27, 1
      %p260 = por %p258, %p259
      %p262 = scmp.ne.s32.totalorder %s247, %s261
      %p263 = scmp.eq.s32.totalorder %s27, 0
      %p264 = por %p262, %p263
      %s266 = sadd.s32 %s265, 1
      %p269 = scmp.eq.s32.totalorder %s21, 1
      %p270 = scmp.ne.s32.totalorder %s265, %s267
      %p271 = scmp.eq.s32.totalorder %s21, 0
      %p272 = por %p270, %p271
      %p273 = scmp.ne.s32.totalorder %s265, %s267
      %p274 = scmp.eq.s32.totalorder %s26, 1
      %p275 = por %p273, %p274
      %p276 = scmp.ne.s32.totalorder %s267, %s268
      %p277 = scmp.eq.s32.totalorder %s26, 0
      %p278 = por %p276, %p277
      %p279 = scmp.ne.s32.totalorder %s267, %s268
      %p280 = scmp.eq.s32.totalorder %s27, 1
      %p281 = por %p279, %p280
      %p283 = scmp.ne.s32.totalorder %s268, %s282
      %p284 = scmp.eq.s32.totalorder %s27, 0
      %p285 = por %p283, %p284
      %s286 = ssub.s32 %s21, %s28
      %p287 = scmp.eq.s32.totalorder %s286, 0
      %s289 = sadd.s32 %s288, 1
      %s290 = scalar_select %p287, %s288, %s289
      %p293 = pneg %p287
      %p294 = scmp.eq.s32.totalorder %s21, 1
      %p295 = por %p293, %p294
      %p296 = scmp.ne.s32.totalorder %s288, %s291
      %p297 = scmp.eq.s32.totalorder %s21, 0
      %p298 = por %p296, %p297
      %p299 = scmp.ne.s32.totalorder %s288, %s291
      %p300 = scmp.eq.s32.totalorder %s26, 1
      %p301 = por %p299, %p300
      %p302 = scmp.ne.s32.totalorder %s291, %s292
      %p303 = scmp.eq.s32.totalorder %s26, 0
      %p304 = por %p302, %p303
      %p305 = scmp.ne.s32.totalorder %s291, %s292
      %p306 = scmp.eq.s32.totalorder %s27, 1
      %p307 = por %p305, %p306
      %p309 = scmp.ne.s32.totalorder %s292, %s308
      %p310 = scmp.eq.s32.totalorder %s27, 0
      %p311 = por %p309, %p310
      %p312 = scmp.le.s32.totalorder 1, %s21
      %p313 = scmp.lt.s32.totalorder %s21, 3
      %p314 = pnand %p312, %p313
      %p315 = pneg %p314
      // Predicated region
      $region9: #{tpu_custom_call.1} parent=5 // pred_check
        _
      $region10: #{tpu_custom_call.1} parent=5 // pred_check_branch
        %317 = sbr.rel (%p314) target = $region12
      $region11: #{tpu_custom_call.1} parent=5 // pred_region
        %s318 = ssub.s32 %s21, 1
        // Predicated region
        $region13: #{tpu_custom_call.1} parent=11 // pred_check
          %p319 = pneg %p68
        $region14: #{tpu_custom_call.1} parent=11 // pred_check_branch
          %321 = sbr.rel (%p319) target = $region16
        $region15: #{tpu_custom_call.1} parent=11 // pred_region
          _
        $region16: #{tpu_custom_call.1} parent=11 // pred_fallthru
          _
        // Predicated region
        $region17: #{tpu_custom_call.1} parent=11 // pred_check
          %p322 = pneg %p89
        $region18: #{tpu_custom_call.1} parent=11 // pred_check_branch
          %324 = sbr.rel (%p322) target = $region20
        $region19: #{tpu_custom_call.1} parent=11 // pred_region
          _
        $region20: #{tpu_custom_call.1} parent=11 // pred_fallthru
          _
        // Predicated region
        $region21: #{tpu_custom_call.1} parent=11 // pred_check
          %p325 = pneg %p110
        $region22: #{tpu_custom_call.1} parent=11 // pred_check_branch
          %327 = sbr.rel (%p325) target = $region24
        $region23: #{tpu_custom_call.1} parent=11 // pred_region
          _
        $region24: #{tpu_custom_call.1} parent=11 // pred_fallthru
          _
        // Predicated region
        $region25: #{tpu_custom_call.1} parent=11 // pred_check
          %p328 = pneg %p131
        $region26: #{tpu_custom_call.1} parent=11 // pred_check_branch
          %330 = sbr.rel (%p328) target = $region28
        $region27: #{tpu_custom_call.1} parent=11 // pred_region
          _
        $region28: #{tpu_custom_call.1} parent=11 // pred_fallthru
          _
        // Predicated region
        $region29: #{tpu_custom_call.1} parent=11 // pred_check
          %p331 = pneg %p152
        $region30: #{tpu_custom_call.1} parent=11 // pred_check_branch
          %333 = sbr.rel (%p331) target = $region32
        $region31: #{tpu_custom_call.1} parent=11 // pred_region
          _
        $region32: #{tpu_custom_call.1} parent=11 // pred_fallthru
          _
        // Predicated region
        $region33: #{tpu_custom_call.1} parent=11 // pred_check
          %p334 = pneg %p173
        $region34: #{tpu_custom_call.1} parent=11 // pred_check_branch
          %336 = sbr.rel (%p334) target = $region36
        $region35: #{tpu_custom_call.1} parent=11 // pred_region
          _
        $region36: #{tpu_custom_call.1} parent=11 // pred_fallthru
          _
        // Predicated region
        $region37: #{tpu_custom_call.1} parent=11 // pred_check
          %p337 = pneg %p194
        $region38: #{tpu_custom_call.1} parent=11 // pred_check_branch
          %339 = sbr.rel (%p337) target = $region40
        $region39: #{tpu_custom_call.1} parent=11 // pred_region
          _
        $region40: #{tpu_custom_call.1} parent=11 // pred_fallthru
          _
        // Predicated region
        $region41: #{tpu_custom_call.1} parent=11 // pred_check
          %p340 = pneg %p215
        $region42: #{tpu_custom_call.1} parent=11 // pred_check_branch
          %342 = sbr.rel (%p340) target = $region44
        $region43: #{tpu_custom_call.1} parent=11 // pred_region
          _
        $region44: #{tpu_custom_call.1} parent=11 // pred_fallthru
          _
        // Predicated region
        $region45: #{tpu_custom_call.1} parent=11 // pred_check
          %p343 = pneg %p236
        $region46: #{tpu_custom_call.1} parent=11 // pred_check_branch
          %345 = sbr.rel (%p343) target = $region48
        $region47: #{tpu_custom_call.1} parent=11 // pred_region
          _
        $region48: #{tpu_custom_call.1} parent=11 // pred_fallthru
          _
        // Predicated region
        $region49: #{tpu_custom_call.1} parent=11 // pred_check
          %p346 = pneg %p257
        $region50: #{tpu_custom_call.1} parent=11 // pred_check_branch
          %348 = sbr.rel (%p346) target = $region52
        $region51: #{tpu_custom_call.1} parent=11 // pred_region
          _
        $region52: #{tpu_custom_call.1} parent=11 // pred_fallthru
          _
        // Predicated region
        $region53: #{tpu_custom_call.1} parent=11 // pred_check
          %p349 = pneg %p278
        $region54: #{tpu_custom_call.1} parent=11 // pred_check_branch
          %351 = sbr.rel (%p349) target = $region56
        $region55: #{tpu_custom_call.1} parent=11 // pred_region
          _
        $region56: #{tpu_custom_call.1} parent=11 // pred_fallthru
          _
      $region12: #{tpu_custom_call.1} parent=5 // pred_fallthru
        _
      %p352 = scmp.lt.s32.totalorder %s21, 2
      // Predicated region
      $region57: #{tpu_custom_call.1} parent=5 // pred_check
        %p353 = pneg %p352
      $region58: #{tpu_custom_call.1} parent=5 // pred_check_branch
        %355 = sbr.rel (%p353) target = $region60
      $region59: #{tpu_custom_call.1} parent=5 // pred_region
        // Predicated region
        $region61: #{tpu_custom_call.1} parent=59 // pred_check
          %p356 = pneg %p41
        $region62: #{tpu_custom_call.1} parent=59 // pred_check_branch
          %358 = sbr.rel (%p356) target = $region64
        $region63: #{tpu_custom_call.1} parent=59 // pred_region
          %p359 = scmp.lt.s32.totalorder %s21, 1
          %s360 = scalar_select %p359, %s21, 1
          %s361 = smul.addr %s360, 8
          %s362 = scalar_lea.vmem %s0, %s361
        $region64: #{tpu_custom_call.1} parent=59 // pred_fallthru
          _
      $region60: #{tpu_custom_call.1} parent=5 // pred_fallthru
        _
      %p363 = scmp.le.s32.totalorder 1, %s21
      %p364 = scmp.lt.s32.totalorder %s21, 3
      %p365 = pnand %p363, %p364
      %p366 = pneg %p365
      // Predicated region
      $region65: #{tpu_custom_call.1} parent=5 // pred_check
        _
      $region66: #{tpu_custom_call.1} parent=5 // pred_check_branch
        %368 = sbr.rel (%p365) target = $region68
      $region67: #{tpu_custom_call.1} parent=5 // pred_region
        %s369 = ssub.s32 %s21, 1
        %p370 = scmp.lt.s32.totalorder %s26, 1
        %s371 = scalar_select %p370, %s26, 1
        %s372 = smul.addr %s371, 8
        %s373 = scalar_lea.vmem %s0, %s372
        %p374 = pneg %p47
        %p375 = pneg %p44
        %p376 = pneg %p68
        %p377 = pneg %p65
        %p378 = pneg %p89
        %p379 = pneg %p86
        %p380 = pneg %p110
        %p381 = pneg %p107
        %p382 = pneg %p131
        %p383 = pneg %p128
        %p384 = pneg %p152
        %p385 = pneg %p149
        %p386 = pneg %p173
        %p387 = pneg %p170
        %p388 = pneg %p194
        %p389 = pneg %p191
        %p390 = pneg %p215
        %p391 = pneg %p212
        %p392 = pneg %p236
        %p393 = pneg %p233
        %p394 = pneg %p257
        %p395 = pneg %p254
        %p396 = pneg %p278
        %p397 = pneg %p275
        %p398 = pneg %p304
        %p399 = pneg %p301
        %s400 = sand.u32 %s291, 1
        %s401 = scalar_lea.sflag [#allocation4], %s400
        %s402 = sand.u32 %s291, 1
        %s403 = smul.addr %s402, 8
        %s404 = scalar_lea.vmem [#allocation3], %s403
        %p405 = scmp.lt.s32.totalorder %s26, 1
        %s406 = scalar_select %p405, %s26, 1
        %s407 = smul.addr %s406, 8
        %s408 = scalar_lea.vmem %s0, %s407
        %v410 = vld [vmem:[%s408] sm:$0xff]
        %v411 = vld [vmem:[%s1] sm:$0x1]
        %v412 = vld [vmem:[%s2] sm:$0x1]
        %vm413 = vcmask 261120
        %v414 = vsel %vm413, %v410, 0.0
        %415 = vadd.xlane.f32.xlu0 %v414
        %v416 = vpop.xlane.xlu0 %415
        %v417 = vrcp.pop 32.0
        %v418 = vmul.f32 %v416, %v417
        %v419 = vsub.f32 %v410, %v418
        %v420 = vmul.f32 %v419, %v419
        %v421 = vsel %vm413, %v420, 0.0
        %422 = vadd.xlane.f32.xlu0 %v421
        %v423 = vpop.xlane.xlu0 %422
        %v424 = vmul.f32 %v423, %v417
        %v425 = vadd.f32 %v424, 1e-05
        %v426 = vrsqrt.pop %v425
        %v427 = vmul.f32 %v419, %v426
        %v429 = vlaneseq
        %v430 = vshrl.u32 %v429, 7
        %v431 = vsub.s32 0, %v430
        %v432 = vrot.slane %v411, %v431
        %v434 = vmul.f32 %v427, %v432
        %v436 = vlaneseq
        %v437 = vshrl.u32 %v436, 7
        %v438 = vsub.s32 0, %v437
        %v439 = vrot.slane %v412, %v438
        %v441 = vadd.f32 %v434, %v439
        %v442 = vpack.c.bf16 %v441, %v441
        %v443 = vld [vmem:[%s3] sm:$0xf]
        %v444 = vld [vmem:[%s3 + $0x4] sm:$0xf]
        %v445 = vld [vmem:[%s3 + $0x8] sm:$0xf]
        %v446 = vld [vmem:[%s3 + $0xc] sm:$0xf]
        %v451 = vunpack.c.l.b16 %v443
        %v452 = vunpack.c.l.b16 %v444
        %v453 = vunpack.c.l.b16 %v445
        %v454 = vunpack.c.l.b16 %v446
        %v455 = vpack.c.b16 %v452, %v451
        %v456 = vpack.c.b16 %v454, %v453
        %v460 = vsel %vm413, %v442, 0
        %462 = vmatprep.subr.bf16.mxu0 0
        %463 = vmatpush1.bf16.msra.mxu0 %v455
        %464 = vmatprep.subr.bf16.mxu0 0
        %465 = vmatpush1.bf16.msra.mxu0 %v456
        %466 = vmatprep.subr.bf16.mxu0 0
        %467 = vmatpush1.bf16.msra.mxu0 0
        %468 = vmatprep.subr.bf16.mxu0 0
        %469 = vmatpush1.bf16.msra.mxu0 0
        %470 = vmatprep.subr.bf16.mxu0 0
        %471 = vmatpush1.bf16.msra.mxu0 0
        %472 = vmatprep.subr.bf16.mxu0 0
        %473 = vmatpush1.bf16.msra.mxu0 0
        %474 = vmatprep.subr.bf16.mxu0 0
        %475 = vmatpush1.bf16.msra.mxu0 0
        %476 = vmatprep.subr.bf16.mxu0 0
        %477 = vmatpush1.bf16.msra.mxu0 0
        %478 = vmatprep.subr.bf16.mxu0 0
        %479 = vmatpush1.bf16.msra.mxu0 0
        %480 = vmatprep.subr.bf16.mxu0 0
        %481 = vmatpush1.bf16.msra.mxu0 0
        %482 = vmatprep.subr.bf16.mxu0 0
        %483 = vmatpush1.bf16.msra.mxu0 0
        %484 = vmatprep.subr.bf16.mxu0 0
        %485 = vmatpush1.bf16.msra.mxu0 0
        %486 = vmatprep.subr.bf16.mxu0 0
        %487 = vmatpush1.bf16.msra.mxu0 0
        %488 = vmatprep.subr.bf16.mxu0 0
        %489 = vmatpush1.bf16.msra.mxu0 0
        %490 = vmatprep.subr.bf16.mxu0 0
        %491 = vmatpush1.bf16.msra.mxu0 0
        %492 = vmatprep.subr.bf16.mxu0 0
        %493 = vmatpush1.bf16.msra.mxu0 0
        %494 = vmatprep.mubr.bf16.mxu0 0
        %495 = vmatmul.mubr.bf16.gmra.mrb[0].mxu0 %v460
        %v496 = vpop.f32.mrb[0].mxu0
        %v497 = vadd.f32 0.0, %v496
        %v498 = vpop.f32.mrb[0].mxu0
        %v499 = vpop.f32.mrb[0].mxu0
        %v500 = vpop.f32.mrb[0].mxu0
        %501 = vdwg.mxu0
        %v502 = vmul.f32 %v497, 0.35355338
        %v503 = vpack.c.bf16 %v502, %v502
        %v504 = vpack.c.bf16 %v497, %v497
        %506 = vrot.lane.b32.xlu0 %v504, 96
        %v507 = vpop.permute.xlu0 %506
        %vm508 = vcmask 64512
        %v510 = vsel %vm508, %v503, 0
        %v513 = vsel %vm508, %v507, 0
        %515 = vmatprep.subr.bf16.mxu0 0
        %516 = vmatpush1.bf16.xpose.msra.mxu0 %v513
        %517 = vmatprep.subr.bf16.mxu0 0
        %518 = vmatpush1.bf16.xpose.msra.mxu0 0
        %519 = vmatprep.subr.bf16.mxu0 0
        %520 = vmatpush1.bf16.xpose.msra.mxu0 0
        %521 = vmatprep.subr.bf16.mxu0 0
        %522 = vmatpush1.bf16.xpose.msra.mxu0 0
        %523 = vmatprep.subr.bf16.mxu0 0
        %524 = vmatpush1.bf16.xpose.msra.mxu0 0
        %525 = vmatprep.subr.bf16.mxu0 0
        %526 = vmatpush1.bf16.xpose.msra.mxu0 0
        %527 = vmatprep.subr.bf16.mxu0 0
        %528 = vmatpush1.bf16.xpose.msra.mxu0 0
        %529 = vmatprep.subr.bf16.mxu0 0
        %530 = vmatpush1.bf16.xpose.msra.mxu0 0
        %531 = vmatprep.subr.bf16.mxu0 0
        %532 = vmatpush1.bf16.xpose.msra.mxu0 0
        %533 = vmatprep.subr.bf16.mxu0 0
        %534 = vmatpush1.bf16.xpose.msra.mxu0 0
        %535 = vmatprep.subr.bf16.mxu0 0
        %536 = vmatpush1.bf16.xpose.msra.mxu0 0
        %537 = vmatprep.subr.bf16.mxu0 0
        %538 = vmatpush1.bf16.xpose.msra.mxu0 0
        %539 = vmatprep.subr.bf16.mxu0 0
        %540 = vmatpush1.bf16.xpose.msra.mxu0 0
        %541 = vmatprep.subr.bf16.mxu0 0
        %542 = vmatpush1.bf16.xpose.msra.mxu0 0
        %543 = vmatprep.subr.bf16.mxu0 0
        %544 = vmatpush1.bf16.xpose.msra.mxu0 0
        %545 = vmatprep.subr.bf16.mxu0 0
        %546 = vmatpush1.bf16.xpose.msra.mxu0 0
        %547 = vmatprep.mubr.bf16.mxu0 0
        %548 = vmatmul.mubr.bf16.gmra.mrb[0].mxu0 %v510
        %v549 = vpop.f32.mrb[0].mxu0
        %v550 = vadd.f32 0.0, %v549
        %v551 = vpop.f32.mrb[0].mxu0
        %v552 = vpop.f32.mrb[0].mxu0
        %v553 = vpop.f32.mrb[0].mxu0
        %554 = vdwg.mxu0
        %v555 = vsel %vm508, %v550, -inf
        %556 = vmax.xlane.f32.xlu0 %v555
        %v557 = vpop.xlane.xlu0 %556
        %v558 = vsub.f32 %v550, %v557
        %v559 = vmul.f32 %v558, 1.442695
        %v560 = vpow.pop %v559
        %v561 = vsel %vm508, %v560, 0.0
        %562 = vadd.xlane.f32.xlu0 %v561
        %v563 = vpop.xlane.xlu0 %562
        %v564 = vpack.c.bf16 %v560, %v560
        %565 = vrot.lane.b32.xlu0 %v504, 64
        %v566 = vpop.permute.xlu0 %565
        %v568 = vsel %vm508, %v564, 0
        %vm570 = vcmask 1043456
        %v572 = vsel %vm570, %v566, 0
        %574 = vmatprep.subr.bf16.mxu0 0
        %575 = vmatpush1.bf16.msra.mxu0 %v572
        %576 = vmatprep.subr.bf16.mxu0 0
        %577 = vmatpush1.bf16.msra.mxu0 0
        %578 = vmatprep.subr.bf16.mxu0 0
        %579 = vmatpush1.bf16.msra.mxu0 0
        %580 = vmatprep.subr.bf16.mxu0 0
        %581 = vmatpush1.bf16.msra.mxu0 0
        %582 = vmatprep.subr.bf16.mxu0 0
        %583 = vmatpush1.bf16.msra.mxu0 0
        %584 = vmatprep.subr.bf16.mxu0 0
        %585 = vmatpush1.bf16.msra.mxu0 0
        %586 = vmatprep.subr.bf16.mxu0 0
        %587 = vmatpush1.bf16.msra.mxu0 0
        %588 = vmatprep.subr.bf16.mxu0 0
        %589 = vmatpush1.bf16.msra.mxu0 0
        %590 = vmatprep.subr.bf16.mxu0 0
        %591 = vmatpush1.bf16.msra.mxu0 0
        %592 = vmatprep.subr.bf16.mxu0 0
        %593 = vmatpush1.bf16.msra.mxu0 0
        %594 = vmatprep.subr.bf16.mxu0 0
        %595 = vmatpush1.bf16.msra.mxu0 0
        %596 = vmatprep.subr.bf16.mxu0 0
        %597 = vmatpush1.bf16.msra.mxu0 0
        %598 = vmatprep.subr.bf16.mxu0 0
        %599 = vmatpush1.bf16.msra.mxu0 0
        %600 = vmatprep.subr.bf16.mxu0 0
        %601 = vmatpush1.bf16.msra.mxu0 0
        %602 = vmatprep.subr.bf16.mxu0 0
        %603 = vmatpush1.bf16.msra.mxu0 0
        %604 = vmatprep.subr.bf16.mxu0 0
        %605 = vmatpush1.bf16.msra.mxu0 0
        %606 = vmatprep.mubr.bf16.mxu0 0
        %607 = vmatmul.mubr.bf16.gmra.mrb[0].mxu0 %v568
        %v608 = vpop.f32.mrb[0].mxu0
        %v609 = vadd.f32 0.0, %v608
        %v610 = vpop.f32.mrb[0].mxu0
        %v611 = vpop.f32.mrb[0].mxu0
        %v612 = vpop.f32.mrb[0].mxu0
        %613 = vdwg.mxu0
        %v614 = vrcp.pop %v563
        %v615 = vmul.f32 %v609, %v614
        %616 = vst.msk [vmem:[#allocation2] sm:$0xff] %vm508, %v615
        %618 = vrot.lane.b32.xlu0 %v503, 120
        %v619 = vpop.permute.xlu0 %618
        %620 = vrot.lane.b32.xlu0 %v504, 88
        %v621 = vpop.permute.xlu0 %620
        %v623 = vsel %vm508, %v619, 0
        %v626 = vsel %vm508, %v621, 0
        %628 = vmatprep.subr.bf16.mxu0 0
        %629 = vmatpush1.bf16.xpose.msra.mxu0 %v626
        %630 = vmatprep.subr.bf16.mxu0 0
        %631 = vmatpush1.bf16.xpose.msra.mxu0 0
        %632 = vmatprep.subr.bf16.mxu0 0
        %633 = vmatpush1.bf16.xpose.msra.mxu0 0
        %634 = vmatprep.subr.bf16.mxu0 0
        %635 = vmatpush1.bf16.xpose.msra.mxu0 0
        %636 = vmatprep.subr.bf16.mxu0 0
        %637 = vmatpush1.bf16.xpose.msra.mxu0 0
        %638 = vmatprep.subr.bf16.mxu0 0
        %639 = vmatpush1.bf16.xpose.msra.mxu0 0
        %640 = vmatprep.subr.bf16.mxu0 0
        %641 = vmatpush1.bf16.xpose.msra.mxu0 0
        %642 = vmatprep.subr.bf16.mxu0 0
        %643 = vmatpush1.bf16.xpose.msra.mxu0 0
        %644 = vmatprep.subr.bf16.mxu0 0
        %645 = vmatpush1.bf16.xpose.msra.mxu0 0
        %646 = vmatprep.subr.bf16.mxu0 0
        %647 = vmatpush1.bf16.xpose.msra.mxu0 0
        %648 = vmatprep.subr.bf16.mxu0 0
        %649 = vmatpush1.bf16.xpose.msra.mxu0 0
        %650 = vmatprep.subr.bf16.mxu0 0
        %651 = vmatpush1.bf16.xpose.msra.mxu0 0
        %652 = vmatprep.subr.bf16.mxu0 0
        %653 = vmatpush1.bf16.xpose.msra.mxu0 0
        %654 = vmatprep.subr.bf16.mxu0 0
        %655 = vmatpush1.bf16.xpose.msra.mxu0 0
        %656 = vmatprep.subr.bf16.mxu0 0
        %657 = vmatpush1.bf16.xpose.msra.mxu0 0
        %658 = vmatprep.subr.bf16.mxu0 0
        %659 = vmatpush1.bf16.xpose.msra.mxu0 0
        %660 = vmatprep.mubr.bf16.mxu0 0
        %661 = vmatmul.mubr.bf16.gmra.mrb[0].mxu0 %v623
        %v662 = vpop.f32.mrb[0].mxu0
        %v663 = vadd.f32 0.0, %v662
        %v664 = vpop.f32.mrb[0].mxu0
        %v665 = vpop.f32.mrb[0].mxu0
        %v666 = vpop.f32.mrb[0].mxu0
        %667 = vdwg.mxu0
        %v668 = vsel %vm508, %v663, -inf
        %669 = vmax.xlane.f32.xlu0 %v668
        %v670 = vpop.xlane.xlu0 %669
        %v671 = vsub.f32 %v663, %v670
        %v672 = vmul.f32 %v671, 1.442695
        %v673 = vpow.pop %v672
        %v674 = vsel %vm508, %v673, 0.0
        %675 = vadd.xlane.f32.xlu0 %v674
        %v676 = vpop.xlane.xlu0 %675
        %v677 = vpack.c.bf16 %v673, %v673
        %678 = vrot.lane.b32.xlu0 %v504, 56
        %v679 = vpop.permute.xlu0 %678
        %v681 = vsel %vm508, %v677, 0
        %v684 = vsel %vm570, %v679, 0
        %686 = vmatprep.subr.bf16.mxu0 0
        %687 = vmatpush1.bf16.msra.mxu0 %v684
        %688 = vmatprep.subr.bf16.mxu0 0
        %689 = vmatpush1.bf16.msra.mxu0 0
        %690 = vmatprep.subr.bf16.mxu0 0
        %691 = vmatpush1.bf16.msra.mxu0 0
        %692 = vmatprep.subr.bf16.mxu0 0
        %693 = vmatpush1.bf16.msra.mxu0 0
        %694 = vmatprep.subr.bf16.mxu0 0
        %695 = vmatpush1.bf16.msra.mxu0 0
        %696 = vmatprep.subr.bf16.mxu0 0
        %697 = vmatpush1.bf16.msra.mxu0 0
        %698 = vmatprep.subr.bf16.mxu0 0
        %699 = vmatpush1.bf16.msra.mxu0 0
        %700 = vmatprep.subr.bf16.mxu0 0
        %701 = vmatpush1.bf16.msra.mxu0 0
        %702 = vmatprep.subr.bf16.mxu0 0
        %703 = vmatpush1.bf16.msra.mxu0 0
        %704 = vmatprep.subr.bf16.mxu0 0
        %705 = vmatpush1.bf16.msra.mxu0 0
        %706 = vmatprep.subr.bf16.mxu0 0
        %707 = vmatpush1.bf16.msra.mxu0 0
        %708 = vmatprep.subr.bf16.mxu0 0
        %709 = vmatpush1.bf16.msra.mxu0 0
        %710 = vmatprep.subr.bf16.mxu0 0
        %711 = vmatpush1.bf16.msra.mxu0 0
        %712 = vmatprep.subr.bf16.mxu0 0
        %713 = vmatpush1.bf16.msra.mxu0 0
        %714 = vmatprep.subr.bf16.mxu0 0
        %715 = vmatpush1.bf16.msra.mxu0 0
        %716 = vmatprep.subr.bf16.mxu0 0
        %717 = vmatpush1.bf16.msra.mxu0 0
        %718 = vmatprep.mubr.bf16.mxu0 0
        %719 = vmatmul.mubr.bf16.gmra.mrb[0].mxu0 %v681
        %v720 = vpop.f32.mrb[0].mxu0
        %v721 = vadd.f32 0.0, %v720
        %v722 = vpop.f32.mrb[0].mxu0
        %v723 = vpop.f32.mrb[0].mxu0
        %v724 = vpop.f32.mrb[0].mxu0
        %725 = vdwg.mxu0
        %v726 = vrcp.pop %v676
        %v727 = vmul.f32 %v721, %v726
        %729 = vrot.lane.b32.xlu0 %v727, 8
        %v730 = vpop.permute.xlu0 %729
        %vm732 = vcmask 130112
        %733 = vst.msk [vmem:[#allocation2] sm:$0xff] %vm732, %v730
        %734 = vrot.lane.b32.xlu0 %v503, 112
        %v735 = vpop.permute.xlu0 %734
        %736 = vrot.lane.b32.xlu0 %v504, 80
        %v737 = vpop.permute.xlu0 %736
        %v739 = vsel %vm508, %v735, 0
        %v742 = vsel %vm508, %v737, 0
        %744 = vmatprep.subr.bf16.mxu0 0
        %745 = vmatpush1.bf16.xpose.msra.mxu0 %v742
        %746 = vmatprep.subr.bf16.mxu0 0
        %747 = vmatpush1.bf16.xpose.msra.mxu0 0
        %748 = vmatprep.subr.bf16.mxu0 0
        %749 = vmatpush1.bf16.xpose.msra.mxu0 0
        %750 = vmatprep.subr.bf16.mxu0 0
        %751 = vmatpush1.bf16.xpose.msra.mxu0 0
        %752 = vmatprep.subr.bf16.mxu0 0
        %753 = vmatpush1.bf16.xpose.msra.mxu0 0
        %754 = vmatprep.subr.bf16.mxu0 0
        %755 = vmatpush1.bf16.xpose.msra.mxu0 0
        %756 = vmatprep.subr.bf16.mxu0 0
        %757 = vmatpush1.bf16.xpose.msra.mxu0 0
        %758 = vmatprep.subr.bf16.mxu0 0
        %759 = vmatpush1.bf16.xpose.msra.mxu0 0
        %760 = vmatprep.subr.bf16.mxu0 0
        %761 = vmatpush1.bf16.xpose.msra.mxu0 0
        %762 = vmatprep.subr.bf16.mxu0 0
        %763 = vmatpush1.bf16.xpose.msra.mxu0 0
        %764 = vmatprep.subr.bf16.mxu0 0
        %765 = vmatpush1.bf16.xpose.msra.mxu0 0
        %766 = vmatprep.subr.bf16.mxu0 0
        %767 = vmatpush1.bf16.xpose.msra.mxu0 0
        %768 = vmatprep.subr.bf16.mxu0 0
        %769 = vmatpush1.bf16.xpose.msra.mxu0 0
        %770 = vmatprep.subr.bf16.mxu0 0
        %771 = vmatpush1.bf16.xpose.msra.mxu0 0
        %772 = vmatprep.subr.bf16.mxu0 0
        %773 = vmatpush1.bf16.xpose.msra.mxu0 0
        %774 = vmatprep.subr.bf16.mxu0 0
        %775 = vmatpush1.bf16.xpose.msra.mxu0 0
        %776 = vmatprep.mubr.bf16.mxu0 0
        %777 = vmatmul.mubr.bf16.gmra.mrb[0].mxu0 %v739
        %v778 = vpop.f32.mrb[0].mxu0
        %v779 = vadd.f32 0.0, %v778
        %v780 = vpop.f32.mrb[0].mxu0
        %v781 = vpop.f32.mrb[0].mxu0
        %v782 = vpop.f32.mrb[0].mxu0
        %783 = vdwg.mxu0
        %v784 = vsel %vm508, %v779, -inf
        %785 = vmax.xlane.f32.xlu0 %v784
        %v786 = vpop.xlane.xlu0 %785
        %v787 = vsub.f32 %v779, %v786
        %v788 = vmul.f32 %v787, 1.442695
        %v789 = vpow.pop %v788
        %v790 = vsel %vm508, %v789, 0.0
        %791 = vadd.xlane.f32.xlu0 %v790
        %v792 = vpop.xlane.xlu0 %791
        %v793 = vpack.c.bf16 %v789, %v789
        %794 = vrot.lane.b32.xlu0 %v504, 48
        %v795 = vpop.permute.xlu0 %794
        %v797 = vsel %vm508, %v793, 0
        %v800 = vsel %vm570, %v795, 0
        %802 = vmatprep.subr.bf16.mxu0 0
        %803 = vmatpush1.bf16.msra.mxu0 %v800
        %804 = vmatprep.subr.bf16.mxu0 0
        %805 = vmatpush1.bf16.msra.mxu0 0
        %806 = vmatprep.subr.bf16.mxu0 0
        %807 = vmatpush1.bf16.msra.mxu0 0
        %808 = vmatprep.subr.bf16.mxu0 0
        %809 = vmatpush1.bf16.msra.mxu0 0
        %810 = vmatprep.subr.bf16.mxu0 0
        %811 = vmatpush1.bf16.msra.mxu0 0
        %812 = vmatprep.subr.bf16.mxu0 0
        %813 = vmatpush1.bf16.msra.mxu0 0
        %814 = vmatprep.subr.bf16.mxu0 0
        %815 = vmatpush1.bf16.msra.mxu0 0
        %816 = vmatprep.subr.bf16.mxu0 0
        %817 = vmatpush1.bf16.msra.mxu0 0
        %818 = vmatprep.subr.bf16.mxu0 0
        %819 = vmatpush1.bf16.msra.mxu0 0
        %820 = vmatprep.subr.bf16.mxu0 0
        %821 = vmatpush1.bf16.msra.mxu0 0
        %822 = vmatprep.subr.bf16.mxu0 0
        %823 = vmatpush1.bf16.msra.mxu0 0
        %824 = vmatprep.subr.bf16.mxu0 0
        %825 = vmatpush1.bf16.msra.mxu0 0
        %826 = vmatprep.subr.bf16.mxu0 0
        %827 = vmatpush1.bf16.msra.mxu0 0
        %828 = vmatprep.subr.bf16.mxu0 0
        %829 = vmatpush1.bf16.msra.mxu0 0
        %830 = vmatprep.subr.bf16.mxu0 0
        %831 = vmatpush1.bf16.msra.mxu0 0
        %832 = vmatprep.subr.bf16.mxu0 0
        %833 = vmatpush1.bf16.msra.mxu0 0
        %834 = vmatprep.mubr.bf16.mxu0 0
        %835 = vmatmul.mubr.bf16.gmra.mrb[0].mxu0 %v797
        %v836 = vpop.f32.mrb[0].mxu0
        %v837 = vadd.f32 0.0, %v836
        %v838 = vpop.f32.mrb[0].mxu0
        %v839 = vpop.f32.mrb[0].mxu0
        %v840 = vpop.f32.mrb[0].mxu0
        %841 = vdwg.mxu0
        %v842 = vrcp.pop %v792
        %v843 = vmul.f32 %v837, %v842
        %845 = vrot.lane.b32.xlu0 %v843, 16
        %v846 = vpop.permute.xlu0 %845
        %vm848 = vcmask 195712
        %849 = vst.msk [vmem:[#allocation2] sm:$0xff] %vm848, %v846
        %850 = vrot.lane.b32.xlu0 %v503, 104
        %v851 = vpop.permute.xlu0 %850
        %852 = vrot.lane.b32.xlu0 %v504, 72
        %v853 = vpop.permute.xlu0 %852
        %v855 = vsel %vm508, %v851, 0
        %v858 = vsel %vm508, %v853, 0
        %860 = vmatprep.subr.bf16.mxu0 0
        %861 = vmatpush1.bf16.xpose.msra.mxu0 %v858
        %862 = vmatprep.subr.bf16.mxu0 0
        %863 = vmatpush1.bf16.xpose.msra.mxu0 0
        %864 = vmatprep.subr.bf16.mxu0 0
        %865 = vmatpush1.bf16.xpose.msra.mxu0 0
        %866 = vmatprep.subr.bf16.mxu0 0
        %867 = vmatpush1.bf16.xpose.msra.mxu0 0
        %868 = vmatprep.subr.bf16.mxu0 0
        %869 = vmatpush1.bf16.xpose.msra.mxu0 0
        %870 = vmatprep.subr.bf16.mxu0 0
        %871 = vmatpush1.bf16.xpose.msra.mxu0 0
        %872 = vmatprep.subr.bf16.mxu0 0
        %873 = vmatpush1.bf16.xpose.msra.mxu0 0
        %874 = vmatprep.subr.bf16.mxu0 0
        %875 = vmatpush1.bf16.xpose.msra.mxu0 0
        %876 = vmatprep.subr.bf16.mxu0 0
        %877 = vmatpush1.bf16.xpose.msra.mxu0 0
        %878 = vmatprep.subr.bf16.mxu0 0
        %879 = vmatpush1.bf16.xpose.msra.mxu0 0
        %880 = vmatprep.subr.bf16.mxu0 0
        %881 = vmatpush1.bf16.xpose.msra.mxu0 0
        %882 = vmatprep.subr.bf16.mxu0 0
        %883 = vmatpush1.bf16.xpose.msra.mxu0 0
        %884 = vmatprep.subr.bf16.mxu0 0
        %885 = vmatpush1.bf16.xpose.msra.mxu0 0
        %886 = vmatprep.subr.bf16.mxu0 0
        %887 = vmatpush1.bf16.xpose.msra.mxu0 0
        %888 = vmatprep.subr.bf16.mxu0 0
        %889 = vmatpush1.bf16.xpose.msra.mxu0 0
        %890 = vmatprep.subr.bf16.mxu0 0
        %891 = vmatpush1.bf16.xpose.msra.mxu0 0
        %892 = vmatprep.mubr.bf16.mxu0 0
        %893 = vmatmul.mubr.bf16.gmra.mrb[0].mxu0 %v855
        %v894 = vpop.f32.mrb[0].mxu0
        %v895 = vadd.f32 0.0, %v894
        %v896 = vpop.f32.mrb[0].mxu0
        %v897 = vpop.f32.mrb[0].mxu0
        %v898 = vpop.f32.mrb[0].mxu0
        %899 = vdwg.mxu0
        %v900 = vsel %vm508, %v895, -inf
        %901 = vmax.xlane.f32.xlu0 %v900
        %v902 = vpop.xlane.xlu0 %901
        %v903 = vsub.f32 %v895, %v902
        %v904 = vmul.f32 %v903, 1.442695
        %v905 = vpow.pop %v904
        %v906 = vsel %vm508, %v905, 0.0
        %907 = vadd.xlane.f32.xlu0 %v906
        %v908 = vpop.xlane.xlu0 %907
        %v909 = vpack.c.bf16 %v905, %v905
        %910 = vrot.lane.b32.xlu0 %v504, 40
        %v911 = vpop.permute.xlu0 %910
        %v913 = vsel %vm508, %v909, 0
        %v916 = vsel %vm570, %v911, 0
        %918 = vmatprep.subr.bf16.mxu0 0
        %919 = vmatpush1.bf16.msra.mxu0 %v916
        %920 = vmatprep.subr.bf16.mxu0 0
        %921 = vmatpush1.bf16.msra.mxu0 0
        %922 = vmatprep.subr.bf16.mxu0 0
        %923 = vmatpush1.bf16.msra.mxu0 0
        %924 = vmatprep.subr.bf16.mxu0 0
        %925 = vmatpush1.bf16.msra.mxu0 0
        %926 = vmatprep.subr.bf16.mxu0 0
        %927 = vmatpush1.bf16.msra.mxu0 0
        %928 = vmatprep.subr.bf16.mxu0 0
        %929 = vmatpush1.bf16.msra.mxu0 0
        %930 = vmatprep.subr.bf16.mxu0 0
        %931 = vmatpush1.bf16.msra.mxu0 0
        %932 = vmatprep.subr.bf16.mxu0 0
        %933 = vmatpush1.bf16.msra.mxu0 0
        %934 = vmatprep.subr.bf16.mxu0 0
        %935 = vmatpush1.bf16.msra.mxu0 0
        %936 = vmatprep.subr.bf16.mxu0 0
        %937 = vmatpush1.bf16.msra.mxu0 0
        %938 = vmatprep.subr.bf16.mxu0 0
        %939 = vmatpush1.bf16.msra.mxu0 0
        %940 = vmatprep.subr.bf16.mxu0 0
        %941 = vmatpush1.bf16.msra.mxu0 0
        %942 = vmatprep.subr.bf16.mxu0 0
        %943 = vmatpush1.bf16.msra.mxu0 0
        %944 = vmatprep.subr.bf16.mxu0 0
        %945 = vmatpush1.bf16.msra.mxu0 0
        %946 = vmatprep.subr.bf16.mxu0 0
        %947 = vmatpush1.bf16.msra.mxu0 0
        %948 = vmatprep.subr.bf16.mxu0 0
        %949 = vmatpush1.bf16.msra.mxu0 0
        %950 = vmatprep.mubr.bf16.mxu0 0
        %951 = vmatmul.mubr.bf16.gmra.mrb[0].mxu0 %v913
        %v952 = vpop.f32.mrb[0].mxu0
        %v953 = vadd.f32 0.0, %v952
        %v954 = vpop.f32.mrb[0].mxu0
        %v955 = vpop.f32.mrb[0].mxu0
        %v956 = vpop.f32.mrb[0].mxu0
        %957 = vdwg.mxu0
        %v958 = vrcp.pop %v908
        %v959 = vmul.f32 %v953, %v958
        %961 = vrot.lane.b32.xlu0 %v959, 24
        %v962 = vpop.permute.xlu0 %961
        %vm964 = vcmask 261312
        %965 = vst.msk [vmem:[#allocation2] sm:$0xff] %vm964, %v962
        %v966 = vld [vmem:[#allocation2] sm:$0xff]
        %v967 = vpack.c.bf16 %v966, %v966
        %v968 = vld [vmem:[%s4] sm:$0xf]
        %v969 = vld [vmem:[%s4 + $0x4] sm:$0xf]
        %v970 = vld [vmem:[%s4 + $0x8] sm:$0xf]
        %v971 = vld [vmem:[%s4 + $0xc] sm:$0xf]
        %v972 = vld [vmem:[%s5] sm:$0x1]
        %v974 = vlaneseq
        %v975 = vshrl.u32 %v974, 7
        %v976 = vsub.s32 0, %v975
        %v977 = vrot.slane %v972, %v976
        %v983 = vunpack.c.l.b16 %v968
        %v984 = vunpack.c.l.b16 %v969
        %v985 = vunpack.c.l.b16 %v970
        %v986 = vunpack.c.l.b16 %v971
        %v987 = vpack.c.b16 %v984, %v983
        %v988 = vpack.c.b16 %v986, %v985
        %v992 = vsel %vm413, %v967, 0
        %994 = vmatprep.subr.bf16.mxu0 0
        %995 = vmatpush1.bf16.msra.mxu0 %v987
        %996 = vmatprep.subr.bf16.mxu0 0
        %997 = vmatpush1.bf16.msra.mxu0 %v988
        %998 = vmatprep.subr.bf16.mxu0 0
        %999 = vmatpush1.bf16.msra.mxu0 0
        %1000 = vmatprep.subr.bf16.mxu0 0
        %1001 = vmatpush1.bf16.msra.mxu0 0
        %1002 = vmatprep.subr.bf16.mxu0 0
        %1003 = vmatpush1.bf16.msra.mxu0 0
        %1004 = vmatprep.subr.bf16.mxu0 0
        %1005 = vmatpush1.bf16.msra.mxu0 0
        %1006 = vmatprep.subr.bf16.mxu0 0
        %1007 = vmatpush1.bf16.msra.mxu0 0
        %1008 = vmatprep.subr.bf16.mxu0 0
        %1009 = vmatpush1.bf16.msra.mxu0 0
        %1010 = vmatprep.subr.bf16.mxu0 0
        %1011 = vmatpush1.bf16.msra.mxu0 0
        %1012 = vmatprep.subr.bf16.mxu0 0
        %1013 = vmatpush1.bf16.msra.mxu0 0
        %1014 = vmatprep.subr.bf16.mxu0 0
        %1015 = vmatpush1.bf16.msra.mxu0 0
        %1016 = vmatprep.subr.bf16.mxu0 0
        %1017 = vmatpush1.bf16.msra.mxu0 0
        %1018 = vmatprep.subr.bf16.mxu0 0
        %1019 = vmatpush1.bf16.msra.mxu0 0
        %1020 = vmatprep.subr.bf16.mxu0 0
        %1021 = vmatpush1.bf16.msra.mxu0 0
        %1022 = vmatprep.subr.bf16.mxu0 0
        %1023 = vmatpush1.bf16.msra.mxu0 0
        %1024 = vmatprep.subr.bf16.mxu0 0
        %1025 = vmatpush1.bf16.msra.mxu0 0
        %1026 = vmatprep.mubr.bf16.mxu0 0
        %1027 = vmatmul.mubr.bf16.gmra.mrb[0].mxu0 %v992
        %v1028 = vpop.f32.mrb[0].mxu0
        %v1029 = vadd.f32 %v977, %v1028
        %v1030 = vpop.f32.mrb[0].mxu0
        %v1031 = vpop.f32.mrb[0].mxu0
        %v1032 = vpop.f32.mrb[0].mxu0
        %1033 = vdwg.mxu0
        %v1034 = vadd.f32 %v410, %v1029
        %v1035 = vld [vmem:[%s6] sm:$0x1]
        %v1036 = vld [vmem:[%s7] sm:$0x1]
        %v1037 = vsel %vm413, %v1034, 0.0
        %1038 = vadd.xlane.f32.xlu0 %v1037
        %v1039 = vpop.xlane.xlu0 %1038
        %v1040 = vmul.f32 %v1039, %v417
        %v1041 = vsub.f32 %v1034, %v1040
        %v1042 = vmul.f32 %v1041, %v1041
        %v1043 = vsel %vm413, %v1042, 0.0
        %1044 = vadd.xlane.f32.xlu0 %v1043
        %v1045 = vpop.xlane.xlu0 %1044
        %v1046 = vmul.f32 %v1045, %v417
        %v1047 = vadd.f32 %v1046, 1e-05
        %v1048 = vrsqrt.pop %v1047
        %v1049 = vmul.f32 %v1041, %v1048
        %v1051 = vlaneseq
        %v1052 = vshrl.u32 %v1051, 7
        %v1053 = vsub.s32 0, %v1052
        %v1054 = vrot.slane %v1035, %v1053
        %v1056 = vmul.f32 %v1049, %v1054
        %v1058 = vlaneseq
        %v1059 = vshrl.u32 %v1058, 7
        %v1060 = vsub.s32 0, %v1059
        %v1061 = vrot.slane %v1036, %v1060
        %v1063 = vadd.f32 %v1056, %v1061
        %v1064 = vpack.c.bf16 %v1063, %v1063
        %v1065 = vld [vmem:[%s8] sm:$0xf]
        %v1066 = vld [vmem:[%s8 + $0x4] sm:$0xf]
        %v1067 = vld [vmem:[%s8 + $0x8] sm:$0xf]
        %v1068 = vld [vmem:[%s8 + $0xc] sm:$0xf]
        %v1069 = vld [vmem:[%s9] sm:$0x1]
        %v1071 = vlaneseq
        %v1072 = vshrl.u32 %v1071, 7
        %v1073 = vsub.s32 0, %v1072
        %v1074 = vrot.slane %v1069, %v1073
        %v1080 = vunpack.c.l.b16 %v1065
        %v1081 = vunpack.c.l.b16 %v1066
        %v1082 = vunpack.c.l.b16 %v1067
        %v1083 = vunpack.c.l.b16 %v1068
        %v1084 = vpack.c.b16 %v1081, %v1080
        %v1085 = vpack.c.b16 %v1083, %v1082
        %v1089 = vsel %vm413, %v1064, 0
        %1091 = vmatprep.subr.bf16.mxu0 0
        %1092 = vmatpush1.bf16.msra.mxu0 %v1084
        %1093 = vmatprep.subr.bf16.mxu0 0
        %1094 = vmatpush1.bf16.msra.mxu0 %v1085
        %1095 = vmatprep.subr.bf16.mxu0 0
        %1096 = vmatpush1.bf16.msra.mxu0 0
        %1097 = vmatprep.subr.bf16.mxu0 0
        %1098 = vmatpush1.bf16.msra.mxu0 0
        %1099 = vmatprep.subr.bf16.mxu0 0
        %1100 = vmatpush1.bf16.msra.mxu0 0
        %1101 = vmatprep.subr.bf16.mxu0 0
        %1102 = vmatpush1.bf16.msra.mxu0 0
        %1103 = vmatprep.subr.bf16.mxu0 0
        %1104 = vmatpush1.bf16.msra.mxu0 0
        %1105 = vmatprep.subr.bf16.mxu0 0
        %1106 = vmatpush1.bf16.msra.mxu0 0
        %1107 = vmatprep.subr.bf16.mxu0 0
        %1108 = vmatpush1.bf16.msra.mxu0 0
        %1109 = vmatprep.subr.bf16.mxu0 0
        %1110 = vmatpush1.bf16.msra.mxu0 0
        %1111 = vmatprep.subr.bf16.mxu0 0
        %1112 = vmatpush1.bf16.msra.mxu0 0
        %1113 = vmatprep.subr.bf16.mxu0 0
        %1114 = vmatpush1.bf16.msra.mxu0 0
        %1115 = vmatprep.subr.bf16.mxu0 0
        %1116 = vmatpush1.bf16.msra.mxu0 0
        %1117 = vmatprep.subr.bf16.mxu0 0
        %1118 = vmatpush1.bf16.msra.mxu0 0
        %1119 = vmatprep.subr.bf16.mxu0 0
        %1120 = vmatpush1.bf16.msra.mxu0 0
        %1121 = vmatprep.subr.bf16.mxu0 0
        %1122 = vmatpush1.bf16.msra.mxu0 0
        %1123 = vmatprep.mubr.bf16.mxu0 0
        %1124 = vmatmul.mubr.bf16.gmra.mrb[0].mxu0 %v1089
        %v1125 = vpop.f32.mrb[0].mxu0
        %v1126 = vadd.f32 %v1074, %v1125
        %v1127 = vpop.f32.mrb[0].mxu0
        %v1128 = vpop.f32.mrb[0].mxu0
        %v1129 = vpop.f32.mrb[0].mxu0
        %1130 = vdwg.mxu0
        %v1131 = vmul.f32 %v1126, %v1126
        %v1132 = vmul.f32 %v1126, %v1131
        %v1133 = vmul.f32 %v1132, 0.044715
        %v1134 = vadd.f32 %v1126, %v1133
        %v1135 = vmul.f32 %v1134, 0.7978846
        %v1136 = vtanh.pop %v1135
        %v1137 = vadd.f32 %v1136, 1.0
        %v1138 = vmul.f32 %v1137, 0.5
        %v1139 = vmul.f32 %v1126, %v1138
        %v1140 = vpack.c.bf16 %v1139, %v1139
        %v1141 = vld [vmem:[%s10] sm:$0xf]
        %v1142 = vld [vmem:[%s10 + $0x4] sm:$0xf]
        %v1143 = vld [vmem:[%s10 + $0x8] sm:$0xf]
        %v1144 = vld [vmem:[%s10 + $0xc] sm:$0xf]
        %v1145 = vld [vmem:[%s10 + $0x10] sm:$0xf]
        %v1146 = vld [vmem:[%s10 + $0x14] sm:$0xf]
        %v1147 = vld [vmem:[%s10 + $0x18] sm:$0xf]
        %v1148 = vld [vmem:[%s10 + $0x1c] sm:$0xf]
        %v1149 = vld [vmem:[%s10 + $0x20] sm:$0xf]
        %v1150 = vld [vmem:[%s10 + $0x24] sm:$0xf]
        %v1151 = vld [vmem:[%s10 + $0x28] sm:$0xf]
        %v1152 = vld [vmem:[%s10 + $0x2c] sm:$0xf]
        %v1153 = vld [vmem:[%s10 + $0x30] sm:$0xf]
        %v1154 = vld [vmem:[%s10 + $0x34] sm:$0xf]
        %v1155 = vld [vmem:[%s10 + $0x38] sm:$0xf]
        %v1156 = vld [vmem:[%s10 + $0x3c] sm:$0xf]
        %v1157 = vld [vmem:[%s11] sm:$0x1]
        %v1159 = vlaneseq
        %v1160 = vshrl.u32 %v1159, 7
        %v1161 = vsub.s32 0, %v1160
        %v1162 = vrot.slane %v1157, %v1161
        %v1180 = vunpack.c.l.b16 %v1141
        %v1181 = vunpack.c.l.b16 %v1142
        %v1182 = vunpack.c.l.b16 %v1143
        %v1183 = vunpack.c.l.b16 %v1144
        %v1184 = vunpack.c.l.b16 %v1145
        %v1185 = vunpack.c.l.b16 %v1146
        %v1186 = vunpack.c.l.b16 %v1147
        %v1187 = vunpack.c.l.b16 %v1148
        %v1188 = vunpack.c.l.b16 %v1149
        %v1189 = vunpack.c.l.b16 %v1150
        %v1190 = vunpack.c.l.b16 %v1151
        %v1191 = vunpack.c.l.b16 %v1152
        %v1192 = vunpack.c.l.b16 %v1153
        %v1193 = vunpack.c.l.b16 %v1154
        %v1194 = vunpack.c.l.b16 %v1155
        %v1195 = vunpack.c.l.b16 %v1156
        %v1196 = vpack.c.b16 %v1181, %v1180
        %v1197 = vpack.c.b16 %v1183, %v1182
        %v1198 = vpack.c.b16 %v1185, %v1184
        %v1199 = vpack.c.b16 %v1187, %v1186
        %v1200 = vpack.c.b16 %v1189, %v1188
        %v1201 = vpack.c.b16 %v1191, %v1190
        %v1202 = vpack.c.b16 %v1193, %v1192
        %v1203 = vpack.c.b16 %v1195, %v1194
        %1212 = vmatprep.subr.bf16.mxu0 0
        %1213 = vmatpush1.bf16.msra.mxu0 %v1196
        %1214 = vmatprep.subr.bf16.mxu0 0
        %1215 = vmatpush1.bf16.msra.mxu0 %v1197
        %1216 = vmatprep.subr.bf16.mxu0 0
        %1217 = vmatpush1.bf16.msra.mxu0 %v1198
        %1218 = vmatprep.subr.bf16.mxu0 0
        %1219 = vmatpush1.bf16.msra.mxu0 %v1199
        %1220 = vmatprep.subr.bf16.mxu0 0
        %1221 = vmatpush1.bf16.msra.mxu0 %v1200
        %1222 = vmatprep.subr.bf16.mxu0 0
        %1223 = vmatpush1.bf16.msra.mxu0 %v1201
        %1224 = vmatprep.subr.bf16.mxu0 0
        %1225 = vmatpush1.bf16.msra.mxu0 %v1202
        %1226 = vmatprep.subr.bf16.mxu0 0
        %1227 = vmatpush1.bf16.msra.mxu0 %v1203
        %1228 = vmatprep.subr.bf16.mxu0 0
        %1229 = vmatpush1.bf16.msra.mxu0 0
        %1230 = vmatprep.subr.bf16.mxu0 0
        %1231 = vmatpush1.bf16.msra.mxu0 0
        %1232 = vmatprep.subr.bf16.mxu0 0
        %1233 = vmatpush1.bf16.msra.mxu0 0
        %1234 = vmatprep.subr.bf16.mxu0 0
        %1235 = vmatpush1.bf16.msra.mxu0 0
        %1236 = vmatprep.subr.bf16.mxu0 0
        %1237 = vmatpush1.bf16.msra.mxu0 0
        %1238 = vmatprep.subr.bf16.mxu0 0
        %1239 = vmatpush1.bf16.msra.mxu0 0
        %1240 = vmatprep.subr.bf16.mxu0 0
        %1241 = vmatpush1.bf16.msra.mxu0 0
        %1242 = vmatprep.subr.bf16.mxu0 0
        %1243 = vmatpush1.bf16.msra.mxu0 0
        %1244 = vmatprep.mubr.bf16.mxu0 0
        %1245 = vmatmul.mubr.bf16.gmra.mrb[0].mxu0 %v1140
        %v1246 = vpop.f32.mrb[0].mxu0
        %v1247 = vadd.f32 %v1162, %v1246
        %v1248 = vpop.f32.mrb[0].mxu0
        %v1249 = vpop.f32.mrb[0].mxu0
        %v1250 = vpop.f32.mrb[0].mxu0
        %1251 = vdwg.mxu0
        %v1252 = vadd.f32 %v1034, %v1247
        %1253 = vst.msk [vmem:[%s404] sm:$0xff] %vm413, %v1252
        %s1254 = sand.u32 %s291, 1
        %s1255 = scalar_lea.sflag [#allocation4], %s1254
        %s1256 = sand.u32 %s291, 1
        %s1257 = smul.addr %s1256, 8
        %s1258 = scalar_lea.vmem [#allocation3], %s1257
        // Predicated region
        $region69: #{tpu_custom_call.1} parent=67 // pred_check
          %p1259 = pneg %p301
        $region70: #{tpu_custom_call.1} parent=67 // pred_check_branch
          %1261 = sbr.rel (%p1259) target = $region72
        $region71: #{tpu_custom_call.1} parent=67 // pred_region
          %s1263 = ssub.s32 128, 128
          %1264 = vsyncadd %s1255, %s1263
          %s1265 = smul.addr %s26, 128
          %s1266 = scalar_lea.hbm %s12, %s1265
          %s1268 = sshll.u32 %s1258, 4
          %s1269 = int_to_ptr.vmem [resolvable:$true] %s1268
          %1271 = dma.vmem_to_hbm [thread:$0]  %s1269, 128, %s1266, %s1255
        $region72: #{tpu_custom_call.1} parent=67 // pred_fallthru
          _
      $region68: #{tpu_custom_call.1} parent=5 // pred_fallthru
        _
      %p1272 = scmp.le.s32.totalorder 2, %s21
      // Predicated region
      $region73: #{tpu_custom_call.1} parent=5 // pred_check
        %p1273 = pneg %p1272
      $region74: #{tpu_custom_call.1} parent=5 // pred_check_branch
        %1275 = sbr.rel (%p1273) target = $region76
      $region75: #{tpu_custom_call.1} parent=5 // pred_region
        %s1276 = ssub.s32 %s21, 2
        // Predicated region
        $region77: #{tpu_custom_call.1} parent=75 // pred_check
          %p1277 = pneg %p307
        $region78: #{tpu_custom_call.1} parent=75 // pred_check_branch
          %1279 = sbr.rel (%p1277) target = $region80
        $region79: #{tpu_custom_call.1} parent=75 // pred_region
          %s1280 = sand.u32 %s292, 1
          %s1281 = scalar_lea.sflag [#allocation4], %s1280
          %s1282 = sand.u32 %s292, 1
          %s1283 = smul.addr %s1282, 8
          %s1284 = scalar_lea.vmem [#allocation3], %s1283
          %1285 = dma.done %s1281, 128
        $region80: #{tpu_custom_call.1} parent=75 // pred_fallthru
          _
      $region76: #{tpu_custom_call.1} parent=5 // pred_fallthru
        _
    $region6: #{tpu_custom_call.1} parent=1 // loop_footer
      %s25 = sadd.s32 1, %s21
    $region7: #{tpu_custom_call.1} parent=1 // loop_footer_branch
      %20 = sbr.rel target = $region3
    $region8: #{tpu_custom_call.1} parent=1 // loop_exit
      _
    %1286 = vsyncpa [#allocation4], 1
    %s1287 = scalar_lea.sflag [#allocation4], 1
    %1288 = vsyncpa %s1287, 1

</llo_original>
